<compile_context>
chip_gen: v5e
topology: v5e:2x2
jax: 0.10.0
libtpu: 0.0.40
codegen_flags: <defaults>
</compile_context>

<pallas_src>
import functools

import jax
import jax.numpy as jnp
from jax.experimental import pallas as pl
from jax.experimental.pallas import tpu as pltpu


_NEG = -1e30  # finite "minus infinity" used to mask padded class lanes


def _round_up(x, m):
    return (x + m - 1) // m * m


def _vmem_caps():
    """Generation-specific VMEM budgets (conservative fallback for unknown chips)."""
    try:
        kind = jax.devices()[0].device_kind.lower()
    except Exception:
        kind = ""
    big_vmem = ("v7" not in kind) and any(
        t in kind for t in ("v5e", "v5 lite", "v5litepod", "v6e", "v6 lite", "v6")
    )
    if big_vmem:   # v5e / v6e: 128 MiB physical VMEM
        return dict(limit_cap=100 << 20, a_tile_budget=40 << 20, fast_budget=44 << 20)
    # v7x (64 MiB per TensorCore) or unknown: leave headroom for compiler scratch
    return dict(limit_cap=52 << 20, a_tile_budget=14 << 20, fast_budget=26 << 20)


def _cparams(working_set_bytes, caps, dims):
    limit = int(min(max(working_set_bytes + (8 << 20), 16 << 20), caps["limit_cap"]))
    return pltpu.CompilerParams(dimension_semantics=dims, vmem_limit_bytes=limit)


def _select_tiles(n, caps):
    """Row tile tm (multiple of 16, >=256) and K tile tk (multiple of tm)."""
    tm = 512 if caps["a_tile_budget"] >= (32 << 20) else 256
    # elements along K such that the double-buffered bf16 A tile fits the budget;
    # cap at 4096 (already multi-MiB DMAs ~85%+ of HBM roofline) to bound padding.
    tk_budget = caps["a_tile_budget"] // (2 * 2 * tm)
    tk = min(tk_budget, 4096, _round_up(n, tm))
    tk = max(tm, (tk // tm) * tm)
    n_pad = _round_up(n, tk)
    return tm, tk, n_pad


# --------------------------------------------------------------------------- kernels

def fused_small_kernel(x_ref, a_ref, w1_ref, b1_ref, w2_ref, b2_ref, o_ref, *, num_class):
    """Small-graph fast path: whole forward with A resident in VMEM (A read once)."""
    x = x_ref[...].astype(jnp.float32)
    h1p = jnp.dot(x, w1_ref[...], preferred_element_type=jnp.float32) + b1_ref[...]
    h1 = jnp.maximum(
        jnp.dot(a_ref[...], h1p.astype(jnp.bfloat16), preferred_element_type=jnp.float32),
        0.0,
    )
    # TODO(synk): F.dropout(training=self.training) implemented as identity (eval mode).
    h2p = jnp.dot(h1, w2_ref[...], preferred_element_type=jnp.float32) + b2_ref[...]
    z = jnp.dot(a_ref[...], h2p.astype(jnp.bfloat16), preferred_element_type=jnp.float32)
    col = jax.lax.broadcasted_iota(jnp.int32, z.shape, 1)
    z = jnp.where(col < num_class, z, _NEG)          # mask padded class lanes
    m = jnp.max(z, axis=1, keepdims=True)
    lse = jnp.log(jnp.sum(jnp.exp(z - m), axis=1, keepdims=True))
    o_ref[...] = (z - m) - lse


def agg1_tiled_kernel(a_ref, h1p_ref, w2_ref, b2_ref, o_ref, acc_ref):
    """K-tiled:  acc += A[i,k] @ h1p[k];  on last k:  o = relu(acc) @ W2 + b2 (bf16)."""
    k = pl.program_id(1)

    @pl.when(k == 0)
    def _():
        acc_ref[...] = jnp.zeros_like(acc_ref)

    acc_ref[...] += jnp.dot(a_ref[...], h1p_ref[...], preferred_element_type=jnp.float32)

    @pl.when(k == pl.num_programs(1) - 1)
    def _():
        h = jnp.maximum(acc_ref[...], 0.0)
        # TODO(synk): dropout (training mode) not implemented; eval-mode identity.
        o_ref[...] = (
            jnp.dot(h, w2_ref[...], preferred_element_type=jnp.float32) + b2_ref[...]
        ).astype(o_ref.dtype)


def agg2_tiled_kernel(a_ref, h2p_ref, o_ref, acc_ref, *, num_class):
    """K-tiled:  acc += A[i,k] @ h2p[k];  on last k:  o = log_softmax(acc) (f32)."""
    k = pl.program_id(1)

    @pl.when(k == 0)
    def _():
        acc_ref[...] = jnp.zeros_like(acc_ref)

    acc_ref[...] += jnp.dot(a_ref[...], h2p_ref[...], preferred_element_type=jnp.float32)

    @pl.when(k == pl.num_programs(1) - 1)
    def _():
        z = acc_ref[...]
        col = jax.lax.broadcasted_iota(jnp.int32, z.shape, 1)
        z = jnp.where(col < num_class, z, _NEG)      # mask padded class lanes
        m = jnp.max(z, axis=1, keepdims=True)
        lse = jnp.log(jnp.sum(jnp.exp(z - m), axis=1, keepdims=True))
        o_ref[...] = (z - m) - lse


# ----------------------------------------------------------------------- plain-JAX glue

def build_normalized_adjacency(edge_index, num_nodes, n_pad):
    """Dense A_hat matching the module's message/aggregate with self-loops (bf16).

    A_hat[dst, src] = deg(src)^-1/2 * deg(dst)^-1/2 with degree over the source index
    (row) after adding self-loops; duplicate edges accumulate ('add' aggregation).
    """
    n = num_nodes
    self_loops = jnp.stack([jnp.arange(n), jnp.arange(n)], axis=0)
    ei = jnp.concatenate([edge_index, self_loops], axis=1)          # [2, E+N]
    row, col = ei[0], ei[1]                                         # src, dst
    deg = jnp.zeros((n,), jnp.float32).at[row].add(1.0)
    dis = deg ** -0.5
    norm = dis[row] * dis[col]
    a_hat = jnp.zeros((n_pad, n_pad), jnp.float32).at[col, row].add(norm)
    # TODO(synk): on v7x, A_hat could be stored as fp8 (e4m3) to halve its HBM traffic;
    # kept bf16 so the same code runs on v5e/v6e. Accumulation stays f32 in-kernel.
    return a_hat.astype(jnp.bfloat16)


def _pad_params(params, hidden_pad, class_pad):
    w1, b1, w2, b2 = params
    in_dim, hidden = w1.shape
    num_class = w2.shape[1]
    w1p = jnp.zeros((in_dim, hidden_pad), jnp.float32).at[:, :hidden].set(w1)
    b1p = jnp.zeros((1, hidden_pad), jnp.float32).at[:, :hidden].set(b1.reshape(1, -1))
    w2p = jnp.zeros((hidden_pad, class_pad), jnp.float32).at[:hidden, :num_class].set(w2)
    b2p = jnp.zeros((1, class_pad), jnp.float32).at[:, :num_class].set(b2.reshape(1, -1))
    return w1p, b1p, w2p, b2p


def gcn_forward(x, edge_index, params, *, force_tiled=False):
    n, in_dim = x.shape
    w1, _, w2, _ = params
    hidden = w1.shape[1]
    num_class = w2.shape[1]

    caps = _vmem_caps()
    HP = _round_up(max(hidden, 128), 128)      # lane-dense hidden width
    CP = _round_up(max(num_class, 128), 128)   # lane-dense class width
    w1p, b1p, w2p, b2p = _pad_params(params, HP, CP)

    # ---------------- small-graph fast path: single call, A resident ----------------
    n_fast = _round_up(n, 128)
    fast_bytes = (
        2 * n_fast * n_fast * 2          # A_hat (bf16), allow double buffering
        + 2 * n_fast * in_dim * 2        # x (bf16)
        + 2 * n_fast * CP * 4            # output (f32)
        + 4 * n_fast * HP * 4            # in-kernel f32 intermediates
        + (in_dim * HP + HP * CP + HP + CP) * 4
    )
    if (not force_tiled) and fast_bytes <= caps["fast_budget"]:
        a_hat = build_normalized_adjacency(edge_index, n, n_fast)
        x_pad = jnp.zeros((n_fast, in_dim), jnp.bfloat16).at[:n].set(x.astype(jnp.bfloat16))
        out = pl.pallas_call(
            functools.partial(fused_small_kernel, num_class=num_class),
            out_shape=jax.ShapeDtypeStruct((n_fast, CP), jnp.float32),
            grid=(1,),
            in_specs=[
                pl.BlockSpec((n_fast, in_dim), lambda i: (0, 0)),
                pl.BlockSpec((n_fast, n_fast), lambda i: (0, 0)),
                pl.BlockSpec((in_dim, HP), lambda i: (0, 0)),
                pl.BlockSpec((1, HP), lambda i: (0, 0)),
                pl.BlockSpec((HP, CP), lambda i: (0, 0)),
                pl.BlockSpec((1, CP), lambda i: (0, 0)),
            ],
            out_specs=pl.BlockSpec((n_fast, CP), lambda i: (0, 0)),
            compiler_params=_cparams(fast_bytes, caps, ("arbitrary",)),
        )(x_pad, a_hat, w1p, b1p, w2p, b2p)
        return out[:n, :num_class]

    # ------------- tiled path: K-tiled aggregation, VMEM independent of N -------------
    tm, tk, n_pad = _select_tiles(n, caps)
    grid = (n_pad // tm, n_pad // tk)

    a_hat = build_normalized_adjacency(edge_index, n, n_pad)
    x_bf = jnp.zeros((n_pad, in_dim), jnp.bfloat16).at[:n].set(x.astype(jnp.bfloat16))

    # pass 0 (hoisted projection) in plain JAX/XLA: tiny matmul, no extra kernel launch
    h1p = (jnp.dot(x_bf.astype(jnp.float32), w1p) + b1p).astype(jnp.bfloat16)

    a_tile_bytes = 2 * tm * tk * 2       # double-buffered bf16 A tile

    # ---- pass 1: h2p = relu(A @ h1p) @ W2 + b2  -> bf16 [n_pad, CP] ----
    ws1 = (a_tile_bytes + 2 * tk * HP * 2 + HP * CP * 4 + CP * 4
           + 2 * tm * CP * 2 + tm * HP * 4)
    h2p = pl.pallas_call(
        agg1_tiled_kernel,
        out_shape=jax.ShapeDtypeStruct((n_pad, CP), jnp.bfloat16),
        grid=grid,
        in_specs=[
            pl.BlockSpec((tm, tk), lambda i, k: (i, k)),     # streamed A tile
            pl.BlockSpec((tk, HP), lambda i, k: (k, 0)),     # streamed h1p K-slab
            pl.BlockSpec((HP, CP), lambda i, k: (0, 0)),
            pl.BlockSpec((1, CP), lambda i, k: (0, 0)),
        ],
        out_specs=pl.BlockSpec((tm, CP), lambda i, k: (i, 0)),
        scratch_shapes=[pltpu.VMEM((tm, HP), jnp.float32)],
        compiler_params=_cparams(ws1, caps, ("parallel", "arbitrary")),
    )(a_hat, h1p, w2p, b2p)

    # ---- pass 2: out = log_softmax(A @ h2p, axis=1)  -> f32 [n_pad, CP] ----
    ws2 = a_tile_bytes + 2 * tk * CP * 2 + 2 * tm * CP * 4 + tm * CP * 4
    out = pl.pallas_call(
        functools.partial(agg2_tiled_kernel, num_class=num_class),
        out_shape=jax.ShapeDtypeStruct((n_pad, CP), jnp.float32),
        grid=grid,
        in_specs=[
            pl.BlockSpec((tm, tk), lambda i, k: (i, k)),     # streamed A tile
            pl.BlockSpec((tk, CP), lambda i, k: (k, 0)),     # streamed h2p K-slab
        ],
        out_specs=pl.BlockSpec((tm, CP), lambda i, k: (i, 0)),
        scratch_shapes=[pltpu.VMEM((tm, CP), jnp.float32)],
        compiler_params=_cparams(ws2, caps, ("parallel", "arbitrary")),
    )(a_hat, h2p)

    # TODO(synk): for very large real graphs replace the dense A_hat with a CSR /
    # row-blocked sparse aggregation driven by PrefetchScalarGridSpec offsets.
    return out[:n, :num_class]


def init_params(key, in_dim, hidden, num_class):
    k1, k2, k3, k4 = jax.random.split(key, 4)
    # torch.nn.Linear(in, out): y = x @ W.T + b ; weights stored already transposed.
    w1 = jax.random.normal(k1, (in_dim, hidden), jnp.float32) * (1.0 / jnp.sqrt(in_dim))
    b1 = jax.random.normal(k2, (1, hidden), jnp.float32) * 0.01
    w2 = jax.random.normal(k3, (hidden, num_class), jnp.float32) * (1.0 / jnp.sqrt(hidden))
    b2 = jax.random.normal(k4, (1, num_class), jnp.float32) * 0.01
    return (w1, b1, w2, b2)


def gcn_reference(x, edge_index, params):
    """Plain-JAX f32 reference of the module's forward (eval mode)."""
    n = x.shape[0]
    w1, b1, w2, b2 = params
    self_loops = jnp.stack([jnp.arange(n), jnp.arange(n)], axis=0)
    ei = jnp.concatenate([edge_index, self_loops], axis=1)
    row, col = ei[0], ei[1]
    deg = jnp.zeros((n,), jnp.float32).at[row].add(1.0)
    dis = deg ** -0.5
    norm = dis[row] * dis[col]
    a = jnp.zeros((n, n), jnp.float32).at[col, row].add(norm)
    h = jnp.maximum(a @ (x @ w1 + b1), 0.0)
    z = a @ (h @ w2 + b2)
    return jax.nn.log_softmax(z, axis=1)


if __name__ == "__main__":
    key = jax.random.PRNGKey(0)
    N, IN_DIM, HIDDEN, NUM_CLASS, E = 512, 64, 16, 8, 2048

    kx, ke, kp = jax.random.split(key, 3)
    x = jax.random.normal(kx, (N, IN_DIM), jnp.float32)
    edge_index = jax.random.randint(ke, (2, E), 0, N, dtype=jnp.int32)
    params = init_params(kp, IN_DIM, HIDDEN, NUM_CLASS)

    out_fast = jax.block_until_ready(gcn_forward(x, edge_index, params))
    out_tiled = jax.block_until_ready(gcn_forward(x, edge_index, params, force_tiled=True))
    ref = jax.block_until_ready(gcn_reference(x, edge_index, params))

    assert out_fast.shape == (N, NUM_CLASS)
    assert out_tiled.shape == (N, NUM_CLASS)
    assert bool(jnp.all(jnp.isfinite(out_fast)))
    assert bool(jnp.all(jnp.isfinite(out_tiled)))
    assert float(jnp.max(jnp.abs(out_fast - out_tiled))) < 5e-2
    assert float(jnp.max(jnp.abs(out_fast - ref))) < 1e-1
    print("KERNEL_OK")
</pallas_src>

<mosaic_0001>
module attributes {stable_mosaic.version = 11 : i64} {
  func.func @fused_small_kernel(%arg0: i32, %arg1: memref<512x64xbf16, #tpu.memory_space<vmem>>, %arg2: memref<512x512xbf16, #tpu.memory_space<vmem>>, %arg3: memref<64x128xf32, #tpu.memory_space<vmem>>, %arg4: memref<1x128xf32, #tpu.memory_space<vmem>>, %arg5: memref<128x128xf32, #tpu.memory_space<vmem>>, %arg6: memref<1x128xf32, #tpu.memory_space<vmem>>, %arg7: memref<512x128xf32, #tpu.memory_space<vmem>>) attributes {dimension_semantics = [#tpu.dimension_semantics<arbitrary>], iteration_bounds = array<i64: 1>, scalar_prefetch = 0 : i64, scratch_operands = 0 : i64, tpu.core_type = #tpu.core_type<tc>, window_params = [{pipeline_mode = #tpu.pipeline_mode<synchronous>, transform_indices = @transform_0, window_bounds = array<i64: 512, 64>}, {pipeline_mode = #tpu.pipeline_mode<synchronous>, transform_indices = @transform_1, window_bounds = array<i64: 512, 512>}, {pipeline_mode = #tpu.pipeline_mode<synchronous>, transform_indices = @transform_2, window_bounds = array<i64: 64, 128>}, {pipeline_mode = #tpu.pipeline_mode<synchronous>, transform_indices = @transform_3, window_bounds = array<i64: 1, 128>}, {pipeline_mode = #tpu.pipeline_mode<synchronous>, transform_indices = @transform_4, window_bounds = array<i64: 128, 128>}, {pipeline_mode = #tpu.pipeline_mode<synchronous>, transform_indices = @transform_5, window_bounds = array<i64: 1, 128>}, {pipeline_mode = #tpu.pipeline_mode<synchronous>, transform_indices = @transform_6, window_bounds = array<i64: 512, 128>}]} {
    %c0 = arith.constant 0 : index
    %c0_0 = arith.constant 0 : index
    %0 = vector.load %arg1[%c0, %c0_0] : memref<512x64xbf16, #tpu.memory_space<vmem>>, vector<512x64xbf16>
    %1 = arith.extf %0 : vector<512x64xbf16> to vector<512x64xf32>
    %c0_1 = arith.constant 0 : index
    %c0_2 = arith.constant 0 : index
    %2 = vector.load %arg3[%c0_1, %c0_2] : memref<64x128xf32, #tpu.memory_space<vmem>>, vector<64x128xf32>
    %cst = arith.constant dense<0.000000e+00> : vector<512x128xf32>
    %3 = tpu.matmul %1, %2, %cst {dimension_numbers = #tpu.dot_dimension_numbers<[1], [0], [0], [1], [0, 0, 1, 1], [], []>} : vector<512x64xf32>, vector<64x128xf32>, vector<512x128xf32> -> vector<512x128xf32>
    %c0_3 = arith.constant 0 : index
    %c0_4 = arith.constant 0 : index
    %4 = vector.load %arg4[%c0_3, %c0_4] : memref<1x128xf32, #tpu.memory_space<vmem>>, vector<1x128xf32>
    %5 = vector.broadcast %4 : vector<1x128xf32> to vector<512x128xf32>
    %6 = arith.addf %3, %5 : vector<512x128xf32>
    %c0_5 = arith.constant 0 : index
    %c0_6 = arith.constant 0 : index
    %7 = vector.load %arg2[%c0_5, %c0_6] : memref<512x512xbf16, #tpu.memory_space<vmem>>, vector<512x512xbf16>
    %8 = arith.truncf %6 : vector<512x128xf32> to vector<512x128xbf16>
    %cst_7 = arith.constant dense<0.000000e+00> : vector<512x128xf32>
    %9 = tpu.matmul %7, %8, %cst_7 {dimension_numbers = #tpu.dot_dimension_numbers<[1], [0], [0], [1], [0, 0, 1, 1], [], []>} : vector<512x512xbf16>, vector<512x128xbf16>, vector<512x128xf32> -> vector<512x128xf32>
    %cst_8 = arith.constant 0.000000e+00 : f32
    %10 = vector.broadcast %cst_8 : f32 to vector<512x128xf32>
    %11 = arith.maximumf %9, %10 : vector<512x128xf32>
    %c0_9 = arith.constant 0 : index
    %c0_10 = arith.constant 0 : index
    %12 = vector.load %arg5[%c0_9, %c0_10] : memref<128x128xf32, #tpu.memory_space<vmem>>, vector<128x128xf32>
    %cst_11 = arith.constant dense<0.000000e+00> : vector<512x128xf32>
    %13 = tpu.matmul %11, %12, %cst_11 {dimension_numbers = #tpu.dot_dimension_numbers<[1], [0], [0], [1], [0, 0, 1, 1], [], []>} : vector<512x128xf32>, vector<128x128xf32>, vector<512x128xf32> -> vector<512x128xf32>
    %c0_12 = arith.constant 0 : index
    %c0_13 = arith.constant 0 : index
    %14 = vector.load %arg6[%c0_12, %c0_13] : memref<1x128xf32, #tpu.memory_space<vmem>>, vector<1x128xf32>
    %15 = vector.broadcast %14 : vector<1x128xf32> to vector<512x128xf32>
    %16 = arith.addf %13, %15 : vector<512x128xf32>
    %c0_14 = arith.constant 0 : index
    %c0_15 = arith.constant 0 : index
    %17 = vector.load %arg2[%c0_14, %c0_15] : memref<512x512xbf16, #tpu.memory_space<vmem>>, vector<512x512xbf16>
    %18 = arith.truncf %16 : vector<512x128xf32> to vector<512x128xbf16>
    %cst_16 = arith.constant dense<0.000000e+00> : vector<512x128xf32>
    %19 = tpu.matmul %17, %18, %cst_16 {dimension_numbers = #tpu.dot_dimension_numbers<[1], [0], [0], [1], [0, 0, 1, 1], [], []>} : vector<512x512xbf16>, vector<512x128xbf16>, vector<512x128xf32> -> vector<512x128xf32>
    %20 = tpu.iota {dimensions = array<i32: 1>} : vector<512x128xi32>
    %c8_i32 = arith.constant 8 : i32
    %21 = vector.broadcast %c8_i32 : i32 to vector<512x128xi32>
    %22 = arith.cmpi slt, %20, %21 : vector<512x128xi32>
    %cst_17 = arith.constant -1.000000e+30 : f32
    %23 = vector.broadcast %cst_17 : f32 to vector<512x128xf32>
    %24 = arith.select %22, %19, %23 : vector<512x128xi1>, vector<512x128xf32>
    %cst_18 = arith.constant dense<0xFF800000> : vector<512xf32>
    %25 = vector.multi_reduction <maximumf>, %24, %cst_18 [1] : vector<512x128xf32> to vector<512xf32>
    %26 = vector.shape_cast %25 : vector<512xf32> to vector<512x1xf32>
    %27 = vector.broadcast %26 : vector<512x1xf32> to vector<512x128xf32>
    %28 = arith.subf %24, %27 : vector<512x128xf32>
    %29 = math.exp %28 : vector<512x128xf32>
    %cst_19 = arith.constant dense<0.000000e+00> : vector<512xf32>
    %30 = vector.multi_reduction <add>, %29, %cst_19 [1] : vector<512x128xf32> to vector<512xf32>
    %31 = vector.shape_cast %30 : vector<512xf32> to vector<512x1xf32>
    %32 = math.log %31 : vector<512x1xf32>
    %33 = vector.broadcast %26 : vector<512x1xf32> to vector<512x128xf32>
    %34 = arith.subf %24, %33 : vector<512x128xf32>
    %35 = vector.broadcast %32 : vector<512x1xf32> to vector<512x128xf32>
    %36 = arith.subf %34, %35 : vector<512x128xf32>
    %c0_20 = arith.constant 0 : index
    %c0_21 = arith.constant 0 : index
    %37 = vector.load %arg7[%c0_20, %c0_21] : memref<512x128xf32, #tpu.memory_space<vmem>>, vector<512x128xf32>
    tpu.vector_store %arg7[%c0_20, %c0_21], %36 {strides = array<i32>} : memref<512x128xf32, #tpu.memory_space<vmem>>, vector<512x128xf32>,
    return
  }
  func.func @transform_0(%arg0: i32) -> (i32, i32) {
    %c0_i32 = arith.constant 0 : i32
    %c0_i32_0 = arith.constant 0 : i32
    %c0_i32_1 = arith.constant 0 : i32
    return %c0_i32, %c0_i32_0 : i32, i32
  }
  func.func @transform_1(%arg0: i32) -> (i32, i32) {
    %c0_i32 = arith.constant 0 : i32
    %c0_i32_0 = arith.constant 0 : i32
    %c0_i32_1 = arith.constant 0 : i32
    return %c0_i32, %c0_i32_0 : i32, i32
  }
  func.func @transform_2(%arg0: i32) -> (i32, i32) {
    %c0_i32 = arith.constant 0 : i32
    %c0_i32_0 = arith.constant 0 : i32
    %c0_i32_1 = arith.constant 0 : i32
    return %c0_i32, %c0_i32_0 : i32, i32
  }
  func.func @transform_3(%arg0: i32) -> (i32, i32) {
    %c0_i32 = arith.constant 0 : i32
    %c0_i32_0 = arith.constant 0 : i32
    %c0_i32_1 = arith.constant 0 : i32
    return %c0_i32, %c0_i32_0 : i32, i32
  }
  func.func @transform_4(%arg0: i32) -> (i32, i32) {
    %c0_i32 = arith.constant 0 : i32
    %c0_i32_0 = arith.constant 0 : i32
    %c0_i32_1 = arith.constant 0 : i32
    return %c0_i32, %c0_i32_0 : i32, i32
  }
  func.func @transform_5(%arg0: i32) -> (i32, i32) {
    %c0_i32 = arith.constant 0 : i32
    %c0_i32_0 = arith.constant 0 : i32
    %c0_i32_1 = arith.constant 0 : i32
    return %c0_i32, %c0_i32_0 : i32, i32
  }
  func.func @transform_6(%arg0: i32) -> (i32, i32) {
    %c0_i32 = arith.constant 0 : i32
    %c0_i32_0 = arith.constant 0 : i32
    %c0_i32_1 = arith.constant 0 : i32
    return %c0_i32, %c0_i32_0 : i32, i32
  }
}

</mosaic_0001>

<llo_original>
// kernel: tpu_custom_call.1
$region0: #{tpu_custom_call.1}
  #allocation0 [shape = 'u32[]', space=smem, size = 0x4, offset = 0x4, fixed_abs, tag = 'smem constant byte address 0x4 - core index']
  #allocation1 [shape = 'u32[72,128]{1,0:T(1,128)}', space=vmem, size = 0x9000, scoped, tag = 'internal scratch']
  %s0 = inlined_call_operand.vmem [shape: bf16[512,64], index: 0, kind: input, shape index: {}]
  %s1 = inlined_call_operand.hbm [shape: bf16[512,512], index: 1, kind: input, shape index: {}]
  %s2 = inlined_call_operand.vmem [shape: f32[64,128], index: 2, kind: input, shape index: {}]
  %s3 = inlined_call_operand.vmem [shape: f32[1,128], index: 3, kind: input, shape index: {}]
  %s4 = inlined_call_operand.vmem [shape: f32[128,128], index: 4, kind: input, shape index: {}]
  %s5 = inlined_call_operand.vmem [shape: f32[1,128], index: 5, kind: input, shape index: {}]
  %s6 = inlined_call_operand.hbm [shape: f32[512,128], index: 6, kind: output, shape index: {}]
  %s7 = sld [smem:[#allocation0]]
  $region38: #{tpu_custom_call.1} parent=0
    _
  %s9 = ssub.s32 1, %s7
  %s10 = scalar_select 0, %s9, %s7
  $region1: #{tpu_custom_call.1} parent=0
    #allocation2 [shape = 'u8[524288]{0}', space=vmem, size = 0x80000, scoped, tag = 'input window, operand 1, single buffered']
    #allocation3 [shape = 's32[1]{0}', space=sflag, size = 0x4, scoped, tag = 'scoped memory for tpu_custom_call.1']
    #allocation4 [shape = 's32[1]{0}', space=sflag, size = 0x4, scoped, tag = 'scoped memory for tpu_custom_call.1']
    #allocation5 [shape = 'u8[262144]{0}', space=vmem, size = 0x40000, scoped, tag = 'output window, operand 0, single buffered']
    %11 = vsyncpa [#allocation3], 0
    %12 = vsyncpa [#allocation4], 0
    // Predicated region
    $region2: #{tpu_custom_call.1} parent=1 // pred_check
      _
    $region3: #{tpu_custom_call.1} parent=1 // pred_check_branch
      %14 = sbr.rel (0) target = $region5
    $region4: #{tpu_custom_call.1} parent=1 // pred_region
      _
    $region5: #{tpu_custom_call.1} parent=1 // pred_fallthru
      _
    // Predicated region
    $region6: #{tpu_custom_call.1} parent=1 // pred_check
      _
    $region7: #{tpu_custom_call.1} parent=1 // pred_check_branch
      %16 = sbr.rel (0) target = $region9
    $region8: #{tpu_custom_call.1} parent=1 // pred_region
      %18 = vsyncadd [#allocation3], 0
      %s19 = sshll.u32 %s1, 4
      %s20 = int_to_ptr.hbm [resolvable:$true] %s19
      %s21 = sshll.u32 [#allocation2], 4
      %s22 = int_to_ptr.vmem [resolvable:$true] %s21
      %27 = dma.hbm_to_vmem [thread:$0]  %s20, 16384, %s22, [#allocation3], 256, 256, 16
    $region9: #{tpu_custom_call.1} parent=1 // pred_fallthru
      _
    // Predicated region
    $region10: #{tpu_custom_call.1} parent=1 // pred_check
      _
    $region11: #{tpu_custom_call.1} parent=1 // pred_check_branch
      %29 = sbr.rel (0) target = $region13
    $region12: #{tpu_custom_call.1} parent=1 // pred_region
      _
    $region13: #{tpu_custom_call.1} parent=1 // pred_fallthru
      _
    // Predicated region
    $region14: #{tpu_custom_call.1} parent=1 // pred_check
      _
    $region15: #{tpu_custom_call.1} parent=1 // pred_check_branch
      %31 = sbr.rel (0) target = $region17
    $region16: #{tpu_custom_call.1} parent=1 // pred_region
      _
    $region17: #{tpu_custom_call.1} parent=1 // pred_fallthru
      _
    // Predicated region
    $region18: #{tpu_custom_call.1} parent=1 // pred_check
      _
    $region19: #{tpu_custom_call.1} parent=1 // pred_check_branch
      %33 = sbr.rel (0) target = $region21
    $region20: #{tpu_custom_call.1} parent=1 // pred_region
      _
    $region21: #{tpu_custom_call.1} parent=1 // pred_fallthru
      _
    // Predicated region
    $region22: #{tpu_custom_call.1} parent=1 // pred_check
      _
    $region23: #{tpu_custom_call.1} parent=1 // pred_check_branch
      %35 = sbr.rel (0) target = $region25
    $region24: #{tpu_custom_call.1} parent=1 // pred_region
      _
    $region25: #{tpu_custom_call.1} parent=1 // pred_fallthru
      _
    // Predicated region
    $region26: #{tpu_custom_call.1} parent=1 // pred_check
      _
    $region27: #{tpu_custom_call.1} parent=1 // pred_check_branch
      %37 = sbr.rel (0) target = $region29
    $region28: #{tpu_custom_call.1} parent=1 // pred_region
      %39 = dma.done [#allocation3], 16384
    $region29: #{tpu_custom_call.1} parent=1 // pred_fallthru
      _
    %v40 = vld [vmem:[%s0] sm:$0xf]
    %v41 = vld [vmem:[%s0 + $0x4] sm:$0xf]
    %v42 = vld [vmem:[%s0 + $0x8] sm:$0xf]
    %v43 = vld [vmem:[%s0 + $0xc] sm:$0xf]
    %v44 = vld [vmem:[%s0 + $0x10] sm:$0xf]
    %v45 = vld [vmem:[%s0 + $0x14] sm:$0xf]
    %v46 = vld [vmem:[%s0 + $0x18] sm:$0xf]
    %v47 = vld [vmem:[%s0 + $0x1c] sm:$0xf]
    %v48 = vld [vmem:[%s0 + $0x20] sm:$0xf]
    %v49 = vld [vmem:[%s0 + $0x24] sm:$0xf]
    %v50 = vld [vmem:[%s0 + $0x28] sm:$0xf]
    %v51 = vld [vmem:[%s0 + $0x2c] sm:$0xf]
    %v52 = vld [vmem:[%s0 + $0x30] sm:$0xf]
    %v53 = vld [vmem:[%s0 + $0x34] sm:$0xf]
    %v54 = vld [vmem:[%s0 + $0x38] sm:$0xf]
    %v55 = vld [vmem:[%s0 + $0x3c] sm:$0xf]
    %v56 = vld [vmem:[%s0 + $0x40] sm:$0xf]
    %v57 = vld [vmem:[%s0 + $0x44] sm:$0xf]
    %v58 = vld [vmem:[%s0 + $0x48] sm:$0xf]
    %v59 = vld [vmem:[%s0 + $0x4c] sm:$0xf]
    %v60 = vld [vmem:[%s0 + $0x50] sm:$0xf]
    %v61 = vld [vmem:[%s0 + $0x54] sm:$0xf]
    %v62 = vld [vmem:[%s0 + $0x58] sm:$0xf]
    %v63 = vld [vmem:[%s0 + $0x5c] sm:$0xf]
    %v64 = vld [vmem:[%s0 + $0x60] sm:$0xf]
    %v65 = vld [vmem:[%s0 + $0x64] sm:$0xf]
    %v66 = vld [vmem:[%s0 + $0x68] sm:$0xf]
    %v67 = vld [vmem:[%s0 + $0x6c] sm:$0xf]
    %v68 = vld [vmem:[%s0 + $0x70] sm:$0xf]
    %v69 = vld [vmem:[%s0 + $0x74] sm:$0xf]
    %v70 = vld [vmem:[%s0 + $0x78] sm:$0xf]
    %v71 = vld [vmem:[%s0 + $0x7c] sm:$0xf]
    %v72 = vld [vmem:[%s0 + $0x80] sm:$0xf]
    %v73 = vld [vmem:[%s0 + $0x84] sm:$0xf]
    %v74 = vld [vmem:[%s0 + $0x88] sm:$0xf]
    %v75 = vld [vmem:[%s0 + $0x8c] sm:$0xf]
    %v76 = vld [vmem:[%s0 + $0x90] sm:$0xf]
    %v77 = vld [vmem:[%s0 + $0x94] sm:$0xf]
    %v78 = vld [vmem:[%s0 + $0x98] sm:$0xf]
    %v79 = vld [vmem:[%s0 + $0x9c] sm:$0xf]
    %v80 = vld [vmem:[%s0 + $0xa0] sm:$0xf]
    %v81 = vld [vmem:[%s0 + $0xa4] sm:$0xf]
    %v82 = vld [vmem:[%s0 + $0xa8] sm:$0xf]
    %v83 = vld [vmem:[%s0 + $0xac] sm:$0xf]
    %v84 = vld [vmem:[%s0 + $0xb0] sm:$0xf]
    %v85 = vld [vmem:[%s0 + $0xb4] sm:$0xf]
    %v86 = vld [vmem:[%s0 + $0xb8] sm:$0xf]
    %v87 = vld [vmem:[%s0 + $0xbc] sm:$0xf]
    %v88 = vld [vmem:[%s0 + $0xc0] sm:$0xf]
    %v89 = vld [vmem:[%s0 + $0xc4] sm:$0xf]
    %v90 = vld [vmem:[%s0 + $0xc8] sm:$0xf]
    %v91 = vld [vmem:[%s0 + $0xcc] sm:$0xf]
    %v92 = vld [vmem:[%s0 + $0xd0] sm:$0xf]
    %v93 = vld [vmem:[%s0 + $0xd4] sm:$0xf]
    %v94 = vld [vmem:[%s0 + $0xd8] sm:$0xf]
    %v95 = vld [vmem:[%s0 + $0xdc] sm:$0xf]
    %v96 = vld [vmem:[%s0 + $0xe0] sm:$0xf]
    %v97 = vld [vmem:[%s0 + $0xe4] sm:$0xf]
    %v98 = vld [vmem:[%s0 + $0xe8] sm:$0xf]
    %v99 = vld [vmem:[%s0 + $0xec] sm:$0xf]
    %v100 = vld [vmem:[%s0 + $0xf0] sm:$0xf]
    %v101 = vld [vmem:[%s0 + $0xf4] sm:$0xf]
    %v102 = vld [vmem:[%s0 + $0xf8] sm:$0xf]
    %v103 = vld [vmem:[%s0 + $0xfc] sm:$0xf]
    %v104 = vunpack.c.l.bf16 %v40
    %v105 = vunpack.c.l.bf16 %v41
    %v106 = vunpack.c.l.bf16 %v42
    %v107 = vunpack.c.l.bf16 %v43
    %v108 = vunpack.c.l.bf16 %v44
    %v109 = vunpack.c.l.bf16 %v45
    %v110 = vunpack.c.l.bf16 %v46
    %v111 = vunpack.c.l.bf16 %v47
    %v112 = vunpack.c.l.bf16 %v48
    %v113 = vunpack.c.l.bf16 %v49
    %v114 = vunpack.c.l.bf16 %v50
    %v115 = vunpack.c.l.bf16 %v51
    %v116 = vunpack.c.l.bf16 %v52
    %v117 = vunpack.c.l.bf16 %v53
    %v118 = vunpack.c.l.bf16 %v54
    %v119 = vunpack.c.l.bf16 %v55
    %v120 = vunpack.c.l.bf16 %v56
    %v121 = vunpack.c.l.bf16 %v57
    %v122 = vunpack.c.l.bf16 %v58
    %v123 = vunpack.c.l.bf16 %v59
    %v124 = vunpack.c.l.bf16 %v60
    %v125 = vunpack.c.l.bf16 %v61
    %v126 = vunpack.c.l.bf16 %v62
    %v127 = vunpack.c.l.bf16 %v63
    %v128 = vunpack.c.l.bf16 %v64
    %v129 = vunpack.c.l.bf16 %v65
    %v130 = vunpack.c.l.bf16 %v66
    %v131 = vunpack.c.l.bf16 %v67
    %v132 = vunpack.c.l.bf16 %v68
    %v133 = vunpack.c.l.bf16 %v69
    %v134 = vunpack.c.l.bf16 %v70
    %v135 = vunpack.c.l.bf16 %v71
    %v136 = vunpack.c.l.bf16 %v72
    %v137 = vunpack.c.l.bf16 %v73
    %v138 = vunpack.c.l.bf16 %v74
    %v139 = vunpack.c.l.bf16 %v75
    %v140 = vunpack.c.l.bf16 %v76
    %v141 = vunpack.c.l.bf16 %v77
    %v142 = vunpack.c.l.bf16 %v78
    %v143 = vunpack.c.l.bf16 %v79
    %v144 = vunpack.c.l.bf16 %v80
    %v145 = vunpack.c.l.bf16 %v81
    %v146 = vunpack.c.l.bf16 %v82
    %v147 = vunpack.c.l.bf16 %v83
    %v148 = vunpack.c.l.bf16 %v84
    %v149 = vunpack.c.l.bf16 %v85
    %v150 = vunpack.c.l.bf16 %v86
    %v151 = vunpack.c.l.bf16 %v87
    %v152 = vunpack.c.l.bf16 %v88
    %v153 = vunpack.c.l.bf16 %v89
    %v154 = vunpack.c.l.bf16 %v90
    %v155 = vunpack.c.l.bf16 %v91
    %v156 = vunpack.c.l.bf16 %v92
    %v157 = vunpack.c.l.bf16 %v93
    %v158 = vunpack.c.l.bf16 %v94
    %v159 = vunpack.c.l.bf16 %v95
    %v160 = vunpack.c.l.bf16 %v96
    %v161 = vunpack.c.l.bf16 %v97
    %v162 = vunpack.c.l.bf16 %v98
    %v163 = vunpack.c.l.bf16 %v99
    %v164 = vunpack.c.l.bf16 %v100
    %v165 = vunpack.c.l.bf16 %v101
    %v166 = vunpack.c.l.bf16 %v102
    %v167 = vunpack.c.l.bf16 %v103
    %v168 = vld [vmem:[%s2] sm:$0xff]
    %v169 = vld [vmem:[%s2 + $0x8] sm:$0xff]
    %v170 = vld [vmem:[%s2 + $0x10] sm:$0xff]
    %v171 = vld [vmem:[%s2 + $0x18] sm:$0xff]
    %v172 = vld [vmem:[%s2 + $0x20] sm:$0xff]
    %v173 = vld [vmem:[%s2 + $0x28] sm:$0xff]
    %v174 = vld [vmem:[%s2 + $0x30] sm:$0xff]
    %v175 = vld [vmem:[%s2 + $0x38] sm:$0xff]
    %v176 = vld [vmem:[%s3] sm:$0x1]
    %v178 = vperm.slane %v176, 0
    %vm180 = vcmask 523264
    %v182 = vsel %vm180, %v104, 0
    %v185 = vsel %vm180, %v105, 0
    %v188 = vsel %vm180, %v106, 0
    %v191 = vsel %vm180, %v107, 0
    %v194 = vsel %vm180, %v108, 0
    %v197 = vsel %vm180, %v109, 0
    %v200 = vsel %vm180, %v110, 0
    %v203 = vsel %vm180, %v111, 0
    %v206 = vsel %vm180, %v112, 0
    %v209 = vsel %vm180, %v113, 0
    %v212 = vsel %vm180, %v114, 0
    %v215 = vsel %vm180, %v115, 0
    %v218 = vsel %vm180, %v116, 0
    %v221 = vsel %vm180, %v117, 0
    %v224 = vsel %vm180, %v118, 0
    %v227 = vsel %vm180, %v119, 0
    %v230 = vsel %vm180, %v120, 0
    %v233 = vsel %vm180, %v121, 0
    %v236 = vsel %vm180, %v122, 0
    %v239 = vsel %vm180, %v123, 0
    %v242 = vsel %vm180, %v124, 0
    %v245 = vsel %vm180, %v125, 0
    %v248 = vsel %vm180, %v126, 0
    %v251 = vsel %vm180, %v127, 0
    %v254 = vsel %vm180, %v128, 0
    %v257 = vsel %vm180, %v129, 0
    %v260 = vsel %vm180, %v130, 0
    %v263 = vsel %vm180, %v131, 0
    %v266 = vsel %vm180, %v132, 0
    %v269 = vsel %vm180, %v133, 0
    %v272 = vsel %vm180, %v134, 0
    %v275 = vsel %vm180, %v135, 0
    %v278 = vsel %vm180, %v136, 0
    %v281 = vsel %vm180, %v137, 0
    %v284 = vsel %vm180, %v138, 0
    %v287 = vsel %vm180, %v139, 0
    %v290 = vsel %vm180, %v140, 0
    %v293 = vsel %vm180, %v141, 0
    %v296 = vsel %vm180, %v142, 0
    %v299 = vsel %vm180, %v143, 0
    %v302 = vsel %vm180, %v144, 0
    %v305 = vsel %vm180, %v145, 0
    %v308 = vsel %vm180, %v146, 0
    %v311 = vsel %vm180, %v147, 0
    %v314 = vsel %vm180, %v148, 0
    %v317 = vsel %vm180, %v149, 0
    %v320 = vsel %vm180, %v150, 0
    %v323 = vsel %vm180, %v151, 0
    %v326 = vsel %vm180, %v152, 0
    %v329 = vsel %vm180, %v153, 0
    %v332 = vsel %vm180, %v154, 0
    %v335 = vsel %vm180, %v155, 0
    %v338 = vsel %vm180, %v156, 0
    %v341 = vsel %vm180, %v157, 0
    %v344 = vsel %vm180, %v158, 0
    %v347 = vsel %vm180, %v159, 0
    %v350 = vsel %vm180, %v160, 0
    %v353 = vsel %vm180, %v161, 0
    %v356 = vsel %vm180, %v162, 0
    %v359 = vsel %vm180, %v163, 0
    %v362 = vsel %vm180, %v164, 0
    %v365 = vsel %vm180, %v165, 0
    %v368 = vsel %vm180, %v166, 0
    %v371 = vsel %vm180, %v167, 0
    %373 = vmatpush.msra.mxu0 0.0
    %374 = vmatpush.msra.mxu0 0.0
    %375 = vmatpush.msra.mxu0 0.0
    %376 = vmatpush.msra.mxu0 0.0
    %377 = vmatpush.msra.mxu0 0.0
    %378 = vmatpush.msra.mxu0 0.0
    %379 = vmatpush.msra.mxu0 0.0
    %380 = vmatpush.msra.mxu0 0.0
    %381 = vmatpush.msra.mxu0 %v175
    %382 = vmatpush.msra.mxu0 %v174
    %383 = vmatpush.msra.mxu0 %v173
    %384 = vmatpush.msra.mxu0 %v172
    %385 = vmatpush.msra.mxu0 %v171
    %386 = vmatpush.msra.mxu0 %v170
    %387 = vmatpush.msra.mxu0 %v169
    %388 = vmatpush.msra.mxu0 %v168
    %389 = vmatmul.f32.gmra.mxu0 %v182
    %v390 = vpop.f32.mrf.mxu0
    %v391 = vadd.f32 %v178, %v390
    %392 = vmatmul.f32.gmra.mxu0 %v185
    %v393 = vpop.f32.mrf.mxu0
    %v394 = vadd.f32 %v178, %v393
    %395 = vmatmul.f32.gmra.mxu0 %v188
    %v396 = vpop.f32.mrf.mxu0
    %v397 = vadd.f32 %v178, %v396
    %398 = vmatmul.f32.gmra.mxu0 %v191
    %v399 = vpop.f32.mrf.mxu0
    %v400 = vadd.f32 %v178, %v399
    %401 = vmatmul.f32.gmra.mxu0 %v194
    %v402 = vpop.f32.mrf.mxu0
    %v403 = vadd.f32 %v178, %v402
    %404 = vmatmul.f32.gmra.mxu0 %v197
    %v405 = vpop.f32.mrf.mxu0
    %v406 = vadd.f32 %v178, %v405
    %407 = vmatmul.f32.gmra.mxu0 %v200
    %v408 = vpop.f32.mrf.mxu0
    %v409 = vadd.f32 %v178, %v408
    %410 = vmatmul.f32.gmra.mxu0 %v203
    %v411 = vpop.f32.mrf.mxu0
    %v412 = vadd.f32 %v178, %v411
    %413 = vmatmul.f32.gmra.mxu0 %v206
    %v414 = vpop.f32.mrf.mxu0
    %v415 = vadd.f32 %v178, %v414
    %416 = vmatmul.f32.gmra.mxu0 %v209
    %v417 = vpop.f32.mrf.mxu0
    %v418 = vadd.f32 %v178, %v417
    %419 = vmatmul.f32.gmra.mxu0 %v212
    %v420 = vpop.f32.mrf.mxu0
    %v421 = vadd.f32 %v178, %v420
    %422 = vmatmul.f32.gmra.mxu0 %v215
    %v423 = vpop.f32.mrf.mxu0
    %v424 = vadd.f32 %v178, %v423
    %425 = vmatmul.f32.gmra.mxu0 %v218
    %v426 = vpop.f32.mrf.mxu0
    %v427 = vadd.f32 %v178, %v426
    %428 = vmatmul.f32.gmra.mxu0 %v221
    %v429 = vpop.f32.mrf.mxu0
    %v430 = vadd.f32 %v178, %v429
    %431 = vmatmul.f32.gmra.mxu0 %v224
    %v432 = vpop.f32.mrf.mxu0
    %v433 = vadd.f32 %v178, %v432
    %434 = vmatmul.f32.gmra.mxu0 %v227
    %v435 = vpop.f32.mrf.mxu0
    %v436 = vadd.f32 %v178, %v435
    %437 = vmatmul.f32.gmra.mxu0 %v230
    %v438 = vpop.f32.mrf.mxu0
    %v439 = vadd.f32 %v178, %v438
    %440 = vmatmul.f32.gmra.mxu0 %v233
    %v441 = vpop.f32.mrf.mxu0
    %v442 = vadd.f32 %v178, %v441
    %443 = vmatmul.f32.gmra.mxu0 %v236
    %v444 = vpop.f32.mrf.mxu0
    %v445 = vadd.f32 %v178, %v444
    %446 = vmatmul.f32.gmra.mxu0 %v239
    %v447 = vpop.f32.mrf.mxu0
    %v448 = vadd.f32 %v178, %v447
    %449 = vmatmul.f32.gmra.mxu0 %v242
    %v450 = vpop.f32.mrf.mxu0
    %v451 = vadd.f32 %v178, %v450
    %452 = vmatmul.f32.gmra.mxu0 %v245
    %v453 = vpop.f32.mrf.mxu0
    %v454 = vadd.f32 %v178, %v453
    %455 = vmatmul.f32.gmra.mxu0 %v248
    %v456 = vpop.f32.mrf.mxu0
    %v457 = vadd.f32 %v178, %v456
    %458 = vmatmul.f32.gmra.mxu0 %v251
    %v459 = vpop.f32.mrf.mxu0
    %v460 = vadd.f32 %v178, %v459
    %461 = vmatmul.f32.gmra.mxu0 %v254
    %v462 = vpop.f32.mrf.mxu0
    %v463 = vadd.f32 %v178, %v462
    %464 = vmatmul.f32.gmra.mxu0 %v257
    %v465 = vpop.f32.mrf.mxu0
    %v466 = vadd.f32 %v178, %v465
    %467 = vmatmul.f32.gmra.mxu0 %v260
    %v468 = vpop.f32.mrf.mxu0
    %v469 = vadd.f32 %v178, %v468
    %470 = vmatmul.f32.gmra.mxu0 %v263
    %v471 = vpop.f32.mrf.mxu0
    %v472 = vadd.f32 %v178, %v471
    %473 = vmatmul.f32.gmra.mxu0 %v266
    %v474 = vpop.f32.mrf.mxu0
    %v475 = vadd.f32 %v178, %v474
    %476 = vmatmul.f32.gmra.mxu0 %v269
    %v477 = vpop.f32.mrf.mxu0
    %v478 = vadd.f32 %v178, %v477
    %479 = vmatmul.f32.gmra.mxu0 %v272
    %v480 = vpop.f32.mrf.mxu0
    %v481 = vadd.f32 %v178, %v480
    %482 = vmatmul.f32.gmra.mxu0 %v275
    %v483 = vpop.f32.mrf.mxu0
    %v484 = vadd.f32 %v178, %v483
    %485 = vmatmul.f32.gmra.mxu0 %v278
    %v486 = vpop.f32.mrf.mxu0
    %v487 = vadd.f32 %v178, %v486
    %488 = vmatmul.f32.gmra.mxu0 %v281
    %v489 = vpop.f32.mrf.mxu0
    %v490 = vadd.f32 %v178, %v489
    %491 = vmatmul.f32.gmra.mxu0 %v284
    %v492 = vpop.f32.mrf.mxu0
    %v493 = vadd.f32 %v178, %v492
    %494 = vmatmul.f32.gmra.mxu0 %v287
    %v495 = vpop.f32.mrf.mxu0
    %v496 = vadd.f32 %v178, %v495
    %497 = vmatmul.f32.gmra.mxu0 %v290
    %v498 = vpop.f32.mrf.mxu0
    %v499 = vadd.f32 %v178, %v498
    %500 = vmatmul.f32.gmra.mxu0 %v293
    %v501 = vpop.f32.mrf.mxu0
    %v502 = vadd.f32 %v178, %v501
    %503 = vmatmul.f32.gmra.mxu0 %v296
    %v504 = vpop.f32.mrf.mxu0
    %v505 = vadd.f32 %v178, %v504
    %506 = vmatmul.f32.gmra.mxu0 %v299
    %v507 = vpop.f32.mrf.mxu0
    %v508 = vadd.f32 %v178, %v507
    %509 = vmatmul.f32.gmra.mxu0 %v302
    %v510 = vpop.f32.mrf.mxu0
    %v511 = vadd.f32 %v178, %v510
    %512 = vmatmul.f32.gmra.mxu0 %v305
    %v513 = vpop.f32.mrf.mxu0
    %v514 = vadd.f32 %v178, %v513
    %515 = vmatmul.f32.gmra.mxu0 %v308
    %v516 = vpop.f32.mrf.mxu0
    %v517 = vadd.f32 %v178, %v516
    %518 = vmatmul.f32.gmra.mxu0 %v311
    %v519 = vpop.f32.mrf.mxu0
    %v520 = vadd.f32 %v178, %v519
    %521 = vmatmul.f32.gmra.mxu0 %v314
    %v522 = vpop.f32.mrf.mxu0
    %v523 = vadd.f32 %v178, %v522
    %524 = vmatmul.f32.gmra.mxu0 %v317
    %v525 = vpop.f32.mrf.mxu0
    %v526 = vadd.f32 %v178, %v525
    %527 = vmatmul.f32.gmra.mxu0 %v320
    %v528 = vpop.f32.mrf.mxu0
    %v529 = vadd.f32 %v178, %v528
    %530 = vmatmul.f32.gmra.mxu0 %v323
    %v531 = vpop.f32.mrf.mxu0
    %v532 = vadd.f32 %v178, %v531
    %533 = vmatmul.f32.gmra.mxu0 %v326
    %v534 = vpop.f32.mrf.mxu0
    %v535 = vadd.f32 %v178, %v534
    %536 = vmatmul.f32.gmra.mxu0 %v329
    %v537 = vpop.f32.mrf.mxu0
    %v538 = vadd.f32 %v178, %v537
    %539 = vmatmul.f32.gmra.mxu0 %v332
    %v540 = vpop.f32.mrf.mxu0
    %v541 = vadd.f32 %v178, %v540
    %542 = vmatmul.f32.gmra.mxu0 %v335
    %v543 = vpop.f32.mrf.mxu0
    %v544 = vadd.f32 %v178, %v543
    %545 = vmatmul.f32.gmra.mxu0 %v338
    %v546 = vpop.f32.mrf.mxu0
    %v547 = vadd.f32 %v178, %v546
    %548 = vmatmul.f32.gmra.mxu0 %v341
    %v549 = vpop.f32.mrf.mxu0
    %v550 = vadd.f32 %v178, %v549
    %551 = vmatmul.f32.gmra.mxu0 %v344
    %v552 = vpop.f32.mrf.mxu0
    %v553 = vadd.f32 %v178, %v552
    %554 = vmatmul.f32.gmra.mxu0 %v347
    %v555 = vpop.f32.mrf.mxu0
    %v556 = vadd.f32 %v178, %v555
    %557 = vmatmul.f32.gmra.mxu0 %v350
    %v558 = vpop.f32.mrf.mxu0
    %v559 = vadd.f32 %v178, %v558
    %560 = vmatmul.f32.gmra.mxu0 %v353
    %v561 = vpop.f32.mrf.mxu0
    %v562 = vadd.f32 %v178, %v561
    %563 = vmatmul.f32.gmra.mxu0 %v356
    %v564 = vpop.f32.mrf.mxu0
    %v565 = vadd.f32 %v178, %v564
    %566 = vmatmul.f32.gmra.mxu0 %v359
    %v567 = vpop.f32.mrf.mxu0
    %v568 = vadd.f32 %v178, %v567
    %569 = vmatmul.f32.gmra.mxu0 %v362
    %v570 = vpop.f32.mrf.mxu0
    %v571 = vadd.f32 %v178, %v570
    %572 = vmatmul.f32.gmra.mxu0 %v365
    %v573 = vpop.f32.mrf.mxu0
    %v574 = vadd.f32 %v178, %v573
    %575 = vmatmul.f32.gmra.mxu0 %v368
    %v576 = vpop.f32.mrf.mxu0
    %v577 = vadd.f32 %v178, %v576
    %578 = vmatmul.f32.gmra.mxu0 %v371
    %v579 = vpop.f32.mrf.mxu0
    %v580 = vadd.f32 %v178, %v579
    %581 = vdwg.mxu0
    %v582 = vld [vmem:[#allocation2] sm:$0xff]
    %v583 = vld [vmem:[#allocation2 + $0x8] sm:$0xff]
    %v584 = vld [vmem:[#allocation2 + $0x10] sm:$0xff]
    %v585 = vld [vmem:[#allocation2 + $0x18] sm:$0xff]
    %v586 = vld [vmem:[#allocation2 + $0x20] sm:$0xff]
    %v587 = vld [vmem:[#allocation2 + $0x28] sm:$0xff]
    %v588 = vld [vmem:[#allocation2 + $0x30] sm:$0xff]
    %v589 = vld [vmem:[#allocation2 + $0x38] sm:$0xff]
    %v590 = vld [vmem:[#allocation2 + $0x40] sm:$0xff]
    %v591 = vld [vmem:[#allocation2 + $0x48] sm:$0xff]
    %v592 = vld [vmem:[#allocation2 + $0x50] sm:$0xff]
    %v593 = vld [vmem:[#allocation2 + $0x58] sm:$0xff]
    %v594 = vld [vmem:[#allocation2 + $0x60] sm:$0xff]
    %v595 = vld [vmem:[#allocation2 + $0x68] sm:$0xff]
    %v596 = vld [vmem:[#allocation2 + $0x70] sm:$0xff]
    %v597 = vld [vmem:[#allocation2 + $0x78] sm:$0xff]
    %v598 = vld [vmem:[#allocation2 + $0x80] sm:$0xff]
    %v599 = vld [vmem:[#allocation2 + $0x88] sm:$0xff]
    %v600 = vld [vmem:[#allocation2 + $0x90] sm:$0xff]
    %v601 = vld [vmem:[#allocation2 + $0x98] sm:$0xff]
    %v602 = vld [vmem:[#allocation2 + $0xa0] sm:$0xff]
    %v603 = vld [vmem:[#allocation2 + $0xa8] sm:$0xff]
    %v604 = vld [vmem:[#allocation2 + $0xb0] sm:$0xff]
    %v605 = vld [vmem:[#allocation2 + $0xb8] sm:$0xff]
    %v606 = vld [vmem:[#allocation2 + $0xc0] sm:$0xff]
    %v607 = vld [vmem:[#allocation2 + $0xc8] sm:$0xff]
    %v608 = vld [vmem:[#allocation2 + $0xd0] sm:$0xff]
    %v609 = vld [vmem:[#allocation2 + $0xd8] sm:$0xff]
    %v610 = vld [vmem:[#allocation2 + $0xe0] sm:$0xff]
    %v611 = vld [vmem:[#allocation2 + $0xe8] sm:$0xff]
    %v612 = vld [vmem:[#allocation2 + $0xf0] sm:$0xff]
    %v613 = vld [vmem:[#allocation2 + $0xf8] sm:$0xff]
    %v614 = vld [vmem:[#allocation2 + $0x100] sm:$0xff]
    %v615 = vld [vmem:[#allocation2 + $0x108] sm:$0xff]
    %v616 = vld [vmem:[#allocation2 + $0x110] sm:$0xff]
    %v617 = vld [vmem:[#allocation2 + $0x118] sm:$0xff]
    %v618 = vld [vmem:[#allocation2 + $0x120] sm:$0xff]
    %v619 = vld [vmem:[#allocation2 + $0x128] sm:$0xff]
    %v620 = vld [vmem:[#allocation2 + $0x130] sm:$0xff]
    %v621 = vld [vmem:[#allocation2 + $0x138] sm:$0xff]
    %v622 = vld [vmem:[#allocation2 + $0x140] sm:$0xff]
    %v623 = vld [vmem:[#allocation2 + $0x148] sm:$0xff]
    %v624 = vld [vmem:[#allocation2 + $0x150] sm:$0xff]
    %v625 = vld [vmem:[#allocation2 + $0x158] sm:$0xff]
    %v626 = vld [vmem:[#allocation2 + $0x160] sm:$0xff]
    %v627 = vld [vmem:[#allocation2 + $0x168] sm:$0xff]
    %v628 = vld [vmem:[#allocation2 + $0x170] sm:$0xff]
    %v629 = vld [vmem:[#allocation2 + $0x178] sm:$0xff]
    %v630 = vld [vmem:[#allocation2 + $0x180] sm:$0xff]
    %v631 = vld [vmem:[#allocation2 + $0x188] sm:$0xff]
    %v632 = vld [vmem:[#allocation2 + $0x190] sm:$0xff]
    %v633 = vld [vmem:[#allocation2 + $0x198] sm:$0xff]
    %v634 = vld [vmem:[#allocation2 + $0x1a0] sm:$0xff]
    %v635 = vld [vmem:[#allocation2 + $0x1a8] sm:$0xff]
    %v636 = vld [vmem:[#allocation2 + $0x1b0] sm:$0xff]
    %v637 = vld [vmem:[#allocation2 + $0x1b8] sm:$0xff]
    %v638 = vld [vmem:[#allocation2 + $0x1c0] sm:$0xff]
    %v639 = vld [vmem:[#allocation2 + $0x1c8] sm:$0xff]
    %v640 = vld [vmem:[#allocation2 + $0x1d0] sm:$0xff]
    %v641 = vld [vmem:[#allocation2 + $0x1d8] sm:$0xff]
    %v642 = vld [vmem:[#allocation2 + $0x1e0] sm:$0xff]
    %v643 = vld [vmem:[#allocation2 + $0x1e8] sm:$0xff]
    %v644 = vld [vmem:[#allocation2 + $0x1f0] sm:$0xff]
    %v645 = vld [vmem:[#allocation2 + $0x1f8] sm:$0xff]
    %v646 = vld [vmem:[#allocation2 + $0x200] sm:$0xff]
    %v647 = vld [vmem:[#allocation2 + $0x208] sm:$0xff]
    %v648 = vld [vmem:[#allocation2 + $0x210] sm:$0xff]
    %v649 = vld [vmem:[#allocation2 + $0x218] sm:$0xff]
    %v650 = vld [vmem:[#allocation2 + $0x220] sm:$0xff]
    %v651 = vld [vmem:[#allocation2 + $0x228] sm:$0xff]
    %v652 = vld [vmem:[#allocation2 + $0x230] sm:$0xff]
    %v653 = vld [vmem:[#allocation2 + $0x238] sm:$0xff]
    %v654 = vld [vmem:[#allocation2 + $0x240] sm:$0xff]
    %v655 = vld [vmem:[#allocation2 + $0x248] sm:$0xff]
    %v656 = vld [vmem:[#allocation2 + $0x250] sm:$0xff]
    %v657 = vld [vmem:[#allocation2 + $0x258] sm:$0xff]
    %v658 = vld [vmem:[#allocation2 + $0x260] sm:$0xff]
    %v659 = vld [vmem:[#allocation2 + $0x268] sm:$0xff]
    %v660 = vld [vmem:[#allocation2 + $0x270] sm:$0xff]
    %v661 = vld [vmem:[#allocation2 + $0x278] sm:$0xff]
    %v662 = vld [vmem:[#allocation2 + $0x280] sm:$0xff]
    %v663 = vld [vmem:[#allocation2 + $0x288] sm:$0xff]
    %v664 = vld [vmem:[#allocation2 + $0x290] sm:$0xff]
    %v665 = vld [vmem:[#allocation2 + $0x298] sm:$0xff]
    %v666 = vld [vmem:[#allocation2 + $0x2a0] sm:$0xff]
    %v667 = vld [vmem:[#allocation2 + $0x2a8] sm:$0xff]
    %v668 = vld [vmem:[#allocation2 + $0x2b0] sm:$0xff]
    %v669 = vld [vmem:[#allocation2 + $0x2b8] sm:$0xff]
    %v670 = vld [vmem:[#allocation2 + $0x2c0] sm:$0xff]
    %v671 = vld [vmem:[#allocation2 + $0x2c8] sm:$0xff]
    %v672 = vld [vmem:[#allocation2 + $0x2d0] sm:$0xff]
    %v673 = vld [vmem:[#allocation2 + $0x2d8] sm:$0xff]
    %v674 = vld [vmem:[#allocation2 + $0x2e0] sm:$0xff]
    %v675 = vld [vmem:[#allocation2 + $0x2e8] sm:$0xff]
    %v676 = vld [vmem:[#allocation2 + $0x2f0] sm:$0xff]
    %v677 = vld [vmem:[#allocation2 + $0x2f8] sm:$0xff]
    %v678 = vld [vmem:[#allocation2 + $0x300] sm:$0xff]
    %v679 = vld [vmem:[#allocation2 + $0x308] sm:$0xff]
    %v680 = vld [vmem:[#allocation2 + $0x310] sm:$0xff]
    %v681 = vld [vmem:[#allocation2 + $0x318] sm:$0xff]
    %v682 = vld [vmem:[#allocation2 + $0x320] sm:$0xff]
    %v683 = vld [vmem:[#allocation2 + $0x328] sm:$0xff]
    %v684 = vld [vmem:[#allocation2 + $0x330] sm:$0xff]
    %v685 = vld [vmem:[#allocation2 + $0x338] sm:$0xff]
    %v686 = vld [vmem:[#allocation2 + $0x340] sm:$0xff]
    %v687 = vld [vmem:[#allocation2 + $0x348] sm:$0xff]
    %v688 = vld [vmem:[#allocation2 + $0x350] sm:$0xff]
    %v689 = vld [vmem:[#allocation2 + $0x358] sm:$0xff]
    %v690 = vld [vmem:[#allocation2 + $0x360] sm:$0xff]
    %v691 = vld [vmem:[#allocation2 + $0x368] sm:$0xff]
    %v692 = vld [vmem:[#allocation2 + $0x370] sm:$0xff]
    %v693 = vld [vmem:[#allocation2 + $0x378] sm:$0xff]
    %v694 = vld [vmem:[#allocation2 + $0x380] sm:$0xff]
    %v695 = vld [vmem:[#allocation2 + $0x388] sm:$0xff]
    %v696 = vld [vmem:[#allocation2 + $0x390] sm:$0xff]
    %v697 = vld [vmem:[#allocation2 + $0x398] sm:$0xff]
    %v698 = vld [vmem:[#allocation2 + $0x3a0] sm:$0xff]
    %v699 = vld [vmem:[#allocation2 + $0x3a8] sm:$0xff]
    %v700 = vld [vmem:[#allocation2 + $0x3b0] sm:$0xff]
    %v701 = vld [vmem:[#allocation2 + $0x3b8] sm:$0xff]
    %v702 = vld [vmem:[#allocation2 + $0x3c0] sm:$0xff]
    %v703 = vld [vmem:[#allocation2 + $0x3c8] sm:$0xff]
    %v704 = vld [vmem:[#allocation2 + $0x3d0] sm:$0xff]
    %v705 = vld [vmem:[#allocation2 + $0x3d8] sm:$0xff]
    %v706 = vld [vmem:[#allocation2 + $0x3e0] sm:$0xff]
    %v707 = vld [vmem:[#allocation2 + $0x3e8] sm:$0xff]
    %v708 = vld [vmem:[#allocation2 + $0x3f0] sm:$0xff]
    %v709 = vld [vmem:[#allocation2 + $0x3f8] sm:$0xff]
    %v710 = vpack.c.bf16 %v394, %v391
    %v711 = vpack.c.bf16 %v400, %v397
    %v712 = vpack.c.bf16 %v406, %v403
    %v713 = vpack.c.bf16 %v412, %v409
    %v714 = vpack.c.bf16 %v418, %v415
    %v715 = vpack.c.bf16 %v424, %v421
    %v716 = vpack.c.bf16 %v430, %v427
    %v717 = vpack.c.bf16 %v436, %v433
    %v718 = vpack.c.bf16 %v442, %v439
    %v719 = vpack.c.bf16 %v448, %v445
    %v720 = vpack.c.bf16 %v454, %v451
    %v721 = vpack.c.bf16 %v460, %v457
    %v722 = vpack.c.bf16 %v466, %v463
    %v723 = vpack.c.bf16 %v472, %v469
    %v724 = vpack.c.bf16 %v478, %v475
    %v725 = vpack.c.bf16 %v484, %v481
    %v726 = vpack.c.bf16 %v490, %v487
    %v727 = vpack.c.bf16 %v496, %v493
    %v728 = vpack.c.bf16 %v502, %v499
    %v729 = vpack.c.bf16 %v508, %v505
    %v730 = vpack.c.bf16 %v514, %v511
    %v731 = vpack.c.bf16 %v520, %v517
    %v732 = vpack.c.bf16 %v526, %v523
    %v733 = vpack.c.bf16 %v532, %v529
    %v734 = vpack.c.bf16 %v538, %v535
    %v735 = vpack.c.bf16 %v544, %v541
    %v736 = vpack.c.bf16 %v550, %v547
    %v737 = vpack.c.bf16 %v556, %v553
    %v738 = vpack.c.bf16 %v562, %v559
    %v739 = vpack.c.bf16 %v568, %v565
    %v740 = vpack.c.bf16 %v574, %v571
    %v741 = vpack.c.bf16 %v580, %v577
    %v870 = vunpack.c.l.b16 %v582
    %v871 = vunpack.c.h.b16 %v582
    %v872 = vunpack.c.l.b16 %v583
    %v873 = vunpack.c.h.b16 %v583
    %v874 = vunpack.c.l.b16 %v584
    %v875 = vunpack.c.h.b16 %v584
    %v876 = vunpack.c.l.b16 %v585
    %v877 = vunpack.c.h.b16 %v585
    %v878 = vunpack.c.l.b16 %v586
    %v879 = vunpack.c.h.b16 %v586
    %v880 = vunpack.c.l.b16 %v587
    %v881 = vunpack.c.h.b16 %v587
    %v882 = vunpack.c.l.b16 %v588
    %v883 = vunpack.c.h.b16 %v588
    %v884 = vunpack.c.l.b16 %v589
    %v885 = vunpack.c.h.b16 %v589
    %v886 = vunpack.c.l.b16 %v590
    %v887 = vunpack.c.h.b16 %v590
    %v888 = vunpack.c.l.b16 %v591
    %v889 = vunpack.c.h.b16 %v591
    %v890 = vunpack.c.l.b16 %v592
    %v891 = vunpack.c.h.b16 %v592
    %v892 = vunpack.c.l.b16 %v593
    %v893 = vunpack.c.h.b16 %v593
    %v894 = vunpack.c.l.b16 %v594
    %v895 = vunpack.c.h.b16 %v594
    %v896 = vunpack.c.l.b16 %v595
    %v897 = vunpack.c.h.b16 %v595
    %v898 = vunpack.c.l.b16 %v596
    %v899 = vunpack.c.h.b16 %v596
    %v900 = vunpack.c.l.b16 %v597
    %v901 = vunpack.c.h.b16 %v597
    %v902 = vunpack.c.l.b16 %v598
    %v903 = vunpack.c.h.b16 %v598
    %v904 = vunpack.c.l.b16 %v599
    %v905 = vunpack.c.h.b16 %v599
    %v906 = vunpack.c.l.b16 %v600
    %v907 = vunpack.c.h.b16 %v600
    %v908 = vunpack.c.l.b16 %v601
    %v909 = vunpack.c.h.b16 %v601
    %v910 = vunpack.c.l.b16 %v602
    %v911 = vunpack.c.h.b16 %v602
    %v912 = vunpack.c.l.b16 %v603
    %v913 = vunpack.c.h.b16 %v603
    %v914 = vunpack.c.l.b16 %v604
    %v915 = vunpack.c.h.b16 %v604
    %v916 = vunpack.c.l.b16 %v605
    %v917 = vunpack.c.h.b16 %v605
    %v918 = vunpack.c.l.b16 %v606
    %v919 = vunpack.c.h.b16 %v606
    %v920 = vunpack.c.l.b16 %v607
    %v921 = vunpack.c.h.b16 %v607
    %v922 = vunpack.c.l.b16 %v608
    %v923 = vunpack.c.h.b16 %v608
    %v924 = vunpack.c.l.b16 %v609
    %v925 = vunpack.c.h.b16 %v609
    %v926 = vunpack.c.l.b16 %v610
    %v927 = vunpack.c.h.b16 %v610
    %v928 = vunpack.c.l.b16 %v611
    %v929 = vunpack.c.h.b16 %v611
    %v930 = vunpack.c.l.b16 %v612
    %v931 = vunpack.c.h.b16 %v612
    %v932 = vunpack.c.l.b16 %v613
    %v933 = vunpack.c.h.b16 %v613
    %v934 = vunpack.c.l.b16 %v614
    %v935 = vunpack.c.h.b16 %v614
    %v936 = vunpack.c.l.b16 %v615
    %v937 = vunpack.c.h.b16 %v615
    %v938 = vunpack.c.l.b16 %v616
    %v939 = vunpack.c.h.b16 %v616
    %v940 = vunpack.c.l.b16 %v617
    %v941 = vunpack.c.h.b16 %v617
    %v942 = vunpack.c.l.b16 %v618
    %v943 = vunpack.c.h.b16 %v618
    %v944 = vunpack.c.l.b16 %v619
    %v945 = vunpack.c.h.b16 %v619
    %v946 = vunpack.c.l.b16 %v620
    %v947 = vunpack.c.h.b16 %v620
    %v948 = vunpack.c.l.b16 %v621
    %v949 = vunpack.c.h.b16 %v621
    %v950 = vunpack.c.l.b16 %v622
    %v951 = vunpack.c.h.b16 %v622
    %v952 = vunpack.c.l.b16 %v623
    %v953 = vunpack.c.h.b16 %v623
    %v954 = vunpack.c.l.b16 %v624
    %v955 = vunpack.c.h.b16 %v624
    %v956 = vunpack.c.l.b16 %v625
    %v957 = vunpack.c.h.b16 %v625
    %v958 = vunpack.c.l.b16 %v626
    %v959 = vunpack.c.h.b16 %v626
    %v960 = vunpack.c.l.b16 %v627
    %v961 = vunpack.c.h.b16 %v627
    %v962 = vunpack.c.l.b16 %v628
    %v963 = vunpack.c.h.b16 %v628
    %v964 = vunpack.c.l.b16 %v629
    %v965 = vunpack.c.h.b16 %v629
    %v966 = vunpack.c.l.b16 %v630
    %v967 = vunpack.c.h.b16 %v630
    %v968 = vunpack.c.l.b16 %v631
    %v969 = vunpack.c.h.b16 %v631
    %v970 = vunpack.c.l.b16 %v632
    %v971 = vunpack.c.h.b16 %v632
    %v972 = vunpack.c.l.b16 %v633
    %v973 = vunpack.c.h.b16 %v633
    %v974 = vunpack.c.l.b16 %v634
    %v975 = vunpack.c.h.b16 %v634
    %v976 = vunpack.c.l.b16 %v635
    %v977 = vunpack.c.h.b16 %v635
    %v978 = vunpack.c.l.b16 %v636
    %v979 = vunpack.c.h.b16 %v636
    %v980 = vunpack.c.l.b16 %v637
    %v981 = vunpack.c.h.b16 %v637
    %v982 = vunpack.c.l.b16 %v638
    %v983 = vunpack.c.h.b16 %v638
    %v984 = vunpack.c.l.b16 %v639
    %v985 = vunpack.c.h.b16 %v639
    %v986 = vunpack.c.l.b16 %v640
    %v987 = vunpack.c.h.b16 %v640
    %v988 = vunpack.c.l.b16 %v641
    %v989 = vunpack.c.h.b16 %v641
    %v990 = vunpack.c.l.b16 %v642
    %v991 = vunpack.c.h.b16 %v642
    %v992 = vunpack.c.l.b16 %v643
    %v993 = vunpack.c.h.b16 %v643
    %v994 = vunpack.c.l.b16 %v644
    %v995 = vunpack.c.h.b16 %v644
    %v996 = vunpack.c.l.b16 %v645
    %v997 = vunpack.c.h.b16 %v645
    %v998 = vunpack.c.l.b16 %v646
    %v999 = vunpack.c.h.b16 %v646
    %v1000 = vunpack.c.l.b16 %v647
    %v1001 = vunpack.c.h.b16 %v647
    %v1002 = vunpack.c.l.b16 %v648
    %v1003 = vunpack.c.h.b16 %v648
    %v1004 = vunpack.c.l.b16 %v649
    %v1005 = vunpack.c.h.b16 %v649
    %v1006 = vunpack.c.l.b16 %v650
    %v1007 = vunpack.c.h.b16 %v650
    %v1008 = vunpack.c.l.b16 %v651
    %v1009 = vunpack.c.h.b16 %v651
    %v1010 = vunpack.c.l.b16 %v652
    %v1011 = vunpack.c.h.b16 %v652
    %v1012 = vunpack.c.l.b16 %v653
    %v1013 = vunpack.c.h.b16 %v653
    %v1014 = vunpack.c.l.b16 %v654
    %v1015 = vunpack.c.h.b16 %v654
    %v1016 = vunpack.c.l.b16 %v655
    %v1017 = vunpack.c.h.b16 %v655
    %v1018 = vunpack.c.l.b16 %v656
    %v1019 = vunpack.c.h.b16 %v656
    %v1020 = vunpack.c.l.b16 %v657
    %v1021 = vunpack.c.h.b16 %v657
    %v1022 = vunpack.c.l.b16 %v658
    %v1023 = vunpack.c.h.b16 %v658
    %v1024 = vunpack.c.l.b16 %v659
    %v1025 = vunpack.c.h.b16 %v659
    %v1026 = vunpack.c.l.b16 %v660
    %v1027 = vunpack.c.h.b16 %v660
    %v1028 = vunpack.c.l.b16 %v661
    %v1029 = vunpack.c.h.b16 %v661
    %v1030 = vunpack.c.l.b16 %v662
    %v1031 = vunpack.c.h.b16 %v662
    %v1032 = vunpack.c.l.b16 %v663
    %v1033 = vunpack.c.h.b16 %v663
    %v1034 = vunpack.c.l.b16 %v664
    %v1035 = vunpack.c.h.b16 %v664
    %v1036 = vunpack.c.l.b16 %v665
    %v1037 = vunpack.c.h.b16 %v665
    %v1038 = vunpack.c.l.b16 %v666
    %v1039 = vunpack.c.h.b16 %v666
    %v1040 = vunpack.c.l.b16 %v667
    %v1041 = vunpack.c.h.b16 %v667
    %v1042 = vunpack.c.l.b16 %v668
    %v1043 = vunpack.c.h.b16 %v668
    %v1044 = vunpack.c.l.b16 %v669
    %v1045 = vunpack.c.h.b16 %v669
    %v1046 = vunpack.c.l.b16 %v670
    %v1047 = vunpack.c.h.b16 %v670
    %v1048 = vunpack.c.l.b16 %v671
    %v1049 = vunpack.c.h.b16 %v671
    %v1050 = vunpack.c.l.b16 %v672
    %v1051 = vunpack.c.h.b16 %v672
    %v1052 = vunpack.c.l.b16 %v673
    %v1053 = vunpack.c.h.b16 %v673
    %v1054 = vunpack.c.l.b16 %v674
    %v1055 = vunpack.c.h.b16 %v674
    %v1056 = vunpack.c.l.b16 %v675
    %v1057 = vunpack.c.h.b16 %v675
    %v1058 = vunpack.c.l.b16 %v676
    %v1059 = vunpack.c.h.b16 %v676
    %v1060 = vunpack.c.l.b16 %v677
    %v1061 = vunpack.c.h.b16 %v677
    %v1062 = vunpack.c.l.b16 %v678
    %v1063 = vunpack.c.h.b16 %v678
    %v1064 = vunpack.c.l.b16 %v679
    %v1065 = vunpack.c.h.b16 %v679
    %v1066 = vunpack.c.l.b16 %v680
    %v1067 = vunpack.c.h.b16 %v680
    %v1068 = vunpack.c.l.b16 %v681
    %v1069 = vunpack.c.h.b16 %v681
    %v1070 = vunpack.c.l.b16 %v682
    %v1071 = vunpack.c.h.b16 %v682
    %v1072 = vunpack.c.l.b16 %v683
    %v1073 = vunpack.c.h.b16 %v683
    %v1074 = vunpack.c.l.b16 %v684
    %v1075 = vunpack.c.h.b16 %v684
    %v1076 = vunpack.c.l.b16 %v685
    %v1077 = vunpack.c.h.b16 %v685
    %v1078 = vunpack.c.l.b16 %v686
    %v1079 = vunpack.c.h.b16 %v686
    %v1080 = vunpack.c.l.b16 %v687
    %v1081 = vunpack.c.h.b16 %v687
    %v1082 = vunpack.c.l.b16 %v688
    %v1083 = vunpack.c.h.b16 %v688
    %v1084 = vunpack.c.l.b16 %v689
    %v1085 = vunpack.c.h.b16 %v689
    %v1086 = vunpack.c.l.b16 %v690
    %v1087 = vunpack.c.h.b16 %v690
    %v1088 = vunpack.c.l.b16 %v691
    %v1089 = vunpack.c.h.b16 %v691
    %v1090 = vunpack.c.l.b16 %v692
    %v1091 = vunpack.c.h.b16 %v692
    %v1092 = vunpack.c.l.b16 %v693
    %v1093 = vunpack.c.h.b16 %v693
    %v1094 = vunpack.c.l.b16 %v694
    %v1095 = vunpack.c.h.b16 %v694
    %v1096 = vunpack.c.l.b16 %v695
    %v1097 = vunpack.c.h.b16 %v695
    %v1098 = vunpack.c.l.b16 %v696
    %v1099 = vunpack.c.h.b16 %v696
    %v1100 = vunpack.c.l.b16 %v697
    %v1101 = vunpack.c.h.b16 %v697
    %v1102 = vunpack.c.l.b16 %v698
    %v1103 = vunpack.c.h.b16 %v698
    %v1104 = vunpack.c.l.b16 %v699
    %v1105 = vunpack.c.h.b16 %v699
    %v1106 = vunpack.c.l.b16 %v700
    %v1107 = vunpack.c.h.b16 %v700
    %v1108 = vunpack.c.l.b16 %v701
    %v1109 = vunpack.c.h.b16 %v701
    %v1110 = vunpack.c.l.b16 %v702
    %v1111 = vunpack.c.h.b16 %v702
    %v1112 = vunpack.c.l.b16 %v703
    %v1113 = vunpack.c.h.b16 %v703
    %v1114 = vunpack.c.l.b16 %v704
    %v1115 = vunpack.c.h.b16 %v704
    %v1116 = vunpack.c.l.b16 %v705
    %v1117 = vunpack.c.h.b16 %v705
    %v1118 = vunpack.c.l.b16 %v706
    %v1119 = vunpack.c.h.b16 %v706
    %v1120 = vunpack.c.l.b16 %v707
    %v1121 = vunpack.c.h.b16 %v707
    %v1122 = vunpack.c.l.b16 %v708
    %v1123 = vunpack.c.h.b16 %v708
    %v1124 = vunpack.c.l.b16 %v709
    %v1125 = vunpack.c.h.b16 %v709
    %v1126 = vpack.c.b16 %v874, %v870
    %v1127 = vpack.c.b16 %v875, %v871
    %v1128 = vpack.c.b16 %v876, %v872
    %v1129 = vpack.c.b16 %v877, %v873
    %v1130 = vpack.c.b16 %v882, %v878
    %v1131 = vpack.c.b16 %v883, %v879
    %v1132 = vpack.c.b16 %v884, %v880
    %v1133 = vpack.c.b16 %v885, %v881
    %v1134 = vpack.c.b16 %v890, %v886
    %v1135 = vpack.c.b16 %v891, %v887
    %v1136 = vpack.c.b16 %v892, %v888
    %v1137 = vpack.c.b16 %v893, %v889
    %v1138 = vpack.c.b16 %v898, %v894
    %v1139 = vpack.c.b16 %v899, %v895
    %v1140 = vpack.c.b16 %v900, %v896
    %v1141 = vpack.c.b16 %v901, %v897
    %v1142 = vpack.c.b16 %v906, %v902
    %v1143 = vpack.c.b16 %v907, %v903
    %v1144 = vpack.c.b16 %v908, %v904
    %v1145 = vpack.c.b16 %v909, %v905
    %v1146 = vpack.c.b16 %v914, %v910
    %v1147 = vpack.c.b16 %v915, %v911
    %v1148 = vpack.c.b16 %v916, %v912
    %v1149 = vpack.c.b16 %v917, %v913
    %v1150 = vpack.c.b16 %v922, %v918
    %v1151 = vpack.c.b16 %v923, %v919
    %v1152 = vpack.c.b16 %v924, %v920
    %v1153 = vpack.c.b16 %v925, %v921
    %v1154 = vpack.c.b16 %v930, %v926
    %v1155 = vpack.c.b16 %v931, %v927
    %v1156 = vpack.c.b16 %v932, %v928
    %v1157 = vpack.c.b16 %v933, %v929
    %v1158 = vpack.c.b16 %v938, %v934
    %v1159 = vpack.c.b16 %v939, %v935
    %v1160 = vpack.c.b16 %v940, %v936
    %v1161 = vpack.c.b16 %v941, %v937
    %v1162 = vpack.c.b16 %v946, %v942
    %v1163 = vpack.c.b16 %v947, %v943
    %v1164 = vpack.c.b16 %v948, %v944
    %v1165 = vpack.c.b16 %v949, %v945
    %v1166 = vpack.c.b16 %v954, %v950
    %v1167 = vpack.c.b16 %v955, %v951
    %v1168 = vpack.c.b16 %v956, %v952
    %v1169 = vpack.c.b16 %v957, %v953
    %v1170 = vpack.c.b16 %v962, %v958
    %v1171 = vpack.c.b16 %v963, %v959
    %v1172 = vpack.c.b16 %v964, %v960
    %v1173 = vpack.c.b16 %v965, %v961
    %v1174 = vpack.c.b16 %v970, %v966
    %v1175 = vpack.c.b16 %v971, %v967
    %v1176 = vpack.c.b16 %v972, %v968
    %v1177 = vpack.c.b16 %v973, %v969
    %v1178 = vpack.c.b16 %v978, %v974
    %v1179 = vpack.c.b16 %v979, %v975
    %v1180 = vpack.c.b16 %v980, %v976
    %v1181 = vpack.c.b16 %v981, %v977
    %v1182 = vpack.c.b16 %v986, %v982
    %v1183 = vpack.c.b16 %v987, %v983
    %v1184 = vpack.c.b16 %v988, %v984
    %v1185 = vpack.c.b16 %v989, %v985
    %v1186 = vpack.c.b16 %v994, %v990
    %v1187 = vpack.c.b16 %v995, %v991
    %v1188 = vpack.c.b16 %v996, %v992
    %v1189 = vpack.c.b16 %v997, %v993
    %v1190 = vpack.c.b16 %v1002, %v998
    %v1191 = vpack.c.b16 %v1003, %v999
    %v1192 = vpack.c.b16 %v1004, %v1000
    %v1193 = vpack.c.b16 %v1005, %v1001
    %v1194 = vpack.c.b16 %v1010, %v1006
    %v1195 = vpack.c.b16 %v1011, %v1007
    %v1196 = vpack.c.b16 %v1012, %v1008
    %v1197 = vpack.c.b16 %v1013, %v1009
    %v1198 = vpack.c.b16 %v1018, %v1014
    %v1199 = vpack.c.b16 %v1019, %v1015
    %v1200 = vpack.c.b16 %v1020, %v1016
    %v1201 = vpack.c.b16 %v1021, %v1017
    %v1202 = vpack.c.b16 %v1026, %v1022
    %v1203 = vpack.c.b16 %v1027, %v1023
    %v1204 = vpack.c.b16 %v1028, %v1024
    %v1205 = vpack.c.b16 %v1029, %v1025
    %v1206 = vpack.c.b16 %v1034, %v1030
    %v1207 = vpack.c.b16 %v1035, %v1031
    %v1208 = vpack.c.b16 %v1036, %v1032
    %v1209 = vpack.c.b16 %v1037, %v1033
    %v1210 = vpack.c.b16 %v1042, %v1038
    %v1211 = vpack.c.b16 %v1043, %v1039
    %v1212 = vpack.c.b16 %v1044, %v1040
    %v1213 = vpack.c.b16 %v1045, %v1041
    %v1214 = vpack.c.b16 %v1050, %v1046
    %v1215 = vpack.c.b16 %v1051, %v1047
    %v1216 = vpack.c.b16 %v1052, %v1048
    %v1217 = vpack.c.b16 %v1053, %v1049
    %v1218 = vpack.c.b16 %v1058, %v1054
    %v1219 = vpack.c.b16 %v1059, %v1055
    %v1220 = vpack.c.b16 %v1060, %v1056
    %v1221 = vpack.c.b16 %v1061, %v1057
    %v1222 = vpack.c.b16 %v1066, %v1062
    %v1223 = vpack.c.b16 %v1067, %v1063
    %v1224 = vpack.c.b16 %v1068, %v1064
    %v1225 = vpack.c.b16 %v1069, %v1065
    %v1226 = vpack.c.b16 %v1074, %v1070
    %v1227 = vpack.c.b16 %v1075, %v1071
    %v1228 = vpack.c.b16 %v1076, %v1072
    %v1229 = vpack.c.b16 %v1077, %v1073
    %v1230 = vpack.c.b16 %v1082, %v1078
    %v1231 = vpack.c.b16 %v1083, %v1079
    %v1232 = vpack.c.b16 %v1084, %v1080
    %v1233 = vpack.c.b16 %v1085, %v1081
    %v1234 = vpack.c.b16 %v1090, %v1086
    %v1235 = vpack.c.b16 %v1091, %v1087
    %v1236 = vpack.c.b16 %v1092, %v1088
    %v1237 = vpack.c.b16 %v1093, %v1089
    %v1238 = vpack.c.b16 %v1098, %v1094
    %v1239 = vpack.c.b16 %v1099, %v1095
    %v1240 = vpack.c.b16 %v1100, %v1096
    %v1241 = vpack.c.b16 %v1101, %v1097
    %v1242 = vpack.c.b16 %v1106, %v1102
    %v1243 = vpack.c.b16 %v1107, %v1103
    %v1244 = vpack.c.b16 %v1108, %v1104
    %v1245 = vpack.c.b16 %v1109, %v1105
    %v1246 = vpack.c.b16 %v1114, %v1110
    %v1247 = vpack.c.b16 %v1115, %v1111
    %v1248 = vpack.c.b16 %v1116, %v1112
    %v1249 = vpack.c.b16 %v1117, %v1113
    %v1250 = vpack.c.b16 %v1122, %v1118
    %v1251 = vpack.c.b16 %v1123, %v1119
    %v1252 = vpack.c.b16 %v1124, %v1120
    %v1253 = vpack.c.b16 %v1125, %v1121
    %1382 = vmatpush.bf16.msra.mxu0 %v717
    %1383 = vmatpush.bf16.msra.mxu0 %v716
    %1384 = vmatpush.bf16.msra.mxu0 %v715
    %1385 = vmatpush.bf16.msra.mxu0 %v714
    %1386 = vmatpush.bf16.msra.mxu0 %v713
    %1387 = vmatpush.bf16.msra.mxu0 %v712
    %1388 = vmatpush.bf16.msra.mxu0 %v711
    %1389 = vmatpush.bf16.msra.mxu0 %v710
    %1390 = vmatmul.bf16.gmra.mxu0 %v1126
    %v1391 = vpop.f32.mrf.mxu0
    %v1392 = vadd.f32 0.0, %v1391
    %v1393 = vpop.f32.mrf.mxu0
    %v1394 = vadd.f32 0.0, %v1393
    %1395 = vmatmul.bf16.gmra.mxu0 %v1130
    %v1396 = vpop.f32.mrf.mxu0
    %v1397 = vadd.f32 0.0, %v1396
    %v1398 = vpop.f32.mrf.mxu0
    %v1399 = vadd.f32 0.0, %v1398
    %1400 = vmatmul.bf16.gmra.mxu0 %v1134
    %v1401 = vpop.f32.mrf.mxu0
    %v1402 = vadd.f32 0.0, %v1401
    %v1403 = vpop.f32.mrf.mxu0
    %v1404 = vadd.f32 0.0, %v1403
    %1405 = vmatmul.bf16.gmra.mxu0 %v1138
    %v1406 = vpop.f32.mrf.mxu0
    %v1407 = vadd.f32 0.0, %v1406
    %v1408 = vpop.f32.mrf.mxu0
    %v1409 = vadd.f32 0.0, %v1408
    %1410 = vmatmul.bf16.gmra.mxu0 %v1142
    %v1411 = vpop.f32.mrf.mxu0
    %v1412 = vadd.f32 0.0, %v1411
    %v1413 = vpop.f32.mrf.mxu0
    %v1414 = vadd.f32 0.0, %v1413
    %1415 = vmatmul.bf16.gmra.mxu0 %v1146
    %v1416 = vpop.f32.mrf.mxu0
    %v1417 = vadd.f32 0.0, %v1416
    %v1418 = vpop.f32.mrf.mxu0
    %v1419 = vadd.f32 0.0, %v1418
    %1420 = vmatmul.bf16.gmra.mxu0 %v1150
    %v1421 = vpop.f32.mrf.mxu0
    %v1422 = vadd.f32 0.0, %v1421
    %v1423 = vpop.f32.mrf.mxu0
    %v1424 = vadd.f32 0.0, %v1423
    %1425 = vmatmul.bf16.gmra.mxu0 %v1154
    %v1426 = vpop.f32.mrf.mxu0
    %v1427 = vadd.f32 0.0, %v1426
    %v1428 = vpop.f32.mrf.mxu0
    %v1429 = vadd.f32 0.0, %v1428
    %1430 = vmatmul.bf16.gmra.mxu0 %v1158
    %v1431 = vpop.f32.mrf.mxu0
    %v1432 = vadd.f32 0.0, %v1431
    %v1433 = vpop.f32.mrf.mxu0
    %v1434 = vadd.f32 0.0, %v1433
    %1435 = vmatmul.bf16.gmra.mxu0 %v1162
    %v1436 = vpop.f32.mrf.mxu0
    %v1437 = vadd.f32 0.0, %v1436
    %v1438 = vpop.f32.mrf.mxu0
    %v1439 = vadd.f32 0.0, %v1438
    %1440 = vmatmul.bf16.gmra.mxu0 %v1166
    %v1441 = vpop.f32.mrf.mxu0
    %v1442 = vadd.f32 0.0, %v1441
    %v1443 = vpop.f32.mrf.mxu0
    %v1444 = vadd.f32 0.0, %v1443
    %1445 = vmatmul.bf16.gmra.mxu0 %v1170
    %v1446 = vpop.f32.mrf.mxu0
    %v1447 = vadd.f32 0.0, %v1446
    %v1448 = vpop.f32.mrf.mxu0
    %v1449 = vadd.f32 0.0, %v1448
    %1450 = vmatmul.bf16.gmra.mxu0 %v1174
    %v1451 = vpop.f32.mrf.mxu0
    %v1452 = vadd.f32 0.0, %v1451
    %v1453 = vpop.f32.mrf.mxu0
    %v1454 = vadd.f32 0.0, %v1453
    %1455 = vmatmul.bf16.gmra.mxu0 %v1178
    %v1456 = vpop.f32.mrf.mxu0
    %v1457 = vadd.f32 0.0, %v1456
    %v1458 = vpop.f32.mrf.mxu0
    %v1459 = vadd.f32 0.0, %v1458
    %1460 = vmatmul.bf16.gmra.mxu0 %v1182
    %v1461 = vpop.f32.mrf.mxu0
    %v1462 = vadd.f32 0.0, %v1461
    %v1463 = vpop.f32.mrf.mxu0
    %v1464 = vadd.f32 0.0, %v1463
    %1465 = vmatmul.bf16.gmra.mxu0 %v1186
    %v1466 = vpop.f32.mrf.mxu0
    %v1467 = vadd.f32 0.0, %v1466
    %v1468 = vpop.f32.mrf.mxu0
    %v1469 = vadd.f32 0.0, %v1468
    %1470 = vmatmul.bf16.gmra.mxu0 %v1190
    %v1471 = vpop.f32.mrf.mxu0
    %v1472 = vadd.f32 0.0, %v1471
    %v1473 = vpop.f32.mrf.mxu0
    %v1474 = vadd.f32 0.0, %v1473
    %1475 = vmatmul.bf16.gmra.mxu0 %v1194
    %v1476 = vpop.f32.mrf.mxu0
    %v1477 = vadd.f32 0.0, %v1476
    %v1478 = vpop.f32.mrf.mxu0
    %v1479 = vadd.f32 0.0, %v1478
    %1480 = vmatmul.bf16.gmra.mxu0 %v1198
    %v1481 = vpop.f32.mrf.mxu0
    %v1482 = vadd.f32 0.0, %v1481
    %v1483 = vpop.f32.mrf.mxu0
    %v1484 = vadd.f32 0.0, %v1483
    %1485 = vmatmul.bf16.gmra.mxu0 %v1202
    %v1486 = vpop.f32.mrf.mxu0
    %v1487 = vadd.f32 0.0, %v1486
    %v1488 = vpop.f32.mrf.mxu0
    %v1489 = vadd.f32 0.0, %v1488
    %1490 = vmatmul.bf16.gmra.mxu0 %v1206
    %v1491 = vpop.f32.mrf.mxu0
    %v1492 = vadd.f32 0.0, %v1491
    %v1493 = vpop.f32.mrf.mxu0
    %v1494 = vadd.f32 0.0, %v1493
    %1495 = vmatmul.bf16.gmra.mxu0 %v1210
    %v1496 = vpop.f32.mrf.mxu0
    %v1497 = vadd.f32 0.0, %v1496
    %v1498 = vpop.f32.mrf.mxu0
    %v1499 = vadd.f32 0.0, %v1498
    %1500 = vmatmul.bf16.gmra.mxu0 %v1214
    %v1501 = vpop.f32.mrf.mxu0
    %v1502 = vadd.f32 0.0, %v1501
    %v1503 = vpop.f32.mrf.mxu0
    %v1504 = vadd.f32 0.0, %v1503
    %1505 = vmatmul.bf16.gmra.mxu0 %v1218
    %v1506 = vpop.f32.mrf.mxu0
    %v1507 = vadd.f32 0.0, %v1506
    %v1508 = vpop.f32.mrf.mxu0
    %v1509 = vadd.f32 0.0, %v1508
    %1510 = vmatmul.bf16.gmra.mxu0 %v1222
    %v1511 = vpop.f32.mrf.mxu0
    %v1512 = vadd.f32 0.0, %v1511
    %v1513 = vpop.f32.mrf.mxu0
    %v1514 = vadd.f32 0.0, %v1513
    %1515 = vmatmul.bf16.gmra.mxu0 %v1226
    %v1516 = vpop.f32.mrf.mxu0
    %v1517 = vadd.f32 0.0, %v1516
    %v1518 = vpop.f32.mrf.mxu0
    %v1519 = vadd.f32 0.0, %v1518
    %1520 = vmatmul.bf16.gmra.mxu0 %v1230
    %v1521 = vpop.f32.mrf.mxu0
    %v1522 = vadd.f32 0.0, %v1521
    %v1523 = vpop.f32.mrf.mxu0
    %v1524 = vadd.f32 0.0, %v1523
    %1525 = vmatmul.bf16.gmra.mxu0 %v1234
    %v1526 = vpop.f32.mrf.mxu0
    %v1527 = vadd.f32 0.0, %v1526
    %v1528 = vpop.f32.mrf.mxu0
    %v1529 = vadd.f32 0.0, %v1528
    %1530 = vmatmul.bf16.gmra.mxu0 %v1238
    %v1531 = vpop.f32.mrf.mxu0
    %v1532 = vadd.f32 0.0, %v1531
    %v1533 = vpop.f32.mrf.mxu0
    %v1534 = vadd.f32 0.0, %v1533
    %1535 = vmatmul.bf16.gmra.mxu0 %v1242
    %v1536 = vpop.f32.mrf.mxu0
    %v1537 = vadd.f32 0.0, %v1536
    %v1538 = vpop.f32.mrf.mxu0
    %v1539 = vadd.f32 0.0, %v1538
    %1540 = vmatmul.bf16.gmra.mxu0 %v1246
    %v1541 = vpop.f32.mrf.mxu0
    %v1542 = vadd.f32 0.0, %v1541
    %v1543 = vpop.f32.mrf.mxu0
    %v1544 = vadd.f32 0.0, %v1543
    %1545 = vmatmul.bf16.gmra.mxu0 %v1250
    %v1546 = vpop.f32.mrf.mxu0
    %v1547 = vadd.f32 0.0, %v1546
    %v1548 = vpop.f32.mrf.mxu0
    %v1549 = vadd.f32 0.0, %v1548
    %1550 = vdwg.mxu0
    %1551 = vmatpush.bf16.msra.mxu0 %v725
    %1552 = vmatpush.bf16.msra.mxu0 %v724
    %1553 = vmatpush.bf16.msra.mxu0 %v723
    %1554 = vmatpush.bf16.msra.mxu0 %v722
    %1555 = vmatpush.bf16.msra.mxu0 %v721
    %1556 = vmatpush.bf16.msra.mxu0 %v720
    %1557 = vmatpush.bf16.msra.mxu0 %v719
    %1558 = vmatpush.bf16.msra.mxu0 %v718
    %1559 = vmatmul.bf16.gmra.mxu0 %v1127
    %v1560 = vpop.f32.mrf.mxu0
    %v1561 = vadd.f32 %v1392, %v1560
    %v1562 = vpop.f32.mrf.mxu0
    %v1563 = vadd.f32 %v1394, %v1562
    %1564 = vmatmul.bf16.gmra.mxu0 %v1131
    %v1565 = vpop.f32.mrf.mxu0
    %v1566 = vadd.f32 %v1397, %v1565
    %v1567 = vpop.f32.mrf.mxu0
    %v1568 = vadd.f32 %v1399, %v1567
    %1569 = vmatmul.bf16.gmra.mxu0 %v1135
    %v1570 = vpop.f32.mrf.mxu0
    %v1571 = vadd.f32 %v1402, %v1570
    %v1572 = vpop.f32.mrf.mxu0
    %v1573 = vadd.f32 %v1404, %v1572
    %1574 = vmatmul.bf16.gmra.mxu0 %v1139
    %v1575 = vpop.f32.mrf.mxu0
    %v1576 = vadd.f32 %v1407, %v1575
    %v1577 = vpop.f32.mrf.mxu0
    %v1578 = vadd.f32 %v1409, %v1577
    %1579 = vmatmul.bf16.gmra.mxu0 %v1143
    %v1580 = vpop.f32.mrf.mxu0
    %v1581 = vadd.f32 %v1412, %v1580
    %v1582 = vpop.f32.mrf.mxu0
    %v1583 = vadd.f32 %v1414, %v1582
    %1584 = vmatmul.bf16.gmra.mxu0 %v1147
    %v1585 = vpop.f32.mrf.mxu0
    %v1586 = vadd.f32 %v1417, %v1585
    %v1587 = vpop.f32.mrf.mxu0
    %v1588 = vadd.f32 %v1419, %v1587
    %1589 = vmatmul.bf16.gmra.mxu0 %v1151
    %v1590 = vpop.f32.mrf.mxu0
    %v1591 = vadd.f32 %v1422, %v1590
    %v1592 = vpop.f32.mrf.mxu0
    %v1593 = vadd.f32 %v1424, %v1592
    %1594 = vmatmul.bf16.gmra.mxu0 %v1155
    %v1595 = vpop.f32.mrf.mxu0
    %v1596 = vadd.f32 %v1427, %v1595
    %v1597 = vpop.f32.mrf.mxu0
    %v1598 = vadd.f32 %v1429, %v1597
    %1599 = vmatmul.bf16.gmra.mxu0 %v1159
    %v1600 = vpop.f32.mrf.mxu0
    %v1601 = vadd.f32 %v1432, %v1600
    %v1602 = vpop.f32.mrf.mxu0
    %v1603 = vadd.f32 %v1434, %v1602
    %1604 = vmatmul.bf16.gmra.mxu0 %v1163
    %v1605 = vpop.f32.mrf.mxu0
    %v1606 = vadd.f32 %v1437, %v1605
    %v1607 = vpop.f32.mrf.mxu0
    %v1608 = vadd.f32 %v1439, %v1607
    %1609 = vmatmul.bf16.gmra.mxu0 %v1167
    %v1610 = vpop.f32.mrf.mxu0
    %v1611 = vadd.f32 %v1442, %v1610
    %v1612 = vpop.f32.mrf.mxu0
    %v1613 = vadd.f32 %v1444, %v1612
    %1614 = vmatmul.bf16.gmra.mxu0 %v1171
    %v1615 = vpop.f32.mrf.mxu0
    %v1616 = vadd.f32 %v1447, %v1615
    %v1617 = vpop.f32.mrf.mxu0
    %v1618 = vadd.f32 %v1449, %v1617
    %1619 = vmatmul.bf16.gmra.mxu0 %v1175
    %v1620 = vpop.f32.mrf.mxu0
    %v1621 = vadd.f32 %v1452, %v1620
    %v1622 = vpop.f32.mrf.mxu0
    %v1623 = vadd.f32 %v1454, %v1622
    %1624 = vmatmul.bf16.gmra.mxu0 %v1179
    %v1625 = vpop.f32.mrf.mxu0
    %v1626 = vadd.f32 %v1457, %v1625
    %v1627 = vpop.f32.mrf.mxu0
    %v1628 = vadd.f32 %v1459, %v1627
    %1629 = vmatmul.bf16.gmra.mxu0 %v1183
    %v1630 = vpop.f32.mrf.mxu0
    %v1631 = vadd.f32 %v1462, %v1630
    %v1632 = vpop.f32.mrf.mxu0
    %v1633 = vadd.f32 %v1464, %v1632
    %1634 = vmatmul.bf16.gmra.mxu0 %v1187
    %v1635 = vpop.f32.mrf.mxu0
    %v1636 = vadd.f32 %v1467, %v1635
    %v1637 = vpop.f32.mrf.mxu0
    %v1638 = vadd.f32 %v1469, %v1637
    %1639 = vmatmul.bf16.gmra.mxu0 %v1191
    %v1640 = vpop.f32.mrf.mxu0
    %v1641 = vadd.f32 %v1472, %v1640
    %v1642 = vpop.f32.mrf.mxu0
    %v1643 = vadd.f32 %v1474, %v1642
    %1644 = vmatmul.bf16.gmra.mxu0 %v1195
    %v1645 = vpop.f32.mrf.mxu0
    %v1646 = vadd.f32 %v1477, %v1645
    %v1647 = vpop.f32.mrf.mxu0
    %v1648 = vadd.f32 %v1479, %v1647
    %1649 = vmatmul.bf16.gmra.mxu0 %v1199
    %v1650 = vpop.f32.mrf.mxu0
    %v1651 = vadd.f32 %v1482, %v1650
    %v1652 = vpop.f32.mrf.mxu0
    %v1653 = vadd.f32 %v1484, %v1652
    %1654 = vmatmul.bf16.gmra.mxu0 %v1203
    %v1655 = vpop.f32.mrf.mxu0
    %v1656 = vadd.f32 %v1487, %v1655
    %v1657 = vpop.f32.mrf.mxu0
    %v1658 = vadd.f32 %v1489, %v1657
    %1659 = vmatmul.bf16.gmra.mxu0 %v1207
    %v1660 = vpop.f32.mrf.mxu0
    %v1661 = vadd.f32 %v1492, %v1660
    %v1662 = vpop.f32.mrf.mxu0
    %v1663 = vadd.f32 %v1494, %v1662
    %1664 = vmatmul.bf16.gmra.mxu0 %v1211
    %v1665 = vpop.f32.mrf.mxu0
    %v1666 = vadd.f32 %v1497, %v1665
    %v1667 = vpop.f32.mrf.mxu0
    %v1668 = vadd.f32 %v1499, %v1667
    %1669 = vmatmul.bf16.gmra.mxu0 %v1215
    %v1670 = vpop.f32.mrf.mxu0
    %v1671 = vadd.f32 %v1502, %v1670
    %v1672 = vpop.f32.mrf.mxu0
    %v1673 = vadd.f32 %v1504, %v1672
    %1674 = vmatmul.bf16.gmra.mxu0 %v1219
    %v1675 = vpop.f32.mrf.mxu0
    %v1676 = vadd.f32 %v1507, %v1675
    %v1677 = vpop.f32.mrf.mxu0
    %v1678 = vadd.f32 %v1509, %v1677
    %1679 = vmatmul.bf16.gmra.mxu0 %v1223
    %v1680 = vpop.f32.mrf.mxu0
    %v1681 = vadd.f32 %v1512, %v1680
    %v1682 = vpop.f32.mrf.mxu0
    %v1683 = vadd.f32 %v1514, %v1682
    %1684 = vmatmul.bf16.gmra.mxu0 %v1227
    %v1685 = vpop.f32.mrf.mxu0
    %v1686 = vadd.f32 %v1517, %v1685
    %v1687 = vpop.f32.mrf.mxu0
    %v1688 = vadd.f32 %v1519, %v1687
    %1689 = vmatmul.bf16.gmra.mxu0 %v1231
    %v1690 = vpop.f32.mrf.mxu0
    %v1691 = vadd.f32 %v1522, %v1690
    %v1692 = vpop.f32.mrf.mxu0
    %v1693 = vadd.f32 %v1524, %v1692
    %1694 = vmatmul.bf16.gmra.mxu0 %v1235
    %v1695 = vpop.f32.mrf.mxu0
    %v1696 = vadd.f32 %v1527, %v1695
    %v1697 = vpop.f32.mrf.mxu0
    %v1698 = vadd.f32 %v1529, %v1697
    %1699 = vmatmul.bf16.gmra.mxu0 %v1239
    %v1700 = vpop.f32.mrf.mxu0
    %v1701 = vadd.f32 %v1532, %v1700
    %v1702 = vpop.f32.mrf.mxu0
    %v1703 = vadd.f32 %v1534, %v1702
    %1704 = vmatmul.bf16.gmra.mxu0 %v1243
    %v1705 = vpop.f32.mrf.mxu0
    %v1706 = vadd.f32 %v1537, %v1705
    %v1707 = vpop.f32.mrf.mxu0
    %v1708 = vadd.f32 %v1539, %v1707
    %1709 = vmatmul.bf16.gmra.mxu0 %v1247
    %v1710 = vpop.f32.mrf.mxu0
    %v1711 = vadd.f32 %v1542, %v1710
    %v1712 = vpop.f32.mrf.mxu0
    %v1713 = vadd.f32 %v1544, %v1712
    %1714 = vmatmul.bf16.gmra.mxu0 %v1251
    %v1715 = vpop.f32.mrf.mxu0
    %v1716 = vadd.f32 %v1547, %v1715
    %v1717 = vpop.f32.mrf.mxu0
    %v1718 = vadd.f32 %v1549, %v1717
    %1719 = vdwg.mxu0
    %1720 = vmatpush.bf16.msra.mxu0 %v733
    %1721 = vmatpush.bf16.msra.mxu0 %v732
    %1722 = vmatpush.bf16.msra.mxu0 %v731
    %1723 = vmatpush.bf16.msra.mxu0 %v730
    %1724 = vmatpush.bf16.msra.mxu0 %v729
    %1725 = vmatpush.bf16.msra.mxu0 %v728
    %1726 = vmatpush.bf16.msra.mxu0 %v727
    %1727 = vmatpush.bf16.msra.mxu0 %v726
    %1728 = vmatmul.bf16.gmra.mxu0 %v1128
    %v1729 = vpop.f32.mrf.mxu0
    %v1730 = vadd.f32 %v1561, %v1729
    %v1731 = vpop.f32.mrf.mxu0
    %v1732 = vadd.f32 %v1563, %v1731
    %1733 = vmatmul.bf16.gmra.mxu0 %v1132
    %v1734 = vpop.f32.mrf.mxu0
    %v1735 = vadd.f32 %v1566, %v1734
    %v1736 = vpop.f32.mrf.mxu0
    %v1737 = vadd.f32 %v1568, %v1736
    %1738 = vmatmul.bf16.gmra.mxu0 %v1136
    %v1739 = vpop.f32.mrf.mxu0
    %v1740 = vadd.f32 %v1571, %v1739
    %v1741 = vpop.f32.mrf.mxu0
    %v1742 = vadd.f32 %v1573, %v1741
    %1743 = vmatmul.bf16.gmra.mxu0 %v1140
    %v1744 = vpop.f32.mrf.mxu0
    %v1745 = vadd.f32 %v1576, %v1744
    %v1746 = vpop.f32.mrf.mxu0
    %v1747 = vadd.f32 %v1578, %v1746
    %1748 = vmatmul.bf16.gmra.mxu0 %v1144
    %v1749 = vpop.f32.mrf.mxu0
    %v1750 = vadd.f32 %v1581, %v1749
    %v1751 = vpop.f32.mrf.mxu0
    %v1752 = vadd.f32 %v1583, %v1751
    %1753 = vmatmul.bf16.gmra.mxu0 %v1148
    %v1754 = vpop.f32.mrf.mxu0
    %v1755 = vadd.f32 %v1586, %v1754
    %v1756 = vpop.f32.mrf.mxu0
    %v1757 = vadd.f32 %v1588, %v1756
    %1758 = vmatmul.bf16.gmra.mxu0 %v1152
    %v1759 = vpop.f32.mrf.mxu0
    %v1760 = vadd.f32 %v1591, %v1759
    %v1761 = vpop.f32.mrf.mxu0
    %v1762 = vadd.f32 %v1593, %v1761
    %1763 = vmatmul.bf16.gmra.mxu0 %v1156
    %v1764 = vpop.f32.mrf.mxu0
    %v1765 = vadd.f32 %v1596, %v1764
    %v1766 = vpop.f32.mrf.mxu0
    %v1767 = vadd.f32 %v1598, %v1766
    %1768 = vmatmul.bf16.gmra.mxu0 %v1160
    %v1769 = vpop.f32.mrf.mxu0
    %v1770 = vadd.f32 %v1601, %v1769
    %v1771 = vpop.f32.mrf.mxu0
    %v1772 = vadd.f32 %v1603, %v1771
    %1773 = vmatmul.bf16.gmra.mxu0 %v1164
    %v1774 = vpop.f32.mrf.mxu0
    %v1775 = vadd.f32 %v1606, %v1774
    %v1776 = vpop.f32.mrf.mxu0
    %v1777 = vadd.f32 %v1608, %v1776
    %1778 = vmatmul.bf16.gmra.mxu0 %v1168
    %v1779 = vpop.f32.mrf.mxu0
    %v1780 = vadd.f32 %v1611, %v1779
    %v1781 = vpop.f32.mrf.mxu0
    %v1782 = vadd.f32 %v1613, %v1781
    %1783 = vmatmul.bf16.gmra.mxu0 %v1172
    %v1784 = vpop.f32.mrf.mxu0
    %v1785 = vadd.f32 %v1616, %v1784
    %v1786 = vpop.f32.mrf.mxu0
    %v1787 = vadd.f32 %v1618, %v1786
    %1788 = vmatmul.bf16.gmra.mxu0 %v1176
    %v1789 = vpop.f32.mrf.mxu0
    %v1790 = vadd.f32 %v1621, %v1789
    %v1791 = vpop.f32.mrf.mxu0
    %v1792 = vadd.f32 %v1623, %v1791
    %1793 = vmatmul.bf16.gmra.mxu0 %v1180
    %v1794 = vpop.f32.mrf.mxu0
    %v1795 = vadd.f32 %v1626, %v1794
    %v1796 = vpop.f32.mrf.mxu0
    %v1797 = vadd.f32 %v1628, %v1796
    %1798 = vmatmul.bf16.gmra.mxu0 %v1184
    %v1799 = vpop.f32.mrf.mxu0
    %v1800 = vadd.f32 %v1631, %v1799
    %v1801 = vpop.f32.mrf.mxu0
    %v1802 = vadd.f32 %v1633, %v1801
    %1803 = vmatmul.bf16.gmra.mxu0 %v1188
    %v1804 = vpop.f32.mrf.mxu0
    %v1805 = vadd.f32 %v1636, %v1804
    %v1806 = vpop.f32.mrf.mxu0
    %v1807 = vadd.f32 %v1638, %v1806
    %1808 = vmatmul.bf16.gmra.mxu0 %v1192
    %v1809 = vpop.f32.mrf.mxu0
    %v1810 = vadd.f32 %v1641, %v1809
    %v1811 = vpop.f32.mrf.mxu0
    %v1812 = vadd.f32 %v1643, %v1811
    %1813 = vmatmul.bf16.gmra.mxu0 %v1196
    %v1814 = vpop.f32.mrf.mxu0
    %v1815 = vadd.f32 %v1646, %v1814
    %v1816 = vpop.f32.mrf.mxu0
    %v1817 = vadd.f32 %v1648, %v1816
    %1818 = vmatmul.bf16.gmra.mxu0 %v1200
    %v1819 = vpop.f32.mrf.mxu0
    %v1820 = vadd.f32 %v1651, %v1819
    %v1821 = vpop.f32.mrf.mxu0
    %v1822 = vadd.f32 %v1653, %v1821
    %1823 = vmatmul.bf16.gmra.mxu0 %v1204
    %v1824 = vpop.f32.mrf.mxu0
    %v1825 = vadd.f32 %v1656, %v1824
    %v1826 = vpop.f32.mrf.mxu0
    %v1827 = vadd.f32 %v1658, %v1826
    %1828 = vmatmul.bf16.gmra.mxu0 %v1208
    %v1829 = vpop.f32.mrf.mxu0
    %v1830 = vadd.f32 %v1661, %v1829
    %v1831 = vpop.f32.mrf.mxu0
    %v1832 = vadd.f32 %v1663, %v1831
    %1833 = vmatmul.bf16.gmra.mxu0 %v1212
    %v1834 = vpop.f32.mrf.mxu0
    %v1835 = vadd.f32 %v1666, %v1834
    %v1836 = vpop.f32.mrf.mxu0
    %v1837 = vadd.f32 %v1668, %v1836
    %1838 = vmatmul.bf16.gmra.mxu0 %v1216
    %v1839 = vpop.f32.mrf.mxu0
    %v1840 = vadd.f32 %v1671, %v1839
    %v1841 = vpop.f32.mrf.mxu0
    %v1842 = vadd.f32 %v1673, %v1841
    %1843 = vmatmul.bf16.gmra.mxu0 %v1220
    %v1844 = vpop.f32.mrf.mxu0
    %v1845 = vadd.f32 %v1676, %v1844
    %v1846 = vpop.f32.mrf.mxu0
    %v1847 = vadd.f32 %v1678, %v1846
    %1848 = vmatmul.bf16.gmra.mxu0 %v1224
    %v1849 = vpop.f32.mrf.mxu0
    %v1850 = vadd.f32 %v1681, %v1849
    %v1851 = vpop.f32.mrf.mxu0
    %v1852 = vadd.f32 %v1683, %v1851
    %1853 = vmatmul.bf16.gmra.mxu0 %v1228
    %v1854 = vpop.f32.mrf.mxu0
    %v1855 = vadd.f32 %v1686, %v1854
    %v1856 = vpop.f32.mrf.mxu0
    %v1857 = vadd.f32 %v1688, %v1856
    %1858 = vmatmul.bf16.gmra.mxu0 %v1232
    %v1859 = vpop.f32.mrf.mxu0
    %v1860 = vadd.f32 %v1691, %v1859
    %v1861 = vpop.f32.mrf.mxu0
    %v1862 = vadd.f32 %v1693, %v1861
    %1863 = vmatmul.bf16.gmra.mxu0 %v1236
    %v1864 = vpop.f32.mrf.mxu0
    %v1865 = vadd.f32 %v1696, %v1864
    %v1866 = vpop.f32.mrf.mxu0
    %v1867 = vadd.f32 %v1698, %v1866
    %1868 = vmatmul.bf16.gmra.mxu0 %v1240
    %v1869 = vpop.f32.mrf.mxu0
    %v1870 = vadd.f32 %v1701, %v1869
    %v1871 = vpop.f32.mrf.mxu0
    %v1872 = vadd.f32 %v1703, %v1871
    %1873 = vmatmul.bf16.gmra.mxu0 %v1244
    %v1874 = vpop.f32.mrf.mxu0
    %v1875 = vadd.f32 %v1706, %v1874
    %v1876 = vpop.f32.mrf.mxu0
    %v1877 = vadd.f32 %v1708, %v1876
    %1878 = vmatmul.bf16.gmra.mxu0 %v1248
    %v1879 = vpop.f32.mrf.mxu0
    %v1880 = vadd.f32 %v1711, %v1879
    %v1881 = vpop.f32.mrf.mxu0
    %v1882 = vadd.f32 %v1713, %v1881
    %1883 = vmatmul.bf16.gmra.mxu0 %v1252
    %v1884 = vpop.f32.mrf.mxu0
    %v1885 = vadd.f32 %v1716, %v1884
    %v1886 = vpop.f32.mrf.mxu0
    %v1887 = vadd.f32 %v1718, %v1886
    %1888 = vdwg.mxu0
    %1889 = vmatpush.bf16.msra.mxu0 %v741
    %1890 = vmatpush.bf16.msra.mxu0 %v740
    %1891 = vmatpush.bf16.msra.mxu0 %v739
    %1892 = vmatpush.bf16.msra.mxu0 %v738
    %1893 = vmatpush.bf16.msra.mxu0 %v737
    %1894 = vmatpush.bf16.msra.mxu0 %v736
    %1895 = vmatpush.bf16.msra.mxu0 %v735
    %1896 = vmatpush.bf16.msra.mxu0 %v734
    %1897 = vmatmul.bf16.gmra.mxu0 %v1129
    %v1898 = vpop.f32.mrf.mxu0
    %v1899 = vadd.f32 %v1730, %v1898
    %v1900 = vpop.f32.mrf.mxu0
    %v1901 = vadd.f32 %v1732, %v1900
    %1902 = vmatmul.bf16.gmra.mxu0 %v1133
    %v1903 = vpop.f32.mrf.mxu0
    %v1904 = vadd.f32 %v1735, %v1903
    %v1905 = vpop.f32.mrf.mxu0
    %v1906 = vadd.f32 %v1737, %v1905
    %1907 = vmatmul.bf16.gmra.mxu0 %v1137
    %v1908 = vpop.f32.mrf.mxu0
    %v1909 = vadd.f32 %v1740, %v1908
    %v1910 = vpop.f32.mrf.mxu0
    %v1911 = vadd.f32 %v1742, %v1910
    %1912 = vmatmul.bf16.gmra.mxu0 %v1141
    %v1913 = vpop.f32.mrf.mxu0
    %v1914 = vadd.f32 %v1745, %v1913
    %v1915 = vpop.f32.mrf.mxu0
    %v1916 = vadd.f32 %v1747, %v1915
    %1917 = vmatmul.bf16.gmra.mxu0 %v1145
    %v1918 = vpop.f32.mrf.mxu0
    %v1919 = vadd.f32 %v1750, %v1918
    %v1920 = vpop.f32.mrf.mxu0
    %v1921 = vadd.f32 %v1752, %v1920
    %1922 = vmatmul.bf16.gmra.mxu0 %v1149
    %v1923 = vpop.f32.mrf.mxu0
    %v1924 = vadd.f32 %v1755, %v1923
    %v1925 = vpop.f32.mrf.mxu0
    %v1926 = vadd.f32 %v1757, %v1925
    %1927 = vmatmul.bf16.gmra.mxu0 %v1153
    %v1928 = vpop.f32.mrf.mxu0
    %v1929 = vadd.f32 %v1760, %v1928
    %v1930 = vpop.f32.mrf.mxu0
    %v1931 = vadd.f32 %v1762, %v1930
    %1932 = vmatmul.bf16.gmra.mxu0 %v1157
    %v1933 = vpop.f32.mrf.mxu0
    %v1934 = vadd.f32 %v1765, %v1933
    %v1935 = vpop.f32.mrf.mxu0
    %v1936 = vadd.f32 %v1767, %v1935
    %1937 = vmatmul.bf16.gmra.mxu0 %v1161
    %v1938 = vpop.f32.mrf.mxu0
    %v1939 = vadd.f32 %v1770, %v1938
    %v1940 = vpop.f32.mrf.mxu0
    %v1941 = vadd.f32 %v1772, %v1940
    %1942 = vmatmul.bf16.gmra.mxu0 %v1165
    %v1943 = vpop.f32.mrf.mxu0
    %v1944 = vadd.f32 %v1775, %v1943
    %v1945 = vpop.f32.mrf.mxu0
    %v1946 = vadd.f32 %v1777, %v1945
    %1947 = vmatmul.bf16.gmra.mxu0 %v1169
    %v1948 = vpop.f32.mrf.mxu0
    %v1949 = vadd.f32 %v1780, %v1948
    %v1950 = vpop.f32.mrf.mxu0
    %v1951 = vadd.f32 %v1782, %v1950
    %1952 = vmatmul.bf16.gmra.mxu0 %v1173
    %v1953 = vpop.f32.mrf.mxu0
    %v1954 = vadd.f32 %v1785, %v1953
    %v1955 = vpop.f32.mrf.mxu0
    %v1956 = vadd.f32 %v1787, %v1955
    %1957 = vmatmul.bf16.gmra.mxu0 %v1177
    %v1958 = vpop.f32.mrf.mxu0
    %v1959 = vadd.f32 %v1790, %v1958
    %v1960 = vpop.f32.mrf.mxu0
    %v1961 = vadd.f32 %v1792, %v1960
    %1962 = vmatmul.bf16.gmra.mxu0 %v1181
    %v1963 = vpop.f32.mrf.mxu0
    %v1964 = vadd.f32 %v1795, %v1963
    %v1965 = vpop.f32.mrf.mxu0
    %v1966 = vadd.f32 %v1797, %v1965
    %1967 = vmatmul.bf16.gmra.mxu0 %v1185
    %v1968 = vpop.f32.mrf.mxu0
    %v1969 = vadd.f32 %v1800, %v1968
    %v1970 = vpop.f32.mrf.mxu0
    %v1971 = vadd.f32 %v1802, %v1970
    %1972 = vmatmul.bf16.gmra.mxu0 %v1189
    %v1973 = vpop.f32.mrf.mxu0
    %v1974 = vadd.f32 %v1805, %v1973
    %v1975 = vpop.f32.mrf.mxu0
    %v1976 = vadd.f32 %v1807, %v1975
    %1977 = vmatmul.bf16.gmra.mxu0 %v1193
    %v1978 = vpop.f32.mrf.mxu0
    %v1979 = vadd.f32 %v1810, %v1978
    %v1980 = vpop.f32.mrf.mxu0
    %v1981 = vadd.f32 %v1812, %v1980
    %1982 = vmatmul.bf16.gmra.mxu0 %v1197
    %v1983 = vpop.f32.mrf.mxu0
    %v1984 = vadd.f32 %v1815, %v1983
    %v1985 = vpop.f32.mrf.mxu0
    %v1986 = vadd.f32 %v1817, %v1985
    %1987 = vmatmul.bf16.gmra.mxu0 %v1201
    %v1988 = vpop.f32.mrf.mxu0
    %v1989 = vadd.f32 %v1820, %v1988
    %v1990 = vpop.f32.mrf.mxu0
    %v1991 = vadd.f32 %v1822, %v1990
    %1992 = vmatmul.bf16.gmra.mxu0 %v1205
    %v1993 = vpop.f32.mrf.mxu0
    %v1994 = vadd.f32 %v1825, %v1993
    %v1995 = vpop.f32.mrf.mxu0
    %v1996 = vadd.f32 %v1827, %v1995
    %1997 = vmatmul.bf16.gmra.mxu0 %v1209
    %v1998 = vpop.f32.mrf.mxu0
    %v1999 = vadd.f32 %v1830, %v1998
    %v2000 = vpop.f32.mrf.mxu0
    %v2001 = vadd.f32 %v1832, %v2000
    %2002 = vmatmul.bf16.gmra.mxu0 %v1213
    %v2003 = vpop.f32.mrf.mxu0
    %v2004 = vadd.f32 %v1835, %v2003
    %v2005 = vpop.f32.mrf.mxu0
    %v2006 = vadd.f32 %v1837, %v2005
    %2007 = vmatmul.bf16.gmra.mxu0 %v1217
    %v2008 = vpop.f32.mrf.mxu0
    %v2009 = vadd.f32 %v1840, %v2008
    %v2010 = vpop.f32.mrf.mxu0
    %v2011 = vadd.f32 %v1842, %v2010
    %2012 = vmatmul.bf16.gmra.mxu0 %v1221
    %v2013 = vpop.f32.mrf.mxu0
    %v2014 = vadd.f32 %v1845, %v2013
    %v2015 = vpop.f32.mrf.mxu0
    %v2016 = vadd.f32 %v1847, %v2015
    %2017 = vmatmul.bf16.gmra.mxu0 %v1225
    %v2018 = vpop.f32.mrf.mxu0
    %v2019 = vadd.f32 %v1850, %v2018
    %v2020 = vpop.f32.mrf.mxu0
    %v2021 = vadd.f32 %v1852, %v2020
    %2022 = vmatmul.bf16.gmra.mxu0 %v1229
    %v2023 = vpop.f32.mrf.mxu0
    %v2024 = vadd.f32 %v1855, %v2023
    %v2025 = vpop.f32.mrf.mxu0
    %v2026 = vadd.f32 %v1857, %v2025
    %2027 = vmatmul.bf16.gmra.mxu0 %v1233
    %v2028 = vpop.f32.mrf.mxu0
    %v2029 = vadd.f32 %v1860, %v2028
    %v2030 = vpop.f32.mrf.mxu0
    %v2031 = vadd.f32 %v1862, %v2030
    %2032 = vmatmul.bf16.gmra.mxu0 %v1237
    %v2033 = vpop.f32.mrf.mxu0
    %v2034 = vadd.f32 %v1865, %v2033
    %v2035 = vpop.f32.mrf.mxu0
    %v2036 = vadd.f32 %v1867, %v2035
    %2037 = vmatmul.bf16.gmra.mxu0 %v1241
    %v2038 = vpop.f32.mrf.mxu0
    %v2039 = vadd.f32 %v1870, %v2038
    %v2040 = vpop.f32.mrf.mxu0
    %v2041 = vadd.f32 %v1872, %v2040
    %2042 = vmatmul.bf16.gmra.mxu0 %v1245
    %v2043 = vpop.f32.mrf.mxu0
    %v2044 = vadd.f32 %v1875, %v2043
    %v2045 = vpop.f32.mrf.mxu0
    %v2046 = vadd.f32 %v1877, %v2045
    %2047 = vmatmul.bf16.gmra.mxu0 %v1249
    %v2048 = vpop.f32.mrf.mxu0
    %v2049 = vadd.f32 %v1880, %v2048
    %v2050 = vpop.f32.mrf.mxu0
    %v2051 = vadd.f32 %v1882, %v2050
    %2052 = vmatmul.bf16.gmra.mxu0 %v1253
    %v2053 = vpop.f32.mrf.mxu0
    %v2054 = vadd.f32 %v1885, %v2053
    %v2055 = vpop.f32.mrf.mxu0
    %v2056 = vadd.f32 %v1887, %v2055
    %2057 = vdwg.mxu0
    %v2058 = vmax.f32 %v1899, 0.0
    %v2059 = vmax.f32 %v1901, 0.0
    %v2060 = vmax.f32 %v1904, 0.0
    %v2061 = vmax.f32 %v1906, 0.0
    %v2062 = vmax.f32 %v1909, 0.0
    %v2063 = vmax.f32 %v1911, 0.0
    %v2064 = vmax.f32 %v1914, 0.0
    %v2065 = vmax.f32 %v1916, 0.0
    %v2066 = vmax.f32 %v1919, 0.0
    %v2067 = vmax.f32 %v1921, 0.0
    %v2068 = vmax.f32 %v1924, 0.0
    %v2069 = vmax.f32 %v1926, 0.0
    %v2070 = vmax.f32 %v1929, 0.0
    %v2071 = vmax.f32 %v1931, 0.0
    %v2072 = vmax.f32 %v1934, 0.0
    %v2073 = vmax.f32 %v1936, 0.0
    %v2074 = vmax.f32 %v1939, 0.0
    %v2075 = vmax.f32 %v1941, 0.0
    %v2076 = vmax.f32 %v1944, 0.0
    %v2077 = vmax.f32 %v1946, 0.0
    %v2078 = vmax.f32 %v1949, 0.0
    %v2079 = vmax.f32 %v1951, 0.0
    %v2080 = vmax.f32 %v1954, 0.0
    %v2081 = vmax.f32 %v1956, 0.0
    %v2082 = vmax.f32 %v1959, 0.0
    %v2083 = vmax.f32 %v1961, 0.0
    %v2084 = vmax.f32 %v1964, 0.0
    %v2085 = vmax.f32 %v1966, 0.0
    %v2086 = vmax.f32 %v1969, 0.0
    %v2087 = vmax.f32 %v1971, 0.0
    %v2088 = vmax.f32 %v1974, 0.0
    %v2089 = vmax.f32 %v1976, 0.0
    %v2090 = vmax.f32 %v1979, 0.0
    %v2091 = vmax.f32 %v1981, 0.0
    %v2092 = vmax.f32 %v1984, 0.0
    %v2093 = vmax.f32 %v1986, 0.0
    %v2094 = vmax.f32 %v1989, 0.0
    %v2095 = vmax.f32 %v1991, 0.0
    %v2096 = vmax.f32 %v1994, 0.0
    %v2097 = vmax.f32 %v1996, 0.0
    %v2098 = vmax.f32 %v1999, 0.0
    %v2099 = vmax.f32 %v2001, 0.0
    %v2100 = vmax.f32 %v2004, 0.0
    %v2101 = vmax.f32 %v2006, 0.0
    %v2102 = vmax.f32 %v2009, 0.0
    %v2103 = vmax.f32 %v2011, 0.0
    %v2104 = vmax.f32 %v2014, 0.0
    %v2105 = vmax.f32 %v2016, 0.0
    %v2106 = vmax.f32 %v2019, 0.0
    %v2107 = vmax.f32 %v2021, 0.0
    %v2108 = vmax.f32 %v2024, 0.0
    %v2109 = vmax.f32 %v2026, 0.0
    %v2110 = vmax.f32 %v2029, 0.0
    %v2111 = vmax.f32 %v2031, 0.0
    %v2112 = vmax.f32 %v2034, 0.0
    %v2113 = vmax.f32 %v2036, 0.0
    %v2114 = vmax.f32 %v2039, 0.0
    %v2115 = vmax.f32 %v2041, 0.0
    %v2116 = vmax.f32 %v2044, 0.0
    %v2117 = vmax.f32 %v2046, 0.0
    %v2118 = vmax.f32 %v2049, 0.0
    %v2119 = vmax.f32 %v2051, 0.0
    %v2120 = vmax.f32 %v2054, 0.0
    %v2121 = vmax.f32 %v2056, 0.0
    %v2122 = vld [vmem:[%s4] sm:$0xff]
    %v2123 = vld [vmem:[%s4 + $0x8] sm:$0xff]
    %v2124 = vld [vmem:[%s4 + $0x10] sm:$0xff]
    %v2125 = vld [vmem:[%s4 + $0x18] sm:$0xff]
    %v2126 = vld [vmem:[%s4 + $0x20] sm:$0xff]
    %v2127 = vld [vmem:[%s4 + $0x28] sm:$0xff]
    %v2128 = vld [vmem:[%s4 + $0x30] sm:$0xff]
    %v2129 = vld [vmem:[%s4 + $0x38] sm:$0xff]
    %v2130 = vld [vmem:[%s4 + $0x40] sm:$0xff]
    %v2131 = vld [vmem:[%s4 + $0x48] sm:$0xff]
    %v2132 = vld [vmem:[%s4 + $0x50] sm:$0xff]
    %v2133 = vld [vmem:[%s4 + $0x58] sm:$0xff]
    %v2134 = vld [vmem:[%s4 + $0x60] sm:$0xff]
    %v2135 = vld [vmem:[%s4 + $0x68] sm:$0xff]
    %v2136 = vld [vmem:[%s4 + $0x70] sm:$0xff]
    %v2137 = vld [vmem:[%s4 + $0x78] sm:$0xff]
    %v2138 = vld [vmem:[%s5] sm:$0x1]
    %v2140 = vperm.slane %v2138, 0
    %2142 = vmatpush.msra.mxu0 %v2137
    %2143 = vmatpush.msra.mxu0 %v2136
    %2144 = vmatpush.msra.mxu0 %v2135
    %2145 = vmatpush.msra.mxu0 %v2134
    %2146 = vmatpush.msra.mxu0 %v2133
    %2147 = vmatpush.msra.mxu0 %v2132
    %2148 = vmatpush.msra.mxu0 %v2131
    %2149 = vmatpush.msra.mxu0 %v2130
    %2150 = vmatpush.msra.mxu0 %v2129
    %2151 = vmatpush.msra.mxu0 %v2128
    %2152 = vmatpush.msra.mxu0 %v2127
    %2153 = vmatpush.msra.mxu0 %v2126
    %2154 = vmatpush.msra.mxu0 %v2125
    %2155 = vmatpush.msra.mxu0 %v2124
    %2156 = vmatpush.msra.mxu0 %v2123
    %2157 = vmatpush.msra.mxu0 %v2122
    %2158 = vmatmul.f32.gmra.mxu0 %v2058
    %v2159 = vpop.f32.mrf.mxu0
    %v2160 = vadd.f32 %v2140, %v2159
    %2161 = vmatmul.f32.gmra.mxu0 %v2059
    %v2162 = vpop.f32.mrf.mxu0
    %v2163 = vadd.f32 %v2140, %v2162
    %2164 = vmatmul.f32.gmra.mxu0 %v2060
    %v2165 = vpop.f32.mrf.mxu0
    %v2166 = vadd.f32 %v2140, %v2165
    %2167 = vmatmul.f32.gmra.mxu0 %v2061
    %v2168 = vpop.f32.mrf.mxu0
    %v2169 = vadd.f32 %v2140, %v2168
    %2170 = vmatmul.f32.gmra.mxu0 %v2062
    %v2171 = vpop.f32.mrf.mxu0
    %v2172 = vadd.f32 %v2140, %v2171
    %2173 = vmatmul.f32.gmra.mxu0 %v2063
    %v2174 = vpop.f32.mrf.mxu0
    %v2175 = vadd.f32 %v2140, %v2174
    %2176 = vmatmul.f32.gmra.mxu0 %v2064
    %v2177 = vpop.f32.mrf.mxu0
    %v2178 = vadd.f32 %v2140, %v2177
    %2179 = vmatmul.f32.gmra.mxu0 %v2065
    %v2180 = vpop.f32.mrf.mxu0
    %v2181 = vadd.f32 %v2140, %v2180
    %2182 = vmatmul.f32.gmra.mxu0 %v2066
    %v2183 = vpop.f32.mrf.mxu0
    %v2184 = vadd.f32 %v2140, %v2183
    %2185 = vmatmul.f32.gmra.mxu0 %v2067
    %v2186 = vpop.f32.mrf.mxu0
    %v2187 = vadd.f32 %v2140, %v2186
    %2188 = vmatmul.f32.gmra.mxu0 %v2068
    %v2189 = vpop.f32.mrf.mxu0
    %v2190 = vadd.f32 %v2140, %v2189
    %2191 = vmatmul.f32.gmra.mxu0 %v2069
    %v2192 = vpop.f32.mrf.mxu0
    %v2193 = vadd.f32 %v2140, %v2192
    %2194 = vmatmul.f32.gmra.mxu0 %v2070
    %v2195 = vpop.f32.mrf.mxu0
    %v2196 = vadd.f32 %v2140, %v2195
    %2197 = vmatmul.f32.gmra.mxu0 %v2071
    %v2198 = vpop.f32.mrf.mxu0
    %v2199 = vadd.f32 %v2140, %v2198
    %2200 = vmatmul.f32.gmra.mxu0 %v2072
    %v2201 = vpop.f32.mrf.mxu0
    %v2202 = vadd.f32 %v2140, %v2201
    %2203 = vmatmul.f32.gmra.mxu0 %v2073
    %v2204 = vpop.f32.mrf.mxu0
    %v2205 = vadd.f32 %v2140, %v2204
    %2206 = vmatmul.f32.gmra.mxu0 %v2074
    %v2207 = vpop.f32.mrf.mxu0
    %v2208 = vadd.f32 %v2140, %v2207
    %2209 = vmatmul.f32.gmra.mxu0 %v2075
    %v2210 = vpop.f32.mrf.mxu0
    %v2211 = vadd.f32 %v2140, %v2210
    %2212 = vmatmul.f32.gmra.mxu0 %v2076
    %v2213 = vpop.f32.mrf.mxu0
    %v2214 = vadd.f32 %v2140, %v2213
    %2215 = vmatmul.f32.gmra.mxu0 %v2077
    %v2216 = vpop.f32.mrf.mxu0
    %v2217 = vadd.f32 %v2140, %v2216
    %2218 = vmatmul.f32.gmra.mxu0 %v2078
    %v2219 = vpop.f32.mrf.mxu0
    %v2220 = vadd.f32 %v2140, %v2219
    %2221 = vmatmul.f32.gmra.mxu0 %v2079
    %v2222 = vpop.f32.mrf.mxu0
    %v2223 = vadd.f32 %v2140, %v2222
    %2224 = vmatmul.f32.gmra.mxu0 %v2080
    %v2225 = vpop.f32.mrf.mxu0
    %v2226 = vadd.f32 %v2140, %v2225
    %2227 = vmatmul.f32.gmra.mxu0 %v2081
    %v2228 = vpop.f32.mrf.mxu0
    %v2229 = vadd.f32 %v2140, %v2228
    %2230 = vmatmul.f32.gmra.mxu0 %v2082
    %v2231 = vpop.f32.mrf.mxu0
    %v2232 = vadd.f32 %v2140, %v2231
    %2233 = vmatmul.f32.gmra.mxu0 %v2083
    %v2234 = vpop.f32.mrf.mxu0
    %v2235 = vadd.f32 %v2140, %v2234
    %2236 = vmatmul.f32.gmra.mxu0 %v2084
    %v2237 = vpop.f32.mrf.mxu0
    %v2238 = vadd.f32 %v2140, %v2237
    %2239 = vmatmul.f32.gmra.mxu0 %v2085
    %v2240 = vpop.f32.mrf.mxu0
    %v2241 = vadd.f32 %v2140, %v2240
    %2242 = vmatmul.f32.gmra.mxu0 %v2086
    %v2243 = vpop.f32.mrf.mxu0
    %v2244 = vadd.f32 %v2140, %v2243
    %2245 = vmatmul.f32.gmra.mxu0 %v2087
    %v2246 = vpop.f32.mrf.mxu0
    %v2247 = vadd.f32 %v2140, %v2246
    %2248 = vmatmul.f32.gmra.mxu0 %v2088
    %v2249 = vpop.f32.mrf.mxu0
    %v2250 = vadd.f32 %v2140, %v2249
    %2251 = vmatmul.f32.gmra.mxu0 %v2089
    %v2252 = vpop.f32.mrf.mxu0
    %v2253 = vadd.f32 %v2140, %v2252
    %2254 = vmatmul.f32.gmra.mxu0 %v2090
    %v2255 = vpop.f32.mrf.mxu0
    %v2256 = vadd.f32 %v2140, %v2255
    %2257 = vmatmul.f32.gmra.mxu0 %v2091
    %v2258 = vpop.f32.mrf.mxu0
    %v2259 = vadd.f32 %v2140, %v2258
    %2260 = vmatmul.f32.gmra.mxu0 %v2092
    %v2261 = vpop.f32.mrf.mxu0
    %v2262 = vadd.f32 %v2140, %v2261
    %2263 = vmatmul.f32.gmra.mxu0 %v2093
    %v2264 = vpop.f32.mrf.mxu0
    %v2265 = vadd.f32 %v2140, %v2264
    %2266 = vmatmul.f32.gmra.mxu0 %v2094
    %v2267 = vpop.f32.mrf.mxu0
    %v2268 = vadd.f32 %v2140, %v2267
    %2269 = vmatmul.f32.gmra.mxu0 %v2095
    %v2270 = vpop.f32.mrf.mxu0
    %v2271 = vadd.f32 %v2140, %v2270
    %2272 = vmatmul.f32.gmra.mxu0 %v2096
    %v2273 = vpop.f32.mrf.mxu0
    %v2274 = vadd.f32 %v2140, %v2273
    %2275 = vmatmul.f32.gmra.mxu0 %v2097
    %v2276 = vpop.f32.mrf.mxu0
    %v2277 = vadd.f32 %v2140, %v2276
    %2278 = vmatmul.f32.gmra.mxu0 %v2098
    %v2279 = vpop.f32.mrf.mxu0
    %v2280 = vadd.f32 %v2140, %v2279
    %2281 = vmatmul.f32.gmra.mxu0 %v2099
    %v2282 = vpop.f32.mrf.mxu0
    %v2283 = vadd.f32 %v2140, %v2282
    %2284 = vmatmul.f32.gmra.mxu0 %v2100
    %v2285 = vpop.f32.mrf.mxu0
    %v2286 = vadd.f32 %v2140, %v2285
    %2287 = vmatmul.f32.gmra.mxu0 %v2101
    %v2288 = vpop.f32.mrf.mxu0
    %v2289 = vadd.f32 %v2140, %v2288
    %2290 = vmatmul.f32.gmra.mxu0 %v2102
    %v2291 = vpop.f32.mrf.mxu0
    %v2292 = vadd.f32 %v2140, %v2291
    %2293 = vmatmul.f32.gmra.mxu0 %v2103
    %v2294 = vpop.f32.mrf.mxu0
    %v2295 = vadd.f32 %v2140, %v2294
    %2296 = vmatmul.f32.gmra.mxu0 %v2104
    %v2297 = vpop.f32.mrf.mxu0
    %v2298 = vadd.f32 %v2140, %v2297
    %2299 = vmatmul.f32.gmra.mxu0 %v2105
    %v2300 = vpop.f32.mrf.mxu0
    %v2301 = vadd.f32 %v2140, %v2300
    %2302 = vmatmul.f32.gmra.mxu0 %v2106
    %v2303 = vpop.f32.mrf.mxu0
    %v2304 = vadd.f32 %v2140, %v2303
    %2305 = vmatmul.f32.gmra.mxu0 %v2107
    %v2306 = vpop.f32.mrf.mxu0
    %v2307 = vadd.f32 %v2140, %v2306
    %2308 = vmatmul.f32.gmra.mxu0 %v2108
    %v2309 = vpop.f32.mrf.mxu0
    %v2310 = vadd.f32 %v2140, %v2309
    %2311 = vmatmul.f32.gmra.mxu0 %v2109
    %v2312 = vpop.f32.mrf.mxu0
    %v2313 = vadd.f32 %v2140, %v2312
    %2314 = vmatmul.f32.gmra.mxu0 %v2110
    %v2315 = vpop.f32.mrf.mxu0
    %v2316 = vadd.f32 %v2140, %v2315
    %2317 = vmatmul.f32.gmra.mxu0 %v2111
    %v2318 = vpop.f32.mrf.mxu0
    %v2319 = vadd.f32 %v2140, %v2318
    %2320 = vmatmul.f32.gmra.mxu0 %v2112
    %v2321 = vpop.f32.mrf.mxu0
    %v2322 = vadd.f32 %v2140, %v2321
    %2323 = vmatmul.f32.gmra.mxu0 %v2113
    %v2324 = vpop.f32.mrf.mxu0
    %v2325 = vadd.f32 %v2140, %v2324
    %2326 = vmatmul.f32.gmra.mxu0 %v2114
    %v2327 = vpop.f32.mrf.mxu0
    %v2328 = vadd.f32 %v2140, %v2327
    %2329 = vmatmul.f32.gmra.mxu0 %v2115
    %v2330 = vpop.f32.mrf.mxu0
    %v2331 = vadd.f32 %v2140, %v2330
    %2332 = vmatmul.f32.gmra.mxu0 %v2116
    %v2333 = vpop.f32.mrf.mxu0
    %v2334 = vadd.f32 %v2140, %v2333
    %2335 = vmatmul.f32.gmra.mxu0 %v2117
    %v2336 = vpop.f32.mrf.mxu0
    %v2337 = vadd.f32 %v2140, %v2336
    %2338 = vmatmul.f32.gmra.mxu0 %v2118
    %v2339 = vpop.f32.mrf.mxu0
    %v2340 = vadd.f32 %v2140, %v2339
    %2341 = vmatmul.f32.gmra.mxu0 %v2119
    %v2342 = vpop.f32.mrf.mxu0
    %v2343 = vadd.f32 %v2140, %v2342
    %2344 = vmatmul.f32.gmra.mxu0 %v2120
    %v2345 = vpop.f32.mrf.mxu0
    %v2346 = vadd.f32 %v2140, %v2345
    %2347 = vmatmul.f32.gmra.mxu0 %v2121
    %v2348 = vpop.f32.mrf.mxu0
    %v2349 = vadd.f32 %v2140, %v2348
    %2350 = vdwg.mxu0
    %v2351 = vpack.c.bf16 %v2163, %v2160
    %v2352 = vpack.c.bf16 %v2169, %v2166
    %v2353 = vpack.c.bf16 %v2175, %v2172
    %v2354 = vpack.c.bf16 %v2181, %v2178
    %v2355 = vpack.c.bf16 %v2187, %v2184
    %v2356 = vpack.c.bf16 %v2193, %v2190
    %v2357 = vpack.c.bf16 %v2199, %v2196
    %v2358 = vpack.c.bf16 %v2205, %v2202
    %v2359 = vpack.c.bf16 %v2211, %v2208
    %v2360 = vpack.c.bf16 %v2217, %v2214
    %v2361 = vpack.c.bf16 %v2223, %v2220
    %v2362 = vpack.c.bf16 %v2229, %v2226
    %v2363 = vpack.c.bf16 %v2235, %v2232
    %v2364 = vpack.c.bf16 %v2241, %v2238
    %v2365 = vpack.c.bf16 %v2247, %v2244
    %v2366 = vpack.c.bf16 %v2253, %v2250
    %v2367 = vpack.c.bf16 %v2259, %v2256
    %v2368 = vpack.c.bf16 %v2265, %v2262
    %v2369 = vpack.c.bf16 %v2271, %v2268
    %v2370 = vpack.c.bf16 %v2277, %v2274
    %v2371 = vpack.c.bf16 %v2283, %v2280
    %v2372 = vpack.c.bf16 %v2289, %v2286
    %v2373 = vpack.c.bf16 %v2295, %v2292
    %v2374 = vpack.c.bf16 %v2301, %v2298
    %v2375 = vpack.c.bf16 %v2307, %v2304
    %v2376 = vpack.c.bf16 %v2313, %v2310
    %v2377 = vpack.c.bf16 %v2319, %v2316
    %v2378 = vpack.c.bf16 %v2325, %v2322
    %v2379 = vpack.c.bf16 %v2331, %v2328
    %v2380 = vpack.c.bf16 %v2337, %v2334
    %v2381 = vpack.c.bf16 %v2343, %v2340
    %v2382 = vpack.c.bf16 %v2349, %v2346
    %2383 = vmatpush.bf16.msra.mxu0 %v2358
    %2384 = vmatpush.bf16.msra.mxu0 %v2357
    %2385 = vmatpush.bf16.msra.mxu0 %v2356
    %2386 = vmatpush.bf16.msra.mxu0 %v2355
    %2387 = vmatpush.bf16.msra.mxu0 %v2354
    %2388 = vmatpush.bf16.msra.mxu0 %v2353
    %2389 = vmatpush.bf16.msra.mxu0 %v2352
    %2390 = vmatpush.bf16.msra.mxu0 %v2351
    %2391 = vmatmul.bf16.gmra.mxu0 %v1126
    %v2392 = vpop.f32.mrf.mxu0
    %v2393 = vadd.f32 0.0, %v2392
    %v2394 = vpop.f32.mrf.mxu0
    %v2395 = vadd.f32 0.0, %v2394
    %2396 = vmatmul.bf16.gmra.mxu0 %v1130
    %v2397 = vpop.f32.mrf.mxu0
    %v2398 = vadd.f32 0.0, %v2397
    %v2399 = vpop.f32.mrf.mxu0
    %v2400 = vadd.f32 0.0, %v2399
    %2401 = vmatmul.bf16.gmra.mxu0 %v1134
    %v2402 = vpop.f32.mrf.mxu0
    %v2403 = vadd.f32 0.0, %v2402
    %v2404 = vpop.f32.mrf.mxu0
    %v2405 = vadd.f32 0.0, %v2404
    %2406 = vmatmul.bf16.gmra.mxu0 %v1138
    %v2407 = vpop.f32.mrf.mxu0
    %v2408 = vadd.f32 0.0, %v2407
    %v2409 = vpop.f32.mrf.mxu0
    %v2410 = vadd.f32 0.0, %v2409
    %2411 = vmatmul.bf16.gmra.mxu0 %v1142
    %v2412 = vpop.f32.mrf.mxu0
    %v2413 = vadd.f32 0.0, %v2412
    %v2414 = vpop.f32.mrf.mxu0
    %v2415 = vadd.f32 0.0, %v2414
    %2416 = vmatmul.bf16.gmra.mxu0 %v1146
    %v2417 = vpop.f32.mrf.mxu0
    %v2418 = vadd.f32 0.0, %v2417
    %v2419 = vpop.f32.mrf.mxu0
    %v2420 = vadd.f32 0.0, %v2419
    %2421 = vmatmul.bf16.gmra.mxu0 %v1150
    %v2422 = vpop.f32.mrf.mxu0
    %v2423 = vadd.f32 0.0, %v2422
    %v2424 = vpop.f32.mrf.mxu0
    %v2425 = vadd.f32 0.0, %v2424
    %2426 = vmatmul.bf16.gmra.mxu0 %v1154
    %v2427 = vpop.f32.mrf.mxu0
    %v2428 = vadd.f32 0.0, %v2427
    %v2429 = vpop.f32.mrf.mxu0
    %v2430 = vadd.f32 0.0, %v2429
    %2431 = vmatmul.bf16.gmra.mxu0 %v1158
    %v2432 = vpop.f32.mrf.mxu0
    %v2433 = vadd.f32 0.0, %v2432
    %v2434 = vpop.f32.mrf.mxu0
    %v2435 = vadd.f32 0.0, %v2434
    %2436 = vmatmul.bf16.gmra.mxu0 %v1162
    %v2437 = vpop.f32.mrf.mxu0
    %v2438 = vadd.f32 0.0, %v2437
    %v2439 = vpop.f32.mrf.mxu0
    %v2440 = vadd.f32 0.0, %v2439
    %2441 = vmatmul.bf16.gmra.mxu0 %v1166
    %v2442 = vpop.f32.mrf.mxu0
    %v2443 = vadd.f32 0.0, %v2442
    %v2444 = vpop.f32.mrf.mxu0
    %v2445 = vadd.f32 0.0, %v2444
    %2446 = vmatmul.bf16.gmra.mxu0 %v1170
    %v2447 = vpop.f32.mrf.mxu0
    %v2448 = vadd.f32 0.0, %v2447
    %v2449 = vpop.f32.mrf.mxu0
    %v2450 = vadd.f32 0.0, %v2449
    %2451 = vmatmul.bf16.gmra.mxu0 %v1174
    %v2452 = vpop.f32.mrf.mxu0
    %v2453 = vadd.f32 0.0, %v2452
    %v2454 = vpop.f32.mrf.mxu0
    %v2455 = vadd.f32 0.0, %v2454
    %2456 = vmatmul.bf16.gmra.mxu0 %v1178
    %v2457 = vpop.f32.mrf.mxu0
    %v2458 = vadd.f32 0.0, %v2457
    %v2459 = vpop.f32.mrf.mxu0
    %v2460 = vadd.f32 0.0, %v2459
    %2461 = vmatmul.bf16.gmra.mxu0 %v1182
    %v2462 = vpop.f32.mrf.mxu0
    %v2463 = vadd.f32 0.0, %v2462
    %v2464 = vpop.f32.mrf.mxu0
    %v2465 = vadd.f32 0.0, %v2464
    %2466 = vmatmul.bf16.gmra.mxu0 %v1186
    %v2467 = vpop.f32.mrf.mxu0
    %v2468 = vadd.f32 0.0, %v2467
    %v2469 = vpop.f32.mrf.mxu0
    %v2470 = vadd.f32 0.0, %v2469
    %2471 = vmatmul.bf16.gmra.mxu0 %v1190
    %v2472 = vpop.f32.mrf.mxu0
    %v2473 = vadd.f32 0.0, %v2472
    %v2474 = vpop.f32.mrf.mxu0
    %v2475 = vadd.f32 0.0, %v2474
    %2476 = vmatmul.bf16.gmra.mxu0 %v1194
    %v2477 = vpop.f32.mrf.mxu0
    %v2478 = vadd.f32 0.0, %v2477
    %v2479 = vpop.f32.mrf.mxu0
    %v2480 = vadd.f32 0.0, %v2479
    %2481 = vmatmul.bf16.gmra.mxu0 %v1198
    %v2482 = vpop.f32.mrf.mxu0
    %v2483 = vadd.f32 0.0, %v2482
    %v2484 = vpop.f32.mrf.mxu0
    %v2485 = vadd.f32 0.0, %v2484
    %2486 = vmatmul.bf16.gmra.mxu0 %v1202
    %v2487 = vpop.f32.mrf.mxu0
    %v2488 = vadd.f32 0.0, %v2487
    %v2489 = vpop.f32.mrf.mxu0
    %v2490 = vadd.f32 0.0, %v2489
    %2491 = vmatmul.bf16.gmra.mxu0 %v1206
    %v2492 = vpop.f32.mrf.mxu0
    %v2493 = vadd.f32 0.0, %v2492
    %v2494 = vpop.f32.mrf.mxu0
    %v2495 = vadd.f32 0.0, %v2494
    %2496 = vmatmul.bf16.gmra.mxu0 %v1210
    %v2497 = vpop.f32.mrf.mxu0
    %v2498 = vadd.f32 0.0, %v2497
    %v2499 = vpop.f32.mrf.mxu0
    %v2500 = vadd.f32 0.0, %v2499
    %2501 = vmatmul.bf16.gmra.mxu0 %v1214
    %v2502 = vpop.f32.mrf.mxu0
    %v2503 = vadd.f32 0.0, %v2502
    %v2504 = vpop.f32.mrf.mxu0
    %v2505 = vadd.f32 0.0, %v2504
    %2506 = vmatmul.bf16.gmra.mxu0 %v1218
    %v2507 = vpop.f32.mrf.mxu0
    %v2508 = vadd.f32 0.0, %v2507
    %v2509 = vpop.f32.mrf.mxu0
    %v2510 = vadd.f32 0.0, %v2509
    %2511 = vmatmul.bf16.gmra.mxu0 %v1222
    %v2512 = vpop.f32.mrf.mxu0
    %v2513 = vadd.f32 0.0, %v2512
    %v2514 = vpop.f32.mrf.mxu0
    %v2515 = vadd.f32 0.0, %v2514
    %2516 = vmatmul.bf16.gmra.mxu0 %v1226
    %v2517 = vpop.f32.mrf.mxu0
    %v2518 = vadd.f32 0.0, %v2517
    %v2519 = vpop.f32.mrf.mxu0
    %v2520 = vadd.f32 0.0, %v2519
    %2521 = vmatmul.bf16.gmra.mxu0 %v1230
    %v2522 = vpop.f32.mrf.mxu0
    %v2523 = vadd.f32 0.0, %v2522
    %v2524 = vpop.f32.mrf.mxu0
    %v2525 = vadd.f32 0.0, %v2524
    %2526 = vmatmul.bf16.gmra.mxu0 %v1234
    %v2527 = vpop.f32.mrf.mxu0
    %v2528 = vadd.f32 0.0, %v2527
    %v2529 = vpop.f32.mrf.mxu0
    %v2530 = vadd.f32 0.0, %v2529
    %2531 = vmatmul.bf16.gmra.mxu0 %v1238
    %v2532 = vpop.f32.mrf.mxu0
    %v2533 = vadd.f32 0.0, %v2532
    %v2534 = vpop.f32.mrf.mxu0
    %v2535 = vadd.f32 0.0, %v2534
    %2536 = vmatmul.bf16.gmra.mxu0 %v1242
    %v2537 = vpop.f32.mrf.mxu0
    %v2538 = vadd.f32 0.0, %v2537
    %v2539 = vpop.f32.mrf.mxu0
    %v2540 = vadd.f32 0.0, %v2539
    %2541 = vmatmul.bf16.gmra.mxu0 %v1246
    %v2542 = vpop.f32.mrf.mxu0
    %v2543 = vadd.f32 0.0, %v2542
    %v2544 = vpop.f32.mrf.mxu0
    %v2545 = vadd.f32 0.0, %v2544
    %2546 = vmatmul.bf16.gmra.mxu0 %v1250
    %v2547 = vpop.f32.mrf.mxu0
    %v2548 = vadd.f32 0.0, %v2547
    %v2549 = vpop.f32.mrf.mxu0
    %v2550 = vadd.f32 0.0, %v2549
    %2551 = vdwg.mxu0
    %2552 = vmatpush.bf16.msra.mxu0 %v2366
    %2553 = vmatpush.bf16.msra.mxu0 %v2365
    %2554 = vmatpush.bf16.msra.mxu0 %v2364
    %2555 = vmatpush.bf16.msra.mxu0 %v2363
    %2556 = vmatpush.bf16.msra.mxu0 %v2362
    %2557 = vmatpush.bf16.msra.mxu0 %v2361
    %2558 = vmatpush.bf16.msra.mxu0 %v2360
    %2559 = vmatpush.bf16.msra.mxu0 %v2359
    %2560 = vmatmul.bf16.gmra.mxu0 %v1127
    %v2561 = vpop.f32.mrf.mxu0
    %v2562 = vadd.f32 %v2393, %v2561
    %v2563 = vpop.f32.mrf.mxu0
    %v2564 = vadd.f32 %v2395, %v2563
    %2565 = vmatmul.bf16.gmra.mxu0 %v1131
    %v2566 = vpop.f32.mrf.mxu0
    %v2567 = vadd.f32 %v2398, %v2566
    %v2568 = vpop.f32.mrf.mxu0
    %v2569 = vadd.f32 %v2400, %v2568
    %2570 = vmatmul.bf16.gmra.mxu0 %v1135
    %v2571 = vpop.f32.mrf.mxu0
    %v2572 = vadd.f32 %v2403, %v2571
    %v2573 = vpop.f32.mrf.mxu0
    %v2574 = vadd.f32 %v2405, %v2573
    %2575 = vmatmul.bf16.gmra.mxu0 %v1139
    %v2576 = vpop.f32.mrf.mxu0
    %v2577 = vadd.f32 %v2408, %v2576
    %v2578 = vpop.f32.mrf.mxu0
    %v2579 = vadd.f32 %v2410, %v2578
    %2580 = vmatmul.bf16.gmra.mxu0 %v1143
    %v2581 = vpop.f32.mrf.mxu0
    %v2582 = vadd.f32 %v2413, %v2581
    %v2583 = vpop.f32.mrf.mxu0
    %v2584 = vadd.f32 %v2415, %v2583
    %2585 = vmatmul.bf16.gmra.mxu0 %v1147
    %v2586 = vpop.f32.mrf.mxu0
    %v2587 = vadd.f32 %v2418, %v2586
    %v2588 = vpop.f32.mrf.mxu0
    %v2589 = vadd.f32 %v2420, %v2588
    %2590 = vmatmul.bf16.gmra.mxu0 %v1151
    %v2591 = vpop.f32.mrf.mxu0
    %v2592 = vadd.f32 %v2423, %v2591
    %v2593 = vpop.f32.mrf.mxu0
    %v2594 = vadd.f32 %v2425, %v2593
    %2595 = vmatmul.bf16.gmra.mxu0 %v1155
    %v2596 = vpop.f32.mrf.mxu0
    %v2597 = vadd.f32 %v2428, %v2596
    %v2598 = vpop.f32.mrf.mxu0
    %v2599 = vadd.f32 %v2430, %v2598
    %2600 = vmatmul.bf16.gmra.mxu0 %v1159
    %v2601 = vpop.f32.mrf.mxu0
    %v2602 = vadd.f32 %v2433, %v2601
    %v2603 = vpop.f32.mrf.mxu0
    %v2604 = vadd.f32 %v2435, %v2603
    %2605 = vmatmul.bf16.gmra.mxu0 %v1163
    %v2606 = vpop.f32.mrf.mxu0
    %v2607 = vadd.f32 %v2438, %v2606
    %v2608 = vpop.f32.mrf.mxu0
    %v2609 = vadd.f32 %v2440, %v2608
    %2610 = vmatmul.bf16.gmra.mxu0 %v1167
    %v2611 = vpop.f32.mrf.mxu0
    %v2612 = vadd.f32 %v2443, %v2611
    %v2613 = vpop.f32.mrf.mxu0
    %v2614 = vadd.f32 %v2445, %v2613
    %2615 = vmatmul.bf16.gmra.mxu0 %v1171
    %v2616 = vpop.f32.mrf.mxu0
    %v2617 = vadd.f32 %v2448, %v2616
    %v2618 = vpop.f32.mrf.mxu0
    %v2619 = vadd.f32 %v2450, %v2618
    %2620 = vmatmul.bf16.gmra.mxu0 %v1175
    %v2621 = vpop.f32.mrf.mxu0
    %v2622 = vadd.f32 %v2453, %v2621
    %v2623 = vpop.f32.mrf.mxu0
    %v2624 = vadd.f32 %v2455, %v2623
    %2625 = vmatmul.bf16.gmra.mxu0 %v1179
    %v2626 = vpop.f32.mrf.mxu0
    %v2627 = vadd.f32 %v2458, %v2626
    %v2628 = vpop.f32.mrf.mxu0
    %v2629 = vadd.f32 %v2460, %v2628
    %2630 = vmatmul.bf16.gmra.mxu0 %v1183
    %v2631 = vpop.f32.mrf.mxu0
    %v2632 = vadd.f32 %v2463, %v2631
    %v2633 = vpop.f32.mrf.mxu0
    %v2634 = vadd.f32 %v2465, %v2633
    %2635 = vmatmul.bf16.gmra.mxu0 %v1187
    %v2636 = vpop.f32.mrf.mxu0
    %v2637 = vadd.f32 %v2468, %v2636
    %v2638 = vpop.f32.mrf.mxu0
    %v2639 = vadd.f32 %v2470, %v2638
    %2640 = vmatmul.bf16.gmra.mxu0 %v1191
    %v2641 = vpop.f32.mrf.mxu0
    %v2642 = vadd.f32 %v2473, %v2641
    %v2643 = vpop.f32.mrf.mxu0
    %v2644 = vadd.f32 %v2475, %v2643
    %2645 = vmatmul.bf16.gmra.mxu0 %v1195
    %v2646 = vpop.f32.mrf.mxu0
    %v2647 = vadd.f32 %v2478, %v2646
    %v2648 = vpop.f32.mrf.mxu0
    %v2649 = vadd.f32 %v2480, %v2648
    %2650 = vmatmul.bf16.gmra.mxu0 %v1199
    %v2651 = vpop.f32.mrf.mxu0
    %v2652 = vadd.f32 %v2483, %v2651
    %v2653 = vpop.f32.mrf.mxu0
    %v2654 = vadd.f32 %v2485, %v2653
    %2655 = vmatmul.bf16.gmra.mxu0 %v1203
    %v2656 = vpop.f32.mrf.mxu0
    %v2657 = vadd.f32 %v2488, %v2656
    %v2658 = vpop.f32.mrf.mxu0
    %v2659 = vadd.f32 %v2490, %v2658
    %2660 = vmatmul.bf16.gmra.mxu0 %v1207
    %v2661 = vpop.f32.mrf.mxu0
    %v2662 = vadd.f32 %v2493, %v2661
    %v2663 = vpop.f32.mrf.mxu0
    %v2664 = vadd.f32 %v2495, %v2663
    %2665 = vmatmul.bf16.gmra.mxu0 %v1211
    %v2666 = vpop.f32.mrf.mxu0
    %v2667 = vadd.f32 %v2498, %v2666
    %v2668 = vpop.f32.mrf.mxu0
    %v2669 = vadd.f32 %v2500, %v2668
    %2670 = vmatmul.bf16.gmra.mxu0 %v1215
    %v2671 = vpop.f32.mrf.mxu0
    %v2672 = vadd.f32 %v2503, %v2671
    %v2673 = vpop.f32.mrf.mxu0
    %v2674 = vadd.f32 %v2505, %v2673
    %2675 = vmatmul.bf16.gmra.mxu0 %v1219
    %v2676 = vpop.f32.mrf.mxu0
    %v2677 = vadd.f32 %v2508, %v2676
    %v2678 = vpop.f32.mrf.mxu0
    %v2679 = vadd.f32 %v2510, %v2678
    %2680 = vmatmul.bf16.gmra.mxu0 %v1223
    %v2681 = vpop.f32.mrf.mxu0
    %v2682 = vadd.f32 %v2513, %v2681
    %v2683 = vpop.f32.mrf.mxu0
    %v2684 = vadd.f32 %v2515, %v2683
    %2685 = vmatmul.bf16.gmra.mxu0 %v1227
    %v2686 = vpop.f32.mrf.mxu0
    %v2687 = vadd.f32 %v2518, %v2686
    %v2688 = vpop.f32.mrf.mxu0
    %v2689 = vadd.f32 %v2520, %v2688
    %2690 = vmatmul.bf16.gmra.mxu0 %v1231
    %v2691 = vpop.f32.mrf.mxu0
    %v2692 = vadd.f32 %v2523, %v2691
    %v2693 = vpop.f32.mrf.mxu0
    %v2694 = vadd.f32 %v2525, %v2693
    %2695 = vmatmul.bf16.gmra.mxu0 %v1235
    %v2696 = vpop.f32.mrf.mxu0
    %v2697 = vadd.f32 %v2528, %v2696
    %v2698 = vpop.f32.mrf.mxu0
    %v2699 = vadd.f32 %v2530, %v2698
    %2700 = vmatmul.bf16.gmra.mxu0 %v1239
    %v2701 = vpop.f32.mrf.mxu0
    %v2702 = vadd.f32 %v2533, %v2701
    %v2703 = vpop.f32.mrf.mxu0
    %v2704 = vadd.f32 %v2535, %v2703
    %2705 = vmatmul.bf16.gmra.mxu0 %v1243
    %v2706 = vpop.f32.mrf.mxu0
    %v2707 = vadd.f32 %v2538, %v2706
    %v2708 = vpop.f32.mrf.mxu0
    %v2709 = vadd.f32 %v2540, %v2708
    %2710 = vmatmul.bf16.gmra.mxu0 %v1247
    %v2711 = vpop.f32.mrf.mxu0
    %v2712 = vadd.f32 %v2543, %v2711
    %v2713 = vpop.f32.mrf.mxu0
    %v2714 = vadd.f32 %v2545, %v2713
    %2715 = vmatmul.bf16.gmra.mxu0 %v1251
    %v2716 = vpop.f32.mrf.mxu0
    %v2717 = vadd.f32 %v2548, %v2716
    %v2718 = vpop.f32.mrf.mxu0
    %v2719 = vadd.f32 %v2550, %v2718
    %2720 = vdwg.mxu0
    %2721 = vmatpush.bf16.msra.mxu0 %v2374
    %2722 = vmatpush.bf16.msra.mxu0 %v2373
    %2723 = vmatpush.bf16.msra.mxu0 %v2372
    %2724 = vmatpush.bf16.msra.mxu0 %v2371
    %2725 = vmatpush.bf16.msra.mxu0 %v2370
    %2726 = vmatpush.bf16.msra.mxu0 %v2369
    %2727 = vmatpush.bf16.msra.mxu0 %v2368
    %2728 = vmatpush.bf16.msra.mxu0 %v2367
    %2729 = vmatmul.bf16.gmra.mxu0 %v1128
    %v2730 = vpop.f32.mrf.mxu0
    %v2731 = vadd.f32 %v2562, %v2730
    %v2732 = vpop.f32.mrf.mxu0
    %v2733 = vadd.f32 %v2564, %v2732
    %2734 = vmatmul.bf16.gmra.mxu0 %v1132
    %v2735 = vpop.f32.mrf.mxu0
    %v2736 = vadd.f32 %v2567, %v2735
    %v2737 = vpop.f32.mrf.mxu0
    %v2738 = vadd.f32 %v2569, %v2737
    %2739 = vmatmul.bf16.gmra.mxu0 %v1136
    %v2740 = vpop.f32.mrf.mxu0
    %v2741 = vadd.f32 %v2572, %v2740
    %v2742 = vpop.f32.mrf.mxu0
    %v2743 = vadd.f32 %v2574, %v2742
    %2744 = vmatmul.bf16.gmra.mxu0 %v1140
    %v2745 = vpop.f32.mrf.mxu0
    %v2746 = vadd.f32 %v2577, %v2745
    %v2747 = vpop.f32.mrf.mxu0
    %v2748 = vadd.f32 %v2579, %v2747
    %2749 = vmatmul.bf16.gmra.mxu0 %v1144
    %v2750 = vpop.f32.mrf.mxu0
    %v2751 = vadd.f32 %v2582, %v2750
    %v2752 = vpop.f32.mrf.mxu0
    %v2753 = vadd.f32 %v2584, %v2752
    %2754 = vmatmul.bf16.gmra.mxu0 %v1148
    %v2755 = vpop.f32.mrf.mxu0
    %v2756 = vadd.f32 %v2587, %v2755
    %v2757 = vpop.f32.mrf.mxu0
    %v2758 = vadd.f32 %v2589, %v2757
    %2759 = vmatmul.bf16.gmra.mxu0 %v1152
    %v2760 = vpop.f32.mrf.mxu0
    %v2761 = vadd.f32 %v2592, %v2760
    %v2762 = vpop.f32.mrf.mxu0
    %v2763 = vadd.f32 %v2594, %v2762
    %2764 = vmatmul.bf16.gmra.mxu0 %v1156
    %v2765 = vpop.f32.mrf.mxu0
    %v2766 = vadd.f32 %v2597, %v2765
    %v2767 = vpop.f32.mrf.mxu0
    %v2768 = vadd.f32 %v2599, %v2767
    %2769 = vmatmul.bf16.gmra.mxu0 %v1160
    %v2770 = vpop.f32.mrf.mxu0
    %v2771 = vadd.f32 %v2602, %v2770
    %v2772 = vpop.f32.mrf.mxu0
    %v2773 = vadd.f32 %v2604, %v2772
    %2774 = vmatmul.bf16.gmra.mxu0 %v1164
    %v2775 = vpop.f32.mrf.mxu0
    %v2776 = vadd.f32 %v2607, %v2775
    %v2777 = vpop.f32.mrf.mxu0
    %v2778 = vadd.f32 %v2609, %v2777
    %2779 = vmatmul.bf16.gmra.mxu0 %v1168
    %v2780 = vpop.f32.mrf.mxu0
    %v2781 = vadd.f32 %v2612, %v2780
    %v2782 = vpop.f32.mrf.mxu0
    %v2783 = vadd.f32 %v2614, %v2782
    %2784 = vmatmul.bf16.gmra.mxu0 %v1172
    %v2785 = vpop.f32.mrf.mxu0
    %v2786 = vadd.f32 %v2617, %v2785
    %v2787 = vpop.f32.mrf.mxu0
    %v2788 = vadd.f32 %v2619, %v2787
    %2789 = vmatmul.bf16.gmra.mxu0 %v1176
    %v2790 = vpop.f32.mrf.mxu0
    %v2791 = vadd.f32 %v2622, %v2790
    %v2792 = vpop.f32.mrf.mxu0
    %v2793 = vadd.f32 %v2624, %v2792
    %2794 = vmatmul.bf16.gmra.mxu0 %v1180
    %v2795 = vpop.f32.mrf.mxu0
    %v2796 = vadd.f32 %v2627, %v2795
    %v2797 = vpop.f32.mrf.mxu0
    %v2798 = vadd.f32 %v2629, %v2797
    %2799 = vmatmul.bf16.gmra.mxu0 %v1184
    %v2800 = vpop.f32.mrf.mxu0
    %v2801 = vadd.f32 %v2632, %v2800
    %v2802 = vpop.f32.mrf.mxu0
    %v2803 = vadd.f32 %v2634, %v2802
    %2804 = vmatmul.bf16.gmra.mxu0 %v1188
    %v2805 = vpop.f32.mrf.mxu0
    %v2806 = vadd.f32 %v2637, %v2805
    %v2807 = vpop.f32.mrf.mxu0
    %v2808 = vadd.f32 %v2639, %v2807
    %2809 = vmatmul.bf16.gmra.mxu0 %v1192
    %v2810 = vpop.f32.mrf.mxu0
    %v2811 = vadd.f32 %v2642, %v2810
    %v2812 = vpop.f32.mrf.mxu0
    %v2813 = vadd.f32 %v2644, %v2812
    %2814 = vmatmul.bf16.gmra.mxu0 %v1196
    %v2815 = vpop.f32.mrf.mxu0
    %v2816 = vadd.f32 %v2647, %v2815
    %v2817 = vpop.f32.mrf.mxu0
    %v2818 = vadd.f32 %v2649, %v2817
    %2819 = vmatmul.bf16.gmra.mxu0 %v1200
    %v2820 = vpop.f32.mrf.mxu0
    %v2821 = vadd.f32 %v2652, %v2820
    %v2822 = vpop.f32.mrf.mxu0
    %v2823 = vadd.f32 %v2654, %v2822
    %2824 = vmatmul.bf16.gmra.mxu0 %v1204
    %v2825 = vpop.f32.mrf.mxu0
    %v2826 = vadd.f32 %v2657, %v2825
    %v2827 = vpop.f32.mrf.mxu0
    %v2828 = vadd.f32 %v2659, %v2827
    %2829 = vmatmul.bf16.gmra.mxu0 %v1208
    %v2830 = vpop.f32.mrf.mxu0
    %v2831 = vadd.f32 %v2662, %v2830
    %v2832 = vpop.f32.mrf.mxu0
    %v2833 = vadd.f32 %v2664, %v2832
    %2834 = vmatmul.bf16.gmra.mxu0 %v1212
    %v2835 = vpop.f32.mrf.mxu0
    %v2836 = vadd.f32 %v2667, %v2835
    %v2837 = vpop.f32.mrf.mxu0
    %v2838 = vadd.f32 %v2669, %v2837
    %2839 = vmatmul.bf16.gmra.mxu0 %v1216
    %v2840 = vpop.f32.mrf.mxu0
    %v2841 = vadd.f32 %v2672, %v2840
    %v2842 = vpop.f32.mrf.mxu0
    %v2843 = vadd.f32 %v2674, %v2842
    %2844 = vmatmul.bf16.gmra.mxu0 %v1220
    %v2845 = vpop.f32.mrf.mxu0
    %v2846 = vadd.f32 %v2677, %v2845
    %v2847 = vpop.f32.mrf.mxu0
    %v2848 = vadd.f32 %v2679, %v2847
    %2849 = vmatmul.bf16.gmra.mxu0 %v1224
    %v2850 = vpop.f32.mrf.mxu0
    %v2851 = vadd.f32 %v2682, %v2850
    %v2852 = vpop.f32.mrf.mxu0
    %v2853 = vadd.f32 %v2684, %v2852
    %2854 = vmatmul.bf16.gmra.mxu0 %v1228
    %v2855 = vpop.f32.mrf.mxu0
    %v2856 = vadd.f32 %v2687, %v2855
    %v2857 = vpop.f32.mrf.mxu0
    %v2858 = vadd.f32 %v2689, %v2857
    %2859 = vmatmul.bf16.gmra.mxu0 %v1232
    %v2860 = vpop.f32.mrf.mxu0
    %v2861 = vadd.f32 %v2692, %v2860
    %v2862 = vpop.f32.mrf.mxu0
    %v2863 = vadd.f32 %v2694, %v2862
    %2864 = vmatmul.bf16.gmra.mxu0 %v1236
    %v2865 = vpop.f32.mrf.mxu0
    %v2866 = vadd.f32 %v2697, %v2865
    %v2867 = vpop.f32.mrf.mxu0
    %v2868 = vadd.f32 %v2699, %v2867
    %2869 = vmatmul.bf16.gmra.mxu0 %v1240
    %v2870 = vpop.f32.mrf.mxu0
    %v2871 = vadd.f32 %v2702, %v2870
    %v2872 = vpop.f32.mrf.mxu0
    %v2873 = vadd.f32 %v2704, %v2872
    %2874 = vmatmul.bf16.gmra.mxu0 %v1244
    %v2875 = vpop.f32.mrf.mxu0
    %v2876 = vadd.f32 %v2707, %v2875
    %v2877 = vpop.f32.mrf.mxu0
    %v2878 = vadd.f32 %v2709, %v2877
    %2879 = vmatmul.bf16.gmra.mxu0 %v1248
    %v2880 = vpop.f32.mrf.mxu0
    %v2881 = vadd.f32 %v2712, %v2880
    %v2882 = vpop.f32.mrf.mxu0
    %v2883 = vadd.f32 %v2714, %v2882
    %2884 = vmatmul.bf16.gmra.mxu0 %v1252
    %v2885 = vpop.f32.mrf.mxu0
    %v2886 = vadd.f32 %v2717, %v2885
    %v2887 = vpop.f32.mrf.mxu0
    %v2888 = vadd.f32 %v2719, %v2887
    %2889 = vdwg.mxu0
    %2890 = vmatpush.bf16.msra.mxu0 %v2382
    %2891 = vmatpush.bf16.msra.mxu0 %v2381
    %2892 = vmatpush.bf16.msra.mxu0 %v2380
    %2893 = vmatpush.bf16.msra.mxu0 %v2379
    %2894 = vmatpush.bf16.msra.mxu0 %v2378
    %2895 = vmatpush.bf16.msra.mxu0 %v2377
    %2896 = vmatpush.bf16.msra.mxu0 %v2376
    %2897 = vmatpush.bf16.msra.mxu0 %v2375
    %2898 = vmatmul.bf16.gmra.mxu0 %v1129
    %v2899 = vpop.f32.mrf.mxu0
    %v2900 = vadd.f32 %v2731, %v2899
    %v2901 = vpop.f32.mrf.mxu0
    %v2902 = vadd.f32 %v2733, %v2901
    %2903 = vmatmul.bf16.gmra.mxu0 %v1133
    %v2904 = vpop.f32.mrf.mxu0
    %v2905 = vadd.f32 %v2736, %v2904
    %v2906 = vpop.f32.mrf.mxu0
    %v2907 = vadd.f32 %v2738, %v2906
    %2908 = vmatmul.bf16.gmra.mxu0 %v1137
    %v2909 = vpop.f32.mrf.mxu0
    %v2910 = vadd.f32 %v2741, %v2909
    %v2911 = vpop.f32.mrf.mxu0
    %v2912 = vadd.f32 %v2743, %v2911
    %2913 = vmatmul.bf16.gmra.mxu0 %v1141
    %v2914 = vpop.f32.mrf.mxu0
    %v2915 = vadd.f32 %v2746, %v2914
    %v2916 = vpop.f32.mrf.mxu0
    %v2917 = vadd.f32 %v2748, %v2916
    %2918 = vmatmul.bf16.gmra.mxu0 %v1145
    %v2919 = vpop.f32.mrf.mxu0
    %v2920 = vadd.f32 %v2751, %v2919
    %v2921 = vpop.f32.mrf.mxu0
    %v2922 = vadd.f32 %v2753, %v2921
    %2923 = vmatmul.bf16.gmra.mxu0 %v1149
    %v2924 = vpop.f32.mrf.mxu0
    %v2925 = vadd.f32 %v2756, %v2924
    %v2926 = vpop.f32.mrf.mxu0
    %v2927 = vadd.f32 %v2758, %v2926
    %2928 = vmatmul.bf16.gmra.mxu0 %v1153
    %v2929 = vpop.f32.mrf.mxu0
    %v2930 = vadd.f32 %v2761, %v2929
    %v2931 = vpop.f32.mrf.mxu0
    %v2932 = vadd.f32 %v2763, %v2931
    %2933 = vmatmul.bf16.gmra.mxu0 %v1157
    %v2934 = vpop.f32.mrf.mxu0
    %v2935 = vadd.f32 %v2766, %v2934
    %v2936 = vpop.f32.mrf.mxu0
    %v2937 = vadd.f32 %v2768, %v2936
    %2938 = vmatmul.bf16.gmra.mxu0 %v1161
    %v2939 = vpop.f32.mrf.mxu0
    %v2940 = vadd.f32 %v2771, %v2939
    %v2941 = vpop.f32.mrf.mxu0
    %v2942 = vadd.f32 %v2773, %v2941
    %2943 = vmatmul.bf16.gmra.mxu0 %v1165
    %v2944 = vpop.f32.mrf.mxu0
    %v2945 = vadd.f32 %v2776, %v2944
    %v2946 = vpop.f32.mrf.mxu0
    %v2947 = vadd.f32 %v2778, %v2946
    %2948 = vmatmul.bf16.gmra.mxu0 %v1169
    %v2949 = vpop.f32.mrf.mxu0
    %v2950 = vadd.f32 %v2781, %v2949
    %v2951 = vpop.f32.mrf.mxu0
    %v2952 = vadd.f32 %v2783, %v2951
    %2953 = vmatmul.bf16.gmra.mxu0 %v1173
    %v2954 = vpop.f32.mrf.mxu0
    %v2955 = vadd.f32 %v2786, %v2954
    %v2956 = vpop.f32.mrf.mxu0
    %v2957 = vadd.f32 %v2788, %v2956
    %2958 = vmatmul.bf16.gmra.mxu0 %v1177
    %v2959 = vpop.f32.mrf.mxu0
    %v2960 = vadd.f32 %v2791, %v2959
    %v2961 = vpop.f32.mrf.mxu0
    %v2962 = vadd.f32 %v2793, %v2961
    %2963 = vmatmul.bf16.gmra.mxu0 %v1181
    %v2964 = vpop.f32.mrf.mxu0
    %v2965 = vadd.f32 %v2796, %v2964
    %v2966 = vpop.f32.mrf.mxu0
    %v2967 = vadd.f32 %v2798, %v2966
    %2968 = vmatmul.bf16.gmra.mxu0 %v1185
    %v2969 = vpop.f32.mrf.mxu0
    %v2970 = vadd.f32 %v2801, %v2969
    %v2971 = vpop.f32.mrf.mxu0
    %v2972 = vadd.f32 %v2803, %v2971
    %2973 = vmatmul.bf16.gmra.mxu0 %v1189
    %v2974 = vpop.f32.mrf.mxu0
    %v2975 = vadd.f32 %v2806, %v2974
    %v2976 = vpop.f32.mrf.mxu0
    %v2977 = vadd.f32 %v2808, %v2976
    %2978 = vmatmul.bf16.gmra.mxu0 %v1193
    %v2979 = vpop.f32.mrf.mxu0
    %v2980 = vadd.f32 %v2811, %v2979
    %v2981 = vpop.f32.mrf.mxu0
    %v2982 = vadd.f32 %v2813, %v2981
    %2983 = vmatmul.bf16.gmra.mxu0 %v1197
    %v2984 = vpop.f32.mrf.mxu0
    %v2985 = vadd.f32 %v2816, %v2984
    %v2986 = vpop.f32.mrf.mxu0
    %v2987 = vadd.f32 %v2818, %v2986
    %2988 = vmatmul.bf16.gmra.mxu0 %v1201
    %v2989 = vpop.f32.mrf.mxu0
    %v2990 = vadd.f32 %v2821, %v2989
    %v2991 = vpop.f32.mrf.mxu0
    %v2992 = vadd.f32 %v2823, %v2991
    %2993 = vmatmul.bf16.gmra.mxu0 %v1205
    %v2994 = vpop.f32.mrf.mxu0
    %v2995 = vadd.f32 %v2826, %v2994
    %v2996 = vpop.f32.mrf.mxu0
    %v2997 = vadd.f32 %v2828, %v2996
    %2998 = vmatmul.bf16.gmra.mxu0 %v1209
    %v2999 = vpop.f32.mrf.mxu0
    %v3000 = vadd.f32 %v2831, %v2999
    %v3001 = vpop.f32.mrf.mxu0
    %v3002 = vadd.f32 %v2833, %v3001
    %3003 = vmatmul.bf16.gmra.mxu0 %v1213
    %v3004 = vpop.f32.mrf.mxu0
    %v3005 = vadd.f32 %v2836, %v3004
    %v3006 = vpop.f32.mrf.mxu0
    %v3007 = vadd.f32 %v2838, %v3006
    %3008 = vmatmul.bf16.gmra.mxu0 %v1217
    %v3009 = vpop.f32.mrf.mxu0
    %v3010 = vadd.f32 %v2841, %v3009
    %v3011 = vpop.f32.mrf.mxu0
    %v3012 = vadd.f32 %v2843, %v3011
    %3013 = vmatmul.bf16.gmra.mxu0 %v1221
    %v3014 = vpop.f32.mrf.mxu0
    %v3015 = vadd.f32 %v2846, %v3014
    %v3016 = vpop.f32.mrf.mxu0
    %v3017 = vadd.f32 %v2848, %v3016
    %3018 = vmatmul.bf16.gmra.mxu0 %v1225
    %v3019 = vpop.f32.mrf.mxu0
    %v3020 = vadd.f32 %v2851, %v3019
    %v3021 = vpop.f32.mrf.mxu0
    %v3022 = vadd.f32 %v2853, %v3021
    %3023 = vmatmul.bf16.gmra.mxu0 %v1229
    %v3024 = vpop.f32.mrf.mxu0
    %v3025 = vadd.f32 %v2856, %v3024
    %v3026 = vpop.f32.mrf.mxu0
    %v3027 = vadd.f32 %v2858, %v3026
    %3028 = vmatmul.bf16.gmra.mxu0 %v1233
    %v3029 = vpop.f32.mrf.mxu0
    %v3030 = vadd.f32 %v2861, %v3029
    %v3031 = vpop.f32.mrf.mxu0
    %v3032 = vadd.f32 %v2863, %v3031
    %3033 = vmatmul.bf16.gmra.mxu0 %v1237
    %v3034 = vpop.f32.mrf.mxu0
    %v3035 = vadd.f32 %v2866, %v3034
    %v3036 = vpop.f32.mrf.mxu0
    %v3037 = vadd.f32 %v2868, %v3036
    %3038 = vmatmul.bf16.gmra.mxu0 %v1241
    %v3039 = vpop.f32.mrf.mxu0
    %v3040 = vadd.f32 %v2871, %v3039
    %v3041 = vpop.f32.mrf.mxu0
    %v3042 = vadd.f32 %v2873, %v3041
    %3043 = vmatmul.bf16.gmra.mxu0 %v1245
    %v3044 = vpop.f32.mrf.mxu0
    %v3045 = vadd.f32 %v2876, %v3044
    %v3046 = vpop.f32.mrf.mxu0
    %v3047 = vadd.f32 %v2878, %v3046
    %3048 = vmatmul.bf16.gmra.mxu0 %v1249
    %v3049 = vpop.f32.mrf.mxu0
    %v3050 = vadd.f32 %v2881, %v3049
    %v3051 = vpop.f32.mrf.mxu0
    %v3052 = vadd.f32 %v2883, %v3051
    %3053 = vmatmul.bf16.gmra.mxu0 %v1253
    %v3054 = vpop.f32.mrf.mxu0
    %v3055 = vadd.f32 %v2886, %v3054
    %v3056 = vpop.f32.mrf.mxu0
    %v3057 = vadd.f32 %v2888, %v3056
    %3058 = vdwg.mxu0
    %v3059 = vlaneseq
    %v3060 = vand.u32 %v3059, 127
    %vm3061 = vcmp.lt.s32.totalorder %v3060, 8
    %v3062 = vsel %vm3061, %v2900, -1e+30
    %v3063 = vsel %vm3061, %v2902, -1e+30
    %v3064 = vsel %vm3061, %v2905, -1e+30
    %v3065 = vsel %vm3061, %v2907, -1e+30
    %v3066 = vsel %vm3061, %v2910, -1e+30
    %v3067 = vsel %vm3061, %v2912, -1e+30
    %v3068 = vsel %vm3061, %v2915, -1e+30
    %v3069 = vsel %vm3061, %v2917, -1e+30
    %v3070 = vsel %vm3061, %v2920, -1e+30
    %v3071 = vsel %vm3061, %v2922, -1e+30
    %v3072 = vsel %vm3061, %v2925, -1e+30
    %v3073 = vsel %vm3061, %v2927, -1e+30
    %v3074 = vsel %vm3061, %v2930, -1e+30
    %v3075 = vsel %vm3061, %v2932, -1e+30
    %v3076 = vsel %vm3061, %v2935, -1e+30
    %v3077 = vsel %vm3061, %v2937, -1e+30
    %v3078 = vsel %vm3061, %v2940, -1e+30
    %v3079 = vsel %vm3061, %v2942, -1e+30
    %v3080 = vsel %vm3061, %v2945, -1e+30
    %v3081 = vsel %vm3061, %v2947, -1e+30
    %v3082 = vsel %vm3061, %v2950, -1e+30
    %v3083 = vsel %vm3061, %v2952, -1e+30
    %v3084 = vsel %vm3061, %v2955, -1e+30
    %v3085 = vsel %vm3061, %v2957, -1e+30
    %v3086 = vsel %vm3061, %v2960, -1e+30
    %v3087 = vsel %vm3061, %v2962, -1e+30
    %v3088 = vsel %vm3061, %v2965, -1e+30
    %v3089 = vsel %vm3061, %v2967, -1e+30
    %v3090 = vsel %vm3061, %v2970, -1e+30
    %v3091 = vsel %vm3061, %v2972, -1e+30
    %v3092 = vsel %vm3061, %v2975, -1e+30
    %v3093 = vsel %vm3061, %v2977, -1e+30
    %v3094 = vsel %vm3061, %v2980, -1e+30
    %v3095 = vsel %vm3061, %v2982, -1e+30
    %v3096 = vsel %vm3061, %v2985, -1e+30
    %v3097 = vsel %vm3061, %v2987, -1e+30
    %v3098 = vsel %vm3061, %v2990, -1e+30
    %v3099 = vsel %vm3061, %v2992, -1e+30
    %v3100 = vsel %vm3061, %v2995, -1e+30
    %v3101 = vsel %vm3061, %v2997, -1e+30
    %v3102 = vsel %vm3061, %v3000, -1e+30
    %v3103 = vsel %vm3061, %v3002, -1e+30
    %v3104 = vsel %vm3061, %v3005, -1e+30
    %v3105 = vsel %vm3061, %v3007, -1e+30
    %v3106 = vsel %vm3061, %v3010, -1e+30
    %v3107 = vsel %vm3061, %v3012, -1e+30
    %v3108 = vsel %vm3061, %v3015, -1e+30
    %v3109 = vsel %vm3061, %v3017, -1e+30
    %v3110 = vsel %vm3061, %v3020, -1e+30
    %v3111 = vsel %vm3061, %v3022, -1e+30
    %v3112 = vsel %vm3061, %v3025, -1e+30
    %v3113 = vsel %vm3061, %v3027, -1e+30
    %v3114 = vsel %vm3061, %v3030, -1e+30
    %v3115 = vsel %vm3061, %v3032, -1e+30
    %v3116 = vsel %vm3061, %v3035, -1e+30
    %v3117 = vsel %vm3061, %v3037, -1e+30
    %v3118 = vsel %vm3061, %v3040, -1e+30
    %v3119 = vsel %vm3061, %v3042, -1e+30
    %v3120 = vsel %vm3061, %v3045, -1e+30
    %v3121 = vsel %vm3061, %v3047, -1e+30
    %v3122 = vsel %vm3061, %v3050, -1e+30
    %v3123 = vsel %vm3061, %v3052, -1e+30
    %v3124 = vsel %vm3061, %v3055, -1e+30
    %v3125 = vsel %vm3061, %v3057, -1e+30
    %3126 = vmax.xlane.f32.xlu0 %v3062
    %v3127 = vpop.xlane.xlu0 %3126
    %3128 = vmax.xlane.f32.xlu0 %v3063
    %v3129 = vpop.xlane.xlu0 %3128
    %3130 = vmax.xlane.f32.xlu0 %v3064
    %v3131 = vpop.xlane.xlu0 %3130
    %3132 = vmax.xlane.f32.xlu0 %v3065
    %v3133 = vpop.xlane.xlu0 %3132
    %3134 = vmax.xlane.f32.xlu0 %v3066
    %v3135 = vpop.xlane.xlu0 %3134
    %3136 = vmax.xlane.f32.xlu0 %v3067
    %v3137 = vpop.xlane.xlu0 %3136
    %3138 = vmax.xlane.f32.xlu0 %v3068
    %v3139 = vpop.xlane.xlu0 %3138
    %3140 = vmax.xlane.f32.xlu0 %v3069
    %v3141 = vpop.xlane.xlu0 %3140
    %3142 = vmax.xlane.f32.xlu0 %v3070
    %v3143 = vpop.xlane.xlu0 %3142
    %3144 = vmax.xlane.f32.xlu0 %v3071
    %v3145 = vpop.xlane.xlu0 %3144
    %3146 = vmax.xlane.f32.xlu0 %v3072
    %v3147 = vpop.xlane.xlu0 %3146
    %3148 = vmax.xlane.f32.xlu0 %v3073
    %v3149 = vpop.xlane.xlu0 %3148
    %3150 = vmax.xlane.f32.xlu0 %v3074
    %v3151 = vpop.xlane.xlu0 %3150
    %3152 = vmax.xlane.f32.xlu0 %v3075
    %v3153 = vpop.xlane.xlu0 %3152
    %3154 = vmax.xlane.f32.xlu0 %v3076
    %v3155 = vpop.xlane.xlu0 %3154
    %3156 = vmax.xlane.f32.xlu0 %v3077
    %v3157 = vpop.xlane.xlu0 %3156
    %3158 = vmax.xlane.f32.xlu0 %v3078
    %v3159 = vpop.xlane.xlu0 %3158
    %3160 = vmax.xlane.f32.xlu0 %v3079
    %v3161 = vpop.xlane.xlu0 %3160
    %3162 = vmax.xlane.f32.xlu0 %v3080
    %v3163 = vpop.xlane.xlu0 %3162
    %3164 = vmax.xlane.f32.xlu0 %v3081
    %v3165 = vpop.xlane.xlu0 %3164
    %3166 = vmax.xlane.f32.xlu0 %v3082
    %v3167 = vpop.xlane.xlu0 %3166
    %3168 = vmax.xlane.f32.xlu0 %v3083
    %v3169 = vpop.xlane.xlu0 %3168
    %3170 = vmax.xlane.f32.xlu0 %v3084
    %v3171 = vpop.xlane.xlu0 %3170
    %3172 = vmax.xlane.f32.xlu0 %v3085
    %v3173 = vpop.xlane.xlu0 %3172
    %3174 = vmax.xlane.f32.xlu0 %v3086
    %v3175 = vpop.xlane.xlu0 %3174
    %3176 = vmax.xlane.f32.xlu0 %v3087
    %v3177 = vpop.xlane.xlu0 %3176
    %3178 = vmax.xlane.f32.xlu0 %v3088
    %v3179 = vpop.xlane.xlu0 %3178
    %3180 = vmax.xlane.f32.xlu0 %v3089
    %v3181 = vpop.xlane.xlu0 %3180
    %3182 = vmax.xlane.f32.xlu0 %v3090
    %v3183 = vpop.xlane.xlu0 %3182
    %3184 = vmax.xlane.f32.xlu0 %v3091
    %v3185 = vpop.xlane.xlu0 %3184
    %3186 = vmax.xlane.f32.xlu0 %v3092
    %v3187 = vpop.xlane.xlu0 %3186
    %3188 = vmax.xlane.f32.xlu0 %v3093
    %v3189 = vpop.xlane.xlu0 %3188
    %3190 = vmax.xlane.f32.xlu0 %v3094
    %v3191 = vpop.xlane.xlu0 %3190
    %3192 = vmax.xlane.f32.xlu0 %v3095
    %v3193 = vpop.xlane.xlu0 %3192
    %3194 = vmax.xlane.f32.xlu0 %v3096
    %v3195 = vpop.xlane.xlu0 %3194
    %3196 = vmax.xlane.f32.xlu0 %v3097
    %v3197 = vpop.xlane.xlu0 %3196
    %3198 = vmax.xlane.f32.xlu0 %v3098
    %v3199 = vpop.xlane.xlu0 %3198
    %3200 = vmax.xlane.f32.xlu0 %v3099
    %v3201 = vpop.xlane.xlu0 %3200
    %3202 = vmax.xlane.f32.xlu0 %v3100
    %v3203 = vpop.xlane.xlu0 %3202
    %3204 = vmax.xlane.f32.xlu0 %v3101
    %v3205 = vpop.xlane.xlu0 %3204
    %3206 = vmax.xlane.f32.xlu0 %v3102
    %v3207 = vpop.xlane.xlu0 %3206
    %3208 = vmax.xlane.f32.xlu0 %v3103
    %v3209 = vpop.xlane.xlu0 %3208
    %3210 = vmax.xlane.f32.xlu0 %v3104
    %v3211 = vpop.xlane.xlu0 %3210
    %3212 = vmax.xlane.f32.xlu0 %v3105
    %v3213 = vpop.xlane.xlu0 %3212
    %3214 = vmax.xlane.f32.xlu0 %v3106
    %v3215 = vpop.xlane.xlu0 %3214
    %3216 = vmax.xlane.f32.xlu0 %v3107
    %v3217 = vpop.xlane.xlu0 %3216
    %3218 = vmax.xlane.f32.xlu0 %v3108
    %v3219 = vpop.xlane.xlu0 %3218
    %3220 = vmax.xlane.f32.xlu0 %v3109
    %v3221 = vpop.xlane.xlu0 %3220
    %3222 = vmax.xlane.f32.xlu0 %v3110
    %v3223 = vpop.xlane.xlu0 %3222
    %3224 = vmax.xlane.f32.xlu0 %v3111
    %v3225 = vpop.xlane.xlu0 %3224
    %3226 = vmax.xlane.f32.xlu0 %v3112
    %v3227 = vpop.xlane.xlu0 %3226
    %3228 = vmax.xlane.f32.xlu0 %v3113
    %v3229 = vpop.xlane.xlu0 %3228
    %3230 = vmax.xlane.f32.xlu0 %v3114
    %v3231 = vpop.xlane.xlu0 %3230
    %3232 = vmax.xlane.f32.xlu0 %v3115
    %v3233 = vpop.xlane.xlu0 %3232
    %3234 = vmax.xlane.f32.xlu0 %v3116
    %v3235 = vpop.xlane.xlu0 %3234
    %3236 = vmax.xlane.f32.xlu0 %v3117
    %v3237 = vpop.xlane.xlu0 %3236
    %3238 = vmax.xlane.f32.xlu0 %v3118
    %v3239 = vpop.xlane.xlu0 %3238
    %3240 = vmax.xlane.f32.xlu0 %v3119
    %v3241 = vpop.xlane.xlu0 %3240
    %3242 = vmax.xlane.f32.xlu0 %v3120
    %v3243 = vpop.xlane.xlu0 %3242
    %3244 = vmax.xlane.f32.xlu0 %v3121
    %v3245 = vpop.xlane.xlu0 %3244
    %3246 = vmax.xlane.f32.xlu0 %v3122
    %v3247 = vpop.xlane.xlu0 %3246
    %3248 = vmax.xlane.f32.xlu0 %v3123
    %v3249 = vpop.xlane.xlu0 %3248
    %3250 = vmax.xlane.f32.xlu0 %v3124
    %v3251 = vpop.xlane.xlu0 %3250
    %3252 = vmax.xlane.f32.xlu0 %v3125
    %v3253 = vpop.xlane.xlu0 %3252
    %v3254 = vsub.f32 %v3062, %v3127
    %v3255 = vsub.f32 %v3063, %v3129
    %v3256 = vsub.f32 %v3064, %v3131
    %v3257 = vsub.f32 %v3065, %v3133
    %v3258 = vsub.f32 %v3066, %v3135
    %v3259 = vsub.f32 %v3067, %v3137
    %v3260 = vsub.f32 %v3068, %v3139
    %v3261 = vsub.f32 %v3069, %v3141
    %v3262 = vsub.f32 %v3070, %v3143
    %v3263 = vsub.f32 %v3071, %v3145
    %v3264 = vsub.f32 %v3072, %v3147
    %v3265 = vsub.f32 %v3073, %v3149
    %v3266 = vsub.f32 %v3074, %v3151
    %v3267 = vsub.f32 %v3075, %v3153
    %v3268 = vsub.f32 %v3076, %v3155
    %v3269 = vsub.f32 %v3077, %v3157
    %v3270 = vsub.f32 %v3078, %v3159
    %v3271 = vsub.f32 %v3079, %v3161
    %v3272 = vsub.f32 %v3080, %v3163
    %v3273 = vsub.f32 %v3081, %v3165
    %v3274 = vsub.f32 %v3082, %v3167
    %v3275 = vsub.f32 %v3083, %v3169
    %v3276 = vsub.f32 %v3084, %v3171
    %v3277 = vsub.f32 %v3085, %v3173
    %v3278 = vsub.f32 %v3086, %v3175
    %v3279 = vsub.f32 %v3087, %v3177
    %v3280 = vsub.f32 %v3088, %v3179
    %v3281 = vsub.f32 %v3089, %v3181
    %v3282 = vsub.f32 %v3090, %v3183
    %v3283 = vsub.f32 %v3091, %v3185
    %v3284 = vsub.f32 %v3092, %v3187
    %v3285 = vsub.f32 %v3093, %v3189
    %v3286 = vsub.f32 %v3094, %v3191
    %v3287 = vsub.f32 %v3095, %v3193
    %v3288 = vsub.f32 %v3096, %v3195
    %v3289 = vsub.f32 %v3097, %v3197
    %v3290 = vsub.f32 %v3098, %v3199
    %v3291 = vsub.f32 %v3099, %v3201
    %v3292 = vsub.f32 %v3100, %v3203
    %v3293 = vsub.f32 %v3101, %v3205
    %v3294 = vsub.f32 %v3102, %v3207
    %v3295 = vsub.f32 %v3103, %v3209
    %v3296 = vsub.f32 %v3104, %v3211
    %v3297 = vsub.f32 %v3105, %v3213
    %v3298 = vsub.f32 %v3106, %v3215
    %v3299 = vsub.f32 %v3107, %v3217
    %v3300 = vsub.f32 %v3108, %v3219
    %v3301 = vsub.f32 %v3109, %v3221
    %v3302 = vsub.f32 %v3110, %v3223
    %v3303 = vsub.f32 %v3111, %v3225
    %v3304 = vsub.f32 %v3112, %v3227
    %v3305 = vsub.f32 %v3113, %v3229
    %v3306 = vsub.f32 %v3114, %v3231
    %v3307 = vsub.f32 %v3115, %v3233
    %v3308 = vsub.f32 %v3116, %v3235
    %v3309 = vsub.f32 %v3117, %v3237
    %v3310 = vsub.f32 %v3118, %v3239
    %v3311 = vsub.f32 %v3119, %v3241
    %v3312 = vsub.f32 %v3120, %v3243
    %v3313 = vsub.f32 %v3121, %v3245
    %v3314 = vsub.f32 %v3122, %v3247
    %v3315 = vsub.f32 %v3123, %v3249
    %v3316 = vsub.f32 %v3124, %v3251
    %v3317 = vsub.f32 %v3125, %v3253
    %v3318 = vmul.f32 %v3254, 1.442695
    %v3319 = vpow.pop %v3318
    %v3320 = vmul.f32 %v3255, 1.442695
    %v3321 = vpow.pop %v3320
    %v3322 = vmul.f32 %v3256, 1.442695
    %v3323 = vpow.pop %v3322
    %v3324 = vmul.f32 %v3257, 1.442695
    %v3325 = vpow.pop %v3324
    %v3326 = vmul.f32 %v3258, 1.442695
    %v3327 = vpow.pop %v3326
    %v3328 = vmul.f32 %v3259, 1.442695
    %v3329 = vpow.pop %v3328
    %v3330 = vmul.f32 %v3260, 1.442695
    %v3331 = vpow.pop %v3330
    %v3332 = vmul.f32 %v3261, 1.442695
    %v3333 = vpow.pop %v3332
    %v3334 = vmul.f32 %v3262, 1.442695
    %v3335 = vpow.pop %v3334
    %v3336 = vmul.f32 %v3263, 1.442695
    %v3337 = vpow.pop %v3336
    %v3338 = vmul.f32 %v3264, 1.442695
    %v3339 = vpow.pop %v3338
    %v3340 = vmul.f32 %v3265, 1.442695
    %v3341 = vpow.pop %v3340
    %v3342 = vmul.f32 %v3266, 1.442695
    %v3343 = vpow.pop %v3342
    %v3344 = vmul.f32 %v3267, 1.442695
    %v3345 = vpow.pop %v3344
    %v3346 = vmul.f32 %v3268, 1.442695
    %v3347 = vpow.pop %v3346
    %v3348 = vmul.f32 %v3269, 1.442695
    %v3349 = vpow.pop %v3348
    %v3350 = vmul.f32 %v3270, 1.442695
    %v3351 = vpow.pop %v3350
    %v3352 = vmul.f32 %v3271, 1.442695
    %v3353 = vpow.pop %v3352
    %v3354 = vmul.f32 %v3272, 1.442695
    %v3355 = vpow.pop %v3354
    %v3356 = vmul.f32 %v3273, 1.442695
    %v3357 = vpow.pop %v3356
    %v3358 = vmul.f32 %v3274, 1.442695
    %v3359 = vpow.pop %v3358
    %v3360 = vmul.f32 %v3275, 1.442695
    %v3361 = vpow.pop %v3360
    %v3362 = vmul.f32 %v3276, 1.442695
    %v3363 = vpow.pop %v3362
    %v3364 = vmul.f32 %v3277, 1.442695
    %v3365 = vpow.pop %v3364
    %v3366 = vmul.f32 %v3278, 1.442695
    %v3367 = vpow.pop %v3366
    %v3368 = vmul.f32 %v3279, 1.442695
    %v3369 = vpow.pop %v3368
    %v3370 = vmul.f32 %v3280, 1.442695
    %v3371 = vpow.pop %v3370
    %v3372 = vmul.f32 %v3281, 1.442695
    %v3373 = vpow.pop %v3372
    %v3374 = vmul.f32 %v3282, 1.442695
    %v3375 = vpow.pop %v3374
    %v3376 = vmul.f32 %v3283, 1.442695
    %v3377 = vpow.pop %v3376
    %v3378 = vmul.f32 %v3284, 1.442695
    %v3379 = vpow.pop %v3378
    %v3380 = vmul.f32 %v3285, 1.442695
    %v3381 = vpow.pop %v3380
    %v3382 = vmul.f32 %v3286, 1.442695
    %v3383 = vpow.pop %v3382
    %v3384 = vmul.f32 %v3287, 1.442695
    %v3385 = vpow.pop %v3384
    %v3386 = vmul.f32 %v3288, 1.442695
    %v3387 = vpow.pop %v3386
    %v3388 = vmul.f32 %v3289, 1.442695
    %v3389 = vpow.pop %v3388
    %v3390 = vmul.f32 %v3290, 1.442695
    %v3391 = vpow.pop %v3390
    %v3392 = vmul.f32 %v3291, 1.442695
    %v3393 = vpow.pop %v3392
    %v3394 = vmul.f32 %v3292, 1.442695
    %v3395 = vpow.pop %v3394
    %v3396 = vmul.f32 %v3293, 1.442695
    %v3397 = vpow.pop %v3396
    %v3398 = vmul.f32 %v3294, 1.442695
    %v3399 = vpow.pop %v3398
    %v3400 = vmul.f32 %v3295, 1.442695
    %v3401 = vpow.pop %v3400
    %v3402 = vmul.f32 %v3296, 1.442695
    %v3403 = vpow.pop %v3402
    %v3404 = vmul.f32 %v3297, 1.442695
    %v3405 = vpow.pop %v3404
    %v3406 = vmul.f32 %v3298, 1.442695
    %v3407 = vpow.pop %v3406
    %v3408 = vmul.f32 %v3299, 1.442695
    %v3409 = vpow.pop %v3408
    %v3410 = vmul.f32 %v3300, 1.442695
    %v3411 = vpow.pop %v3410
    %v3412 = vmul.f32 %v3301, 1.442695
    %v3413 = vpow.pop %v3412
    %v3414 = vmul.f32 %v3302, 1.442695
    %v3415 = vpow.pop %v3414
    %v3416 = vmul.f32 %v3303, 1.442695
    %v3417 = vpow.pop %v3416
    %v3418 = vmul.f32 %v3304, 1.442695
    %v3419 = vpow.pop %v3418
    %v3420 = vmul.f32 %v3305, 1.442695
    %v3421 = vpow.pop %v3420
    %v3422 = vmul.f32 %v3306, 1.442695
    %v3423 = vpow.pop %v3422
    %v3424 = vmul.f32 %v3307, 1.442695
    %v3425 = vpow.pop %v3424
    %v3426 = vmul.f32 %v3308, 1.442695
    %v3427 = vpow.pop %v3426
    %v3428 = vmul.f32 %v3309, 1.442695
    %v3429 = vpow.pop %v3428
    %v3430 = vmul.f32 %v3310, 1.442695
    %v3431 = vpow.pop %v3430
    %v3432 = vmul.f32 %v3311, 1.442695
    %v3433 = vpow.pop %v3432
    %v3434 = vmul.f32 %v3312, 1.442695
    %v3435 = vpow.pop %v3434
    %v3436 = vmul.f32 %v3313, 1.442695
    %v3437 = vpow.pop %v3436
    %v3438 = vmul.f32 %v3314, 1.442695
    %v3439 = vpow.pop %v3438
    %v3440 = vmul.f32 %v3315, 1.442695
    %v3441 = vpow.pop %v3440
    %v3442 = vmul.f32 %v3316, 1.442695
    %v3443 = vpow.pop %v3442
    %v3444 = vmul.f32 %v3317, 1.442695
    %v3445 = vpow.pop %v3444
    %3446 = vadd.xlane.f32.xlu0 %v3319
    %v3447 = vpop.xlane.xlu0 %3446
    %3448 = vadd.xlane.f32.xlu0 %v3321
    %v3449 = vpop.xlane.xlu0 %3448
    %3450 = vadd.xlane.f32.xlu0 %v3323
    %v3451 = vpop.xlane.xlu0 %3450
    %3452 = vadd.xlane.f32.xlu0 %v3325
    %v3453 = vpop.xlane.xlu0 %3452
    %3454 = vadd.xlane.f32.xlu0 %v3327
    %v3455 = vpop.xlane.xlu0 %3454
    %3456 = vadd.xlane.f32.xlu0 %v3329
    %v3457 = vpop.xlane.xlu0 %3456
    %3458 = vadd.xlane.f32.xlu0 %v3331
    %v3459 = vpop.xlane.xlu0 %3458
    %3460 = vadd.xlane.f32.xlu0 %v3333
    %v3461 = vpop.xlane.xlu0 %3460
    %3462 = vadd.xlane.f32.xlu0 %v3335
    %v3463 = vpop.xlane.xlu0 %3462
    %3464 = vadd.xlane.f32.xlu0 %v3337
    %v3465 = vpop.xlane.xlu0 %3464
    %3466 = vadd.xlane.f32.xlu0 %v3339
    %v3467 = vpop.xlane.xlu0 %3466
    %3468 = vadd.xlane.f32.xlu0 %v3341
    %v3469 = vpop.xlane.xlu0 %3468
    %3470 = vadd.xlane.f32.xlu0 %v3343
    %v3471 = vpop.xlane.xlu0 %3470
    %3472 = vadd.xlane.f32.xlu0 %v3345
    %v3473 = vpop.xlane.xlu0 %3472
    %3474 = vadd.xlane.f32.xlu0 %v3347
    %v3475 = vpop.xlane.xlu0 %3474
    %3476 = vadd.xlane.f32.xlu0 %v3349
    %v3477 = vpop.xlane.xlu0 %3476
    %3478 = vadd.xlane.f32.xlu0 %v3351
    %v3479 = vpop.xlane.xlu0 %3478
    %3480 = vadd.xlane.f32.xlu0 %v3353
    %v3481 = vpop.xlane.xlu0 %3480
    %3482 = vadd.xlane.f32.xlu0 %v3355
    %v3483 = vpop.xlane.xlu0 %3482
    %3484 = vadd.xlane.f32.xlu0 %v3357
    %v3485 = vpop.xlane.xlu0 %3484
    %3486 = vadd.xlane.f32.xlu0 %v3359
    %v3487 = vpop.xlane.xlu0 %3486
    %3488 = vadd.xlane.f32.xlu0 %v3361
    %v3489 = vpop.xlane.xlu0 %3488
    %3490 = vadd.xlane.f32.xlu0 %v3363
    %v3491 = vpop.xlane.xlu0 %3490
    %3492 = vadd.xlane.f32.xlu0 %v3365
    %v3493 = vpop.xlane.xlu0 %3492
    %3494 = vadd.xlane.f32.xlu0 %v3367
    %v3495 = vpop.xlane.xlu0 %3494
    %3496 = vadd.xlane.f32.xlu0 %v3369
    %v3497 = vpop.xlane.xlu0 %3496
    %3498 = vadd.xlane.f32.xlu0 %v3371
    %v3499 = vpop.xlane.xlu0 %3498
    %3500 = vadd.xlane.f32.xlu0 %v3373
    %v3501 = vpop.xlane.xlu0 %3500
    %3502 = vadd.xlane.f32.xlu0 %v3375
    %v3503 = vpop.xlane.xlu0 %3502
    %3504 = vadd.xlane.f32.xlu0 %v3377
    %v3505 = vpop.xlane.xlu0 %3504
    %3506 = vadd.xlane.f32.xlu0 %v3379
    %v3507 = vpop.xlane.xlu0 %3506
    %3508 = vadd.xlane.f32.xlu0 %v3381
    %v3509 = vpop.xlane.xlu0 %3508
    %3510 = vadd.xlane.f32.xlu0 %v3383
    %v3511 = vpop.xlane.xlu0 %3510
    %3512 = vadd.xlane.f32.xlu0 %v3385
    %v3513 = vpop.xlane.xlu0 %3512
    %3514 = vadd.xlane.f32.xlu0 %v3387
    %v3515 = vpop.xlane.xlu0 %3514
    %3516 = vadd.xlane.f32.xlu0 %v3389
    %v3517 = vpop.xlane.xlu0 %3516
    %3518 = vadd.xlane.f32.xlu0 %v3391
    %v3519 = vpop.xlane.xlu0 %3518
    %3520 = vadd.xlane.f32.xlu0 %v3393
    %v3521 = vpop.xlane.xlu0 %3520
    %3522 = vadd.xlane.f32.xlu0 %v3395
    %v3523 = vpop.xlane.xlu0 %3522
    %3524 = vadd.xlane.f32.xlu0 %v3397
    %v3525 = vpop.xlane.xlu0 %3524
    %3526 = vadd.xlane.f32.xlu0 %v3399
    %v3527 = vpop.xlane.xlu0 %3526
    %3528 = vadd.xlane.f32.xlu0 %v3401
    %v3529 = vpop.xlane.xlu0 %3528
    %3530 = vadd.xlane.f32.xlu0 %v3403
    %v3531 = vpop.xlane.xlu0 %3530
    %3532 = vadd.xlane.f32.xlu0 %v3405
    %v3533 = vpop.xlane.xlu0 %3532
    %3534 = vadd.xlane.f32.xlu0 %v3407
    %v3535 = vpop.xlane.xlu0 %3534
    %3536 = vadd.xlane.f32.xlu0 %v3409
    %v3537 = vpop.xlane.xlu0 %3536
    %3538 = vadd.xlane.f32.xlu0 %v3411
    %v3539 = vpop.xlane.xlu0 %3538
    %3540 = vadd.xlane.f32.xlu0 %v3413
    %v3541 = vpop.xlane.xlu0 %3540
    %3542 = vadd.xlane.f32.xlu0 %v3415
    %v3543 = vpop.xlane.xlu0 %3542
    %3544 = vadd.xlane.f32.xlu0 %v3417
    %v3545 = vpop.xlane.xlu0 %3544
    %3546 = vadd.xlane.f32.xlu0 %v3419
    %v3547 = vpop.xlane.xlu0 %3546
    %3548 = vadd.xlane.f32.xlu0 %v3421
    %v3549 = vpop.xlane.xlu0 %3548
    %3550 = vadd.xlane.f32.xlu0 %v3423
    %v3551 = vpop.xlane.xlu0 %3550
    %3552 = vadd.xlane.f32.xlu0 %v3425
    %v3553 = vpop.xlane.xlu0 %3552
    %3554 = vadd.xlane.f32.xlu0 %v3427
    %v3555 = vpop.xlane.xlu0 %3554
    %3556 = vadd.xlane.f32.xlu0 %v3429
    %v3557 = vpop.xlane.xlu0 %3556
    %3558 = vadd.xlane.f32.xlu0 %v3431
    %v3559 = vpop.xlane.xlu0 %3558
    %3560 = vadd.xlane.f32.xlu0 %v3433
    %v3561 = vpop.xlane.xlu0 %3560
    %3562 = vadd.xlane.f32.xlu0 %v3435
    %v3563 = vpop.xlane.xlu0 %3562
    %3564 = vadd.xlane.f32.xlu0 %v3437
    %v3565 = vpop.xlane.xlu0 %3564
    %3566 = vadd.xlane.f32.xlu0 %v3439
    %v3567 = vpop.xlane.xlu0 %3566
    %3568 = vadd.xlane.f32.xlu0 %v3441
    %v3569 = vpop.xlane.xlu0 %3568
    %3570 = vadd.xlane.f32.xlu0 %v3443
    %v3571 = vpop.xlane.xlu0 %3570
    %3572 = vadd.xlane.f32.xlu0 %v3445
    %v3573 = vpop.xlane.xlu0 %3572
    %v3574 = vlog2.pop %v3447
    %v3575 = vmul.f32 %v3574, 0.6931472
    %v3576 = vlog2.pop %v3449
    %v3577 = vmul.f32 %v3576, 0.6931472
    %v3578 = vlog2.pop %v3451
    %v3579 = vmul.f32 %v3578, 0.6931472
    %v3580 = vlog2.pop %v3453
    %v3581 = vmul.f32 %v3580, 0.6931472
    %v3582 = vlog2.pop %v3455
    %v3583 = vmul.f32 %v3582, 0.6931472
    %v3584 = vlog2.pop %v3457
    %v3585 = vmul.f32 %v3584, 0.6931472
    %v3586 = vlog2.pop %v3459
    %v3587 = vmul.f32 %v3586, 0.6931472
    %v3588 = vlog2.pop %v3461
    %v3589 = vmul.f32 %v3588, 0.6931472
    %v3590 = vlog2.pop %v3463
    %v3591 = vmul.f32 %v3590, 0.6931472
    %v3592 = vlog2.pop %v3465
    %v3593 = vmul.f32 %v3592, 0.6931472
    %v3594 = vlog2.pop %v3467
    %v3595 = vmul.f32 %v3594, 0.6931472
    %v3596 = vlog2.pop %v3469
    %v3597 = vmul.f32 %v3596, 0.6931472
    %v3598 = vlog2.pop %v3471
    %v3599 = vmul.f32 %v3598, 0.6931472
    %v3600 = vlog2.pop %v3473
    %v3601 = vmul.f32 %v3600, 0.6931472
    %v3602 = vlog2.pop %v3475
    %v3603 = vmul.f32 %v3602, 0.6931472
    %v3604 = vlog2.pop %v3477
    %v3605 = vmul.f32 %v3604, 0.6931472
    %v3606 = vlog2.pop %v3479
    %v3607 = vmul.f32 %v3606, 0.6931472
    %v3608 = vlog2.pop %v3481
    %v3609 = vmul.f32 %v3608, 0.6931472
    %v3610 = vlog2.pop %v3483
    %v3611 = vmul.f32 %v3610, 0.6931472
    %v3612 = vlog2.pop %v3485
    %v3613 = vmul.f32 %v3612, 0.6931472
    %v3614 = vlog2.pop %v3487
    %v3615 = vmul.f32 %v3614, 0.6931472
    %v3616 = vlog2.pop %v3489
    %v3617 = vmul.f32 %v3616, 0.6931472
    %v3618 = vlog2.pop %v3491
    %v3619 = vmul.f32 %v3618, 0.6931472
    %v3620 = vlog2.pop %v3493
    %v3621 = vmul.f32 %v3620, 0.6931472
    %v3622 = vlog2.pop %v3495
    %v3623 = vmul.f32 %v3622, 0.6931472
    %v3624 = vlog2.pop %v3497
    %v3625 = vmul.f32 %v3624, 0.6931472
    %v3626 = vlog2.pop %v3499
    %v3627 = vmul.f32 %v3626, 0.6931472
    %v3628 = vlog2.pop %v3501
    %v3629 = vmul.f32 %v3628, 0.6931472
    %v3630 = vlog2.pop %v3503
    %v3631 = vmul.f32 %v3630, 0.6931472
    %v3632 = vlog2.pop %v3505
    %v3633 = vmul.f32 %v3632, 0.6931472
    %v3634 = vlog2.pop %v3507
    %v3635 = vmul.f32 %v3634, 0.6931472
    %v3636 = vlog2.pop %v3509
    %v3637 = vmul.f32 %v3636, 0.6931472
    %v3638 = vlog2.pop %v3511
    %v3639 = vmul.f32 %v3638, 0.6931472
    %v3640 = vlog2.pop %v3513
    %v3641 = vmul.f32 %v3640, 0.6931472
    %v3642 = vlog2.pop %v3515
    %v3643 = vmul.f32 %v3642, 0.6931472
    %v3644 = vlog2.pop %v3517
    %v3645 = vmul.f32 %v3644, 0.6931472
    %v3646 = vlog2.pop %v3519
    %v3647 = vmul.f32 %v3646, 0.6931472
    %v3648 = vlog2.pop %v3521
    %v3649 = vmul.f32 %v3648, 0.6931472
    %v3650 = vlog2.pop %v3523
    %v3651 = vmul.f32 %v3650, 0.6931472
    %v3652 = vlog2.pop %v3525
    %v3653 = vmul.f32 %v3652, 0.6931472
    %v3654 = vlog2.pop %v3527
    %v3655 = vmul.f32 %v3654, 0.6931472
    %v3656 = vlog2.pop %v3529
    %v3657 = vmul.f32 %v3656, 0.6931472
    %v3658 = vlog2.pop %v3531
    %v3659 = vmul.f32 %v3658, 0.6931472
    %v3660 = vlog2.pop %v3533
    %v3661 = vmul.f32 %v3660, 0.6931472
    %v3662 = vlog2.pop %v3535
    %v3663 = vmul.f32 %v3662, 0.6931472
    %v3664 = vlog2.pop %v3537
    %v3665 = vmul.f32 %v3664, 0.6931472
    %v3666 = vlog2.pop %v3539
    %v3667 = vmul.f32 %v3666, 0.6931472
    %v3668 = vlog2.pop %v3541
    %v3669 = vmul.f32 %v3668, 0.6931472
    %v3670 = vlog2.pop %v3543
    %v3671 = vmul.f32 %v3670, 0.6931472
    %v3672 = vlog2.pop %v3545
    %v3673 = vmul.f32 %v3672, 0.6931472
    %v3674 = vlog2.pop %v3547
    %v3675 = vmul.f32 %v3674, 0.6931472
    %v3676 = vlog2.pop %v3549
    %v3677 = vmul.f32 %v3676, 0.6931472
    %v3678 = vlog2.pop %v3551
    %v3679 = vmul.f32 %v3678, 0.6931472
    %v3680 = vlog2.pop %v3553
    %v3681 = vmul.f32 %v3680, 0.6931472
    %v3682 = vlog2.pop %v3555
    %v3683 = vmul.f32 %v3682, 0.6931472
    %v3684 = vlog2.pop %v3557
    %v3685 = vmul.f32 %v3684, 0.6931472
    %v3686 = vlog2.pop %v3559
    %v3687 = vmul.f32 %v3686, 0.6931472
    %v3688 = vlog2.pop %v3561
    %v3689 = vmul.f32 %v3688, 0.6931472
    %v3690 = vlog2.pop %v3563
    %v3691 = vmul.f32 %v3690, 0.6931472
    %v3692 = vlog2.pop %v3565
    %v3693 = vmul.f32 %v3692, 0.6931472
    %v3694 = vlog2.pop %v3567
    %v3695 = vmul.f32 %v3694, 0.6931472
    %v3696 = vlog2.pop %v3569
    %v3697 = vmul.f32 %v3696, 0.6931472
    %v3698 = vlog2.pop %v3571
    %v3699 = vmul.f32 %v3698, 0.6931472
    %v3700 = vlog2.pop %v3573
    %v3701 = vmul.f32 %v3700, 0.6931472
    %v3702 = vsub.f32 %v3254, %v3575
    %v3703 = vsub.f32 %v3255, %v3577
    %v3704 = vsub.f32 %v3256, %v3579
    %v3705 = vsub.f32 %v3257, %v3581
    %v3706 = vsub.f32 %v3258, %v3583
    %v3707 = vsub.f32 %v3259, %v3585
    %v3708 = vsub.f32 %v3260, %v3587
    %v3709 = vsub.f32 %v3261, %v3589
    %v3710 = vsub.f32 %v3262, %v3591
    %v3711 = vsub.f32 %v3263, %v3593
    %v3712 = vsub.f32 %v3264, %v3595
    %v3713 = vsub.f32 %v3265, %v3597
    %v3714 = vsub.f32 %v3266, %v3599
    %v3715 = vsub.f32 %v3267, %v3601
    %v3716 = vsub.f32 %v3268, %v3603
    %v3717 = vsub.f32 %v3269, %v3605
    %v3718 = vsub.f32 %v3270, %v3607
    %v3719 = vsub.f32 %v3271, %v3609
    %v3720 = vsub.f32 %v3272, %v3611
    %v3721 = vsub.f32 %v3273, %v3613
    %v3722 = vsub.f32 %v3274, %v3615
    %v3723 = vsub.f32 %v3275, %v3617
    %v3724 = vsub.f32 %v3276, %v3619
    %v3725 = vsub.f32 %v3277, %v3621
    %v3726 = vsub.f32 %v3278, %v3623
    %v3727 = vsub.f32 %v3279, %v3625
    %v3728 = vsub.f32 %v3280, %v3627
    %v3729 = vsub.f32 %v3281, %v3629
    %v3730 = vsub.f32 %v3282, %v3631
    %v3731 = vsub.f32 %v3283, %v3633
    %v3732 = vsub.f32 %v3284, %v3635
    %v3733 = vsub.f32 %v3285, %v3637
    %v3734 = vsub.f32 %v3286, %v3639
    %v3735 = vsub.f32 %v3287, %v3641
    %v3736 = vsub.f32 %v3288, %v3643
    %v3737 = vsub.f32 %v3289, %v3645
    %v3738 = vsub.f32 %v3290, %v3647
    %v3739 = vsub.f32 %v3291, %v3649
    %v3740 = vsub.f32 %v3292, %v3651
    %v3741 = vsub.f32 %v3293, %v3653
    %v3742 = vsub.f32 %v3294, %v3655
    %v3743 = vsub.f32 %v3295, %v3657
    %v3744 = vsub.f32 %v3296, %v3659
    %v3745 = vsub.f32 %v3297, %v3661
    %v3746 = vsub.f32 %v3298, %v3663
    %v3747 = vsub.f32 %v3299, %v3665
    %v3748 = vsub.f32 %v3300, %v3667
    %v3749 = vsub.f32 %v3301, %v3669
    %v3750 = vsub.f32 %v3302, %v3671
    %v3751 = vsub.f32 %v3303, %v3673
    %v3752 = vsub.f32 %v3304, %v3675
    %v3753 = vsub.f32 %v3305, %v3677
    %v3754 = vsub.f32 %v3306, %v3679
    %v3755 = vsub.f32 %v3307, %v3681
    %v3756 = vsub.f32 %v3308, %v3683
    %v3757 = vsub.f32 %v3309, %v3685
    %v3758 = vsub.f32 %v3310, %v3687
    %v3759 = vsub.f32 %v3311, %v3689
    %v3760 = vsub.f32 %v3312, %v3691
    %v3761 = vsub.f32 %v3313, %v3693
    %v3762 = vsub.f32 %v3314, %v3695
    %v3763 = vsub.f32 %v3315, %v3697
    %v3764 = vsub.f32 %v3316, %v3699
    %v3765 = vsub.f32 %v3317, %v3701
    %3766 = vst [vmem:[#allocation5] sm:$0xff] %v3702
    %3767 = vst [vmem:[#allocation5 + $0x8] sm:$0xff] %v3703
    %3768 = vst [vmem:[#allocation5 + $0x10] sm:$0xff] %v3704
    %3769 = vst [vmem:[#allocation5 + $0x18] sm:$0xff] %v3705
    %3770 = vst [vmem:[#allocation5 + $0x20] sm:$0xff] %v3706
    %3771 = vst [vmem:[#allocation5 + $0x28] sm:$0xff] %v3707
    %3772 = vst [vmem:[#allocation5 + $0x30] sm:$0xff] %v3708
    %3773 = vst [vmem:[#allocation5 + $0x38] sm:$0xff] %v3709
    %3774 = vst [vmem:[#allocation5 + $0x40] sm:$0xff] %v3710
    %3775 = vst [vmem:[#allocation5 + $0x48] sm:$0xff] %v3711
    %3776 = vst [vmem:[#allocation5 + $0x50] sm:$0xff] %v3712
    %3777 = vst [vmem:[#allocation5 + $0x58] sm:$0xff] %v3713
    %3778 = vst [vmem:[#allocation5 + $0x60] sm:$0xff] %v3714
    %3779 = vst [vmem:[#allocation5 + $0x68] sm:$0xff] %v3715
    %3780 = vst [vmem:[#allocation5 + $0x70] sm:$0xff] %v3716
    %3781 = vst [vmem:[#allocation5 + $0x78] sm:$0xff] %v3717
    %3782 = vst [vmem:[#allocation5 + $0x80] sm:$0xff] %v3718
    %3783 = vst [vmem:[#allocation5 + $0x88] sm:$0xff] %v3719
    %3784 = vst [vmem:[#allocation5 + $0x90] sm:$0xff] %v3720
    %3785 = vst [vmem:[#allocation5 + $0x98] sm:$0xff] %v3721
    %3786 = vst [vmem:[#allocation5 + $0xa0] sm:$0xff] %v3722
    %3787 = vst [vmem:[#allocation5 + $0xa8] sm:$0xff] %v3723
    %3788 = vst [vmem:[#allocation5 + $0xb0] sm:$0xff] %v3724
    %3789 = vst [vmem:[#allocation5 + $0xb8] sm:$0xff] %v3725
    %3790 = vst [vmem:[#allocation5 + $0xc0] sm:$0xff] %v3726
    %3791 = vst [vmem:[#allocation5 + $0xc8] sm:$0xff] %v3727
    %3792 = vst [vmem:[#allocation5 + $0xd0] sm:$0xff] %v3728
    %3793 = vst [vmem:[#allocation5 + $0xd8] sm:$0xff] %v3729
    %3794 = vst [vmem:[#allocation5 + $0xe0] sm:$0xff] %v3730
    %3795 = vst [vmem:[#allocation5 + $0xe8] sm:$0xff] %v3731
    %3796 = vst [vmem:[#allocation5 + $0xf0] sm:$0xff] %v3732
    %3797 = vst [vmem:[#allocation5 + $0xf8] sm:$0xff] %v3733
    %3798 = vst [vmem:[#allocation5 + $0x100] sm:$0xff] %v3734
    %3799 = vst [vmem:[#allocation5 + $0x108] sm:$0xff] %v3735
    %3800 = vst [vmem:[#allocation5 + $0x110] sm:$0xff] %v3736
    %3801 = vst [vmem:[#allocation5 + $0x118] sm:$0xff] %v3737
    %3802 = vst [vmem:[#allocation5 + $0x120] sm:$0xff] %v3738
    %3803 = vst [vmem:[#allocation5 + $0x128] sm:$0xff] %v3739
    %3804 = vst [vmem:[#allocation5 + $0x130] sm:$0xff] %v3740
    %3805 = vst [vmem:[#allocation5 + $0x138] sm:$0xff] %v3741
    %3806 = vst [vmem:[#allocation5 + $0x140] sm:$0xff] %v3742
    %3807 = vst [vmem:[#allocation5 + $0x148] sm:$0xff] %v3743
    %3808 = vst [vmem:[#allocation5 + $0x150] sm:$0xff] %v3744
    %3809 = vst [vmem:[#allocation5 + $0x158] sm:$0xff] %v3745
    %3810 = vst [vmem:[#allocation5 + $0x160] sm:$0xff] %v3746
    %3811 = vst [vmem:[#allocation5 + $0x168] sm:$0xff] %v3747
    %3812 = vst [vmem:[#allocation5 + $0x170] sm:$0xff] %v3748
    %3813 = vst [vmem:[#allocation5 + $0x178] sm:$0xff] %v3749
    %3814 = vst [vmem:[#allocation5 + $0x180] sm:$0xff] %v3750
    %3815 = vst [vmem:[#allocation5 + $0x188] sm:$0xff] %v3751
    %3816 = vst [vmem:[#allocation5 + $0x190] sm:$0xff] %v3752
    %3817 = vst [vmem:[#allocation5 + $0x198] sm:$0xff] %v3753
    %3818 = vst [vmem:[#allocation5 + $0x1a0] sm:$0xff] %v3754
    %3819 = vst [vmem:[#allocation5 + $0x1a8] sm:$0xff] %v3755
    %3820 = vst [vmem:[#allocation5 + $0x1b0] sm:$0xff] %v3756
    %3821 = vst [vmem:[#allocation5 + $0x1b8] sm:$0xff] %v3757
    %3822 = vst [vmem:[#allocation5 + $0x1c0] sm:$0xff] %v3758
    %3823 = vst [vmem:[#allocation5 + $0x1c8] sm:$0xff] %v3759
    %3824 = vst [vmem:[#allocation5 + $0x1d0] sm:$0xff] %v3760
    %3825 = vst [vmem:[#allocation5 + $0x1d8] sm:$0xff] %v3761
    %3826 = vst [vmem:[#allocation5 + $0x1e0] sm:$0xff] %v3762
    %3827 = vst [vmem:[#allocation5 + $0x1e8] sm:$0xff] %v3763
    %3828 = vst [vmem:[#allocation5 + $0x1f0] sm:$0xff] %v3764
    %3829 = vst [vmem:[#allocation5 + $0x1f8] sm:$0xff] %v3765
    // Predicated region
    $region30: #{tpu_custom_call.1} parent=1 // pred_check
      _
    $region31: #{tpu_custom_call.1} parent=1 // pred_check_branch
      %3831 = sbr.rel (0) target = $region33
    $region32: #{tpu_custom_call.1} parent=1 // pred_region
      %3833 = vsyncadd [#allocation4], 0
      %s3834 = sshll.u32 [#allocation5], 4
      %s3835 = int_to_ptr.vmem [resolvable:$true] %s3834
      %s3836 = sshll.u32 %s6, 4
      %s3837 = int_to_ptr.hbm [resolvable:$true] %s3836
      %3842 = dma.vmem_to_hbm [thread:$0]  %s3835, 8192, %s3837, [#allocation4], 128, 128, 8
    $region33: #{tpu_custom_call.1} parent=1 // pred_fallthru
      _
    // Predicated region
    $region34: #{tpu_custom_call.1} parent=1 // pred_check
      _
    $region35: #{tpu_custom_call.1} parent=1 // pred_check_branch
      %3844 = sbr.rel (0) target = $region37
    $region36: #{tpu_custom_call.1} parent=1 // pred_region
      %3846 = dma.done [#allocation4], 8192
    $region37: #{tpu_custom_call.1} parent=1 // pred_fallthru
      _
    %3847 = vsyncpa [#allocation3], 1
    %3848 = vsyncpa [#allocation4], 1

</llo_original>
